<compile_context>
chip_gen: v7x
topology: tpu7x:2x2x1
jax: 0.10.0
libtpu: 0.0.40
codegen_flags: <defaults>
</compile_context>

<pallas_src>
import functools

import jax
import jax.numpy as jnp
from jax.experimental import pallas as pl
from jax.experimental.pallas import tpu as pltpu


# ---------------------------------------------------------------------------
# Fused kernel: fc0 (big Linear + ReLU) followed by all small tail layers.
# Gridless; every ref is a full array resident in VMEM.
# ---------------------------------------------------------------------------
def _fused_mlp_kernel(*refs, num_tail):
    x_ref = refs[0]          # (B, K)  bf16 flattened embeddings
    o_ref = refs[-1]         # (B, num_classes) f32

    # fc0: y = relu(x @ w0 + c0), full-K single MXU dot, f32 accumulation.
    h = jnp.dot(x_ref[...], refs[1][...], preferred_element_type=jnp.float32)
    h = jnp.maximum(h + refs[2][...], 0.0)

    # Tail: remaining BN-folded [Linear + ReLU] blocks, then classifier head.
    for i in range(num_tail):
        w_ref = refs[3 + 2 * i]
        c_ref = refs[4 + 2 * i]
        h = jnp.dot(h.astype(jnp.bfloat16), w_ref[...],
                    preferred_element_type=jnp.float32) + c_ref[...]
        if i < num_tail - 1:          # last layer = fc1 head (no ReLU)
            h = jnp.maximum(h, 0.0)   # ReLU (Dropout = identity at inference)

    o_ref[...] = h.astype(o_ref.dtype)


def fused_mlp_forward(x, layers):
    """x: (B, K) bf16 flattened embeddings; layers: [(w_bf16, c_f32), ...]."""
    B = x.shape[0]
    n_out = layers[-1][0].shape[1]
    num_tail = len(layers) - 1

    flat = []
    for w, c in layers:
        flat += [w, c]

    vmem = pl.BlockSpec(memory_space=pltpu.MemorySpace.VMEM)
    kernel = functools.partial(_fused_mlp_kernel, num_tail=num_tail)

    return pl.pallas_call(
        kernel,
        out_shape=jax.ShapeDtypeStruct((B, n_out), jnp.float32),
        in_specs=[vmem] * (1 + len(flat)),
        out_specs=vmem,
    )(x, *flat)


# ---------------------------------------------------------------------------
# Parameters: raw (PyTorch-shaped) init + one-time inference fold.
# ---------------------------------------------------------------------------
def init_params(key, input_size, embedding_dim, num_classes, hidden_layers):
    """Raw parameters; Linear weights stored transposed (in, out) so the
    kernel computes x @ W + b."""
    dims = [embedding_dim * 1000] + list(hidden_layers)
    params = {}

    key, k_emb = jax.random.split(key)
    params["embedding"] = jax.random.normal(
        k_emb, (input_size, embedding_dim), jnp.float32)   # nn.Embedding ~ N(0,1)

    mlps = []
    for i in range(1, len(dims)):
        in_d, out_d = dims[i - 1], dims[i]
        key, kw = jax.random.split(key)
        w = jax.random.normal(kw, (in_d, out_d), jnp.float32) / jnp.sqrt(
            jnp.float32(in_d))
        mlps.append(dict(
            w=w,
            b=jnp.zeros((out_d,), jnp.float32),
            gamma=jnp.ones((out_d,), jnp.float32),   # BN weight
            beta=jnp.zeros((out_d,), jnp.float32),   # BN bias
            mean=jnp.zeros((out_d,), jnp.float32),   # BN running_mean
            var=jnp.ones((out_d,), jnp.float32),     # BN running_var
        ))
    params["mlps"] = mlps

    key, kw = jax.random.split(key)
    params["fc1_w"] = jax.random.normal(
        kw, (hidden_layers[-1], num_classes), jnp.float32) / jnp.sqrt(
            jnp.float32(hidden_layers[-1]))
    params["fc1_b"] = jnp.zeros((num_classes,), jnp.float32)
    return params


def fold_params(params, *, eps=1e-5):
    """One-time inference transform: fold BN into each Linear, merge bias and
    shift into a single vector, cast weights to bf16, and store the embedding
    table in bf16 so the gather already produces bf16 activations (no
    wrapper-side cast before the kernel)."""
    folded = {"embedding": params["embedding"].astype(jnp.bfloat16)}
    layers = []
    for layer in params["mlps"]:
        scale = layer["gamma"] / jnp.sqrt(layer["var"] + eps)
        shift = layer["beta"] - layer["mean"] * scale
        w = (layer["w"] * scale[None, :]).astype(jnp.bfloat16)
        c = (layer["b"] * scale + shift).astype(jnp.float32).reshape(1, -1)
        layers.append((w, c))
    layers.append((params["fc1_w"].astype(jnp.bfloat16),
                   params["fc1_b"].astype(jnp.float32).reshape(1, -1)))
    folded["layers"] = layers
    return folded


# ---------------------------------------------------------------------------
# Full model forward (inference).
# ---------------------------------------------------------------------------
def mlp_model_forward(folded, token_ids):
    # Embedding lookup (gather) + flatten kept in plain JAX; the table is bf16
    # so x arrives at the kernel already in the MXU input dtype.
    emb = jnp.take(folded["embedding"], token_ids, axis=0)   # (B, 1000, E) bf16
    x = emb.reshape(emb.shape[0], -1)                        # (B, 1000*E) bf16
    return fused_mlp_forward(x, folded["layers"])


if __name__ == "__main__":
    # Small shapes consistent with the module (seq length 1000 is hard-coded
    # by the PyTorch model via `embedding_dim * 1000`).
    input_size = 50          # vocab size
    embedding_dim = 8
    num_classes = 4
    seq_len = 1000
    batch = 8
    hidden_layers = [256, 128, 64, 16]

    root = jax.random.PRNGKey(0)
    k_in, k_par = jax.random.split(root)
    token_ids = jax.random.randint(k_in, (batch, seq_len), 0, input_size,
                                   dtype=jnp.int32)
    params = init_params(k_par, input_size, embedding_dim, num_classes,
                         hidden_layers)
    folded = fold_params(params)    # one-time BN fold + bf16 cast

    out = jax.jit(mlp_model_forward)(folded, token_ids)
    out = jax.block_until_ready(out)
    assert out.shape == (batch, num_classes)
    assert out.dtype == jnp.float32

    # Pure-JAX f32 reference (BN applied explicitly); loose tol for bf16 path.
    def ref_forward(p, ids):
        h = jnp.take(p["embedding"], ids, axis=0).reshape(ids.shape[0], -1)
        for layer in p["mlps"]:
            scale = layer["gamma"] / jnp.sqrt(layer["var"] + 1e-5)
            shift = layer["beta"] - layer["mean"] * scale
            h = jnp.maximum((h @ layer["w"] + layer["b"]) * scale + shift, 0.0)
        return h @ p["fc1_w"] + p["fc1_b"]

    ref = ref_forward(params, token_ids)
    assert jnp.allclose(out, ref, rtol=5e-2, atol=5e-2), "mismatch vs reference"
    print("KERNEL_OK")
</pallas_src>

<mosaic_0001>
module attributes {stable_mosaic.version = 11 : i64} {
  func.func @_fused_mlp_kernel(%arg0: memref<8x8000xbf16, #tpu.memory_space<vmem>>, %arg1: memref<8000x256xbf16, #tpu.memory_space<vmem>>, %arg2: memref<1x256xf32, #tpu.memory_space<vmem>>, %arg3: memref<256x128xbf16, #tpu.memory_space<vmem>>, %arg4: memref<1x128xf32, #tpu.memory_space<vmem>>, %arg5: memref<128x64xbf16, #tpu.memory_space<vmem>>, %arg6: memref<1x64xf32, #tpu.memory_space<vmem>>, %arg7: memref<64x16xbf16, #tpu.memory_space<vmem>>, %arg8: memref<1x16xf32, #tpu.memory_space<vmem>>, %arg9: memref<16x4xbf16, #tpu.memory_space<vmem>>, %arg10: memref<1x4xf32, #tpu.memory_space<vmem>>, %arg11: memref<8x4xf32, #tpu.memory_space<vmem>>) attributes {dimension_semantics = [], scalar_prefetch = 0 : i64, scratch_operands = 0 : i64, tpu.core_type = #tpu.core_type<tc>} {
    %c0 = arith.constant 0 : index
    %c0_0 = arith.constant 0 : index
    %0 = vector.load %arg0[%c0, %c0_0] : memref<8x8000xbf16, #tpu.memory_space<vmem>>, vector<8x8000xbf16>
    %c0_1 = arith.constant 0 : index
    %c0_2 = arith.constant 0 : index
    %1 = vector.load %arg1[%c0_1, %c0_2] : memref<8000x256xbf16, #tpu.memory_space<vmem>>, vector<8000x256xbf16>
    %cst = arith.constant dense<0.000000e+00> : vector<8x256xf32>
    %2 = tpu.matmul %0, %1, %cst {dimension_numbers = #tpu.dot_dimension_numbers<[1], [0], [0], [1], [0, 0, 1, 1], [], []>} : vector<8x8000xbf16>, vector<8000x256xbf16>, vector<8x256xf32> -> vector<8x256xf32>
    %c0_3 = arith.constant 0 : index
    %c0_4 = arith.constant 0 : index
    %3 = vector.load %arg2[%c0_3, %c0_4] : memref<1x256xf32, #tpu.memory_space<vmem>>, vector<1x256xf32>
    %4 = vector.broadcast %3 : vector<1x256xf32> to vector<8x256xf32>
    %5 = arith.addf %2, %4 : vector<8x256xf32>
    %cst_5 = arith.constant 0.000000e+00 : f32
    %6 = vector.broadcast %cst_5 : f32 to vector<8x256xf32>
    %7 = arith.maximumf %5, %6 : vector<8x256xf32>
    %8 = arith.truncf %7 : vector<8x256xf32> to vector<8x256xbf16>
    %c0_6 = arith.constant 0 : index
    %c0_7 = arith.constant 0 : index
    %9 = vector.load %arg3[%c0_6, %c0_7] : memref<256x128xbf16, #tpu.memory_space<vmem>>, vector<256x128xbf16>
    %cst_8 = arith.constant dense<0.000000e+00> : vector<8x128xf32>
    %10 = tpu.matmul %8, %9, %cst_8 {dimension_numbers = #tpu.dot_dimension_numbers<[1], [0], [0], [1], [0, 0, 1, 1], [], []>} : vector<8x256xbf16>, vector<256x128xbf16>, vector<8x128xf32> -> vector<8x128xf32>
    %c0_9 = arith.constant 0 : index
    %c0_10 = arith.constant 0 : index
    %11 = vector.load %arg4[%c0_9, %c0_10] : memref<1x128xf32, #tpu.memory_space<vmem>>, vector<1x128xf32>
    %12 = vector.broadcast %11 : vector<1x128xf32> to vector<8x128xf32>
    %13 = arith.addf %10, %12 : vector<8x128xf32>
    %cst_11 = arith.constant 0.000000e+00 : f32
    %14 = vector.broadcast %cst_11 : f32 to vector<8x128xf32>
    %15 = arith.maximumf %13, %14 : vector<8x128xf32>
    %16 = arith.truncf %15 : vector<8x128xf32> to vector<8x128xbf16>
    %c0_12 = arith.constant 0 : index
    %c0_13 = arith.constant 0 : index
    %17 = vector.load %arg5[%c0_12, %c0_13] : memref<128x64xbf16, #tpu.memory_space<vmem>>, vector<128x64xbf16>
    %cst_14 = arith.constant dense<0.000000e+00> : vector<8x64xf32>
    %18 = tpu.matmul %16, %17, %cst_14 {dimension_numbers = #tpu.dot_dimension_numbers<[1], [0], [0], [1], [0, 0, 1, 1], [], []>} : vector<8x128xbf16>, vector<128x64xbf16>, vector<8x64xf32> -> vector<8x64xf32>
    %c0_15 = arith.constant 0 : index
    %c0_16 = arith.constant 0 : index
    %19 = vector.load %arg6[%c0_15, %c0_16] : memref<1x64xf32, #tpu.memory_space<vmem>>, vector<1x64xf32>
    %20 = vector.broadcast %19 : vector<1x64xf32> to vector<8x64xf32>
    %21 = arith.addf %18, %20 : vector<8x64xf32>
    %cst_17 = arith.constant 0.000000e+00 : f32
    %22 = vector.broadcast %cst_17 : f32 to vector<8x64xf32>
    %23 = arith.maximumf %21, %22 : vector<8x64xf32>
    %24 = arith.truncf %23 : vector<8x64xf32> to vector<8x64xbf16>
    %c0_18 = arith.constant 0 : index
    %c0_19 = arith.constant 0 : index
    %25 = vector.load %arg7[%c0_18, %c0_19] : memref<64x16xbf16, #tpu.memory_space<vmem>>, vector<64x16xbf16>
    %cst_20 = arith.constant dense<0.000000e+00> : vector<8x16xf32>
    %26 = tpu.matmul %24, %25, %cst_20 {dimension_numbers = #tpu.dot_dimension_numbers<[1], [0], [0], [1], [0, 0, 1, 1], [], []>} : vector<8x64xbf16>, vector<64x16xbf16>, vector<8x16xf32> -> vector<8x16xf32>
    %c0_21 = arith.constant 0 : index
    %c0_22 = arith.constant 0 : index
    %27 = vector.load %arg8[%c0_21, %c0_22] : memref<1x16xf32, #tpu.memory_space<vmem>>, vector<1x16xf32>
    %28 = vector.broadcast %27 : vector<1x16xf32> to vector<8x16xf32>
    %29 = arith.addf %26, %28 : vector<8x16xf32>
    %cst_23 = arith.constant 0.000000e+00 : f32
    %30 = vector.broadcast %cst_23 : f32 to vector<8x16xf32>
    %31 = arith.maximumf %29, %30 : vector<8x16xf32>
    %32 = arith.truncf %31 : vector<8x16xf32> to vector<8x16xbf16>
    %c0_24 = arith.constant 0 : index
    %c0_25 = arith.constant 0 : index
    %33 = vector.load %arg9[%c0_24, %c0_25] : memref<16x4xbf16, #tpu.memory_space<vmem>>, vector<16x4xbf16>
    %cst_26 = arith.constant dense<0.000000e+00> : vector<8x4xf32>
    %34 = tpu.matmul %32, %33, %cst_26 {dimension_numbers = #tpu.dot_dimension_numbers<[1], [0], [0], [1], [0, 0, 1, 1], [], []>} : vector<8x16xbf16>, vector<16x4xbf16>, vector<8x4xf32> -> vector<8x4xf32>
    %c0_27 = arith.constant 0 : index
    %c0_28 = arith.constant 0 : index
    %35 = vector.load %arg10[%c0_27, %c0_28] : memref<1x4xf32, #tpu.memory_space<vmem>>, vector<1x4xf32>
    %36 = vector.broadcast %35 : vector<1x4xf32> to vector<8x4xf32>
    %37 = arith.addf %34, %36 : vector<8x4xf32>
    %c0_29 = arith.constant 0 : index
    %c0_30 = arith.constant 0 : index
    %38 = vector.load %arg11[%c0_29, %c0_30] : memref<8x4xf32, #tpu.memory_space<vmem>>, vector<8x4xf32>
    tpu.vector_store %arg11[%c0_29, %c0_30], %37 {strides = array<i32>} : memref<8x4xf32, #tpu.memory_space<vmem>>, vector<8x4xf32>,
    return
  }
}

</mosaic_0001>

<llo_original>
// kernel: mlp_model_forward.1
$region0: #{mlp_model_forward.1}
  #allocation0 [shape = 'u32[]', space=smem, size = 0x4, offset = 0x4, fixed_abs, tag = 'smem constant byte address 0x4 - core index']
  #allocation1 [shape = 'u32[144,128]{1,0:T(1,128)}', space=vmem, size = 0x12000, scoped, tag = 'internal scratch']
  %s0 = inlined_call_operand.vmem [shape: bf16[8,8000], index: 0, kind: input, shape index: {}]
  %s1 = inlined_call_operand.vmem [shape: bf16[8000,256], index: 1, kind: input, shape index: {}]
  %s2 = inlined_call_operand.vmem [shape: f32[1,256], index: 2, kind: input, shape index: {}]
  %s3 = inlined_call_operand.vmem [shape: bf16[256,128], index: 3, kind: input, shape index: {}]
  %s4 = inlined_call_operand.vmem [shape: f32[1,128], index: 4, kind: input, shape index: {}]
  %s5 = inlined_call_operand.vmem [shape: bf16[128,64], index: 5, kind: input, shape index: {}]
  %s6 = inlined_call_operand.vmem [shape: f32[1,64], index: 6, kind: input, shape index: {}]
  %s7 = inlined_call_operand.vmem [shape: bf16[64,16], index: 7, kind: input, shape index: {}]
  %s8 = inlined_call_operand.vmem [shape: f32[1,16], index: 8, kind: input, shape index: {}]
  %s9 = inlined_call_operand.vmem [shape: bf16[16,4], index: 9, kind: input, shape index: {}]
  %s10 = inlined_call_operand.vmem [shape: f32[1,4], index: 10, kind: input, shape index: {}]
  %s11 = inlined_call_operand.vmem [shape: f32[8,4], index: 11, kind: output, shape index: {}]
  %s12 = sld [smem:[#allocation0]]
  $region54: #{mlp_model_forward.1} parent=0
    _
  %s14 = ssub.s32 1, %s12
  %s15 = scalar_select 0, %s14, %s12
  // Predicated region
  $region2: #{mlp_model_forward.1} parent=0 // pred_check
    _
  $region3: #{mlp_model_forward.1} parent=0 // pred_check_branch
    %17 = sbr.rel (0) target = $region5
  $region4: #{mlp_model_forward.1} parent=0 // pred_region
    _
  $region5: #{mlp_model_forward.1} parent=0 // pred_fallthru
    _
  // Predicated region
  $region6: #{mlp_model_forward.1} parent=0 // pred_check
    _
  $region7: #{mlp_model_forward.1} parent=0 // pred_check_branch
    %19 = sbr.rel (0) target = $region9
  $region8: #{mlp_model_forward.1} parent=0 // pred_region
    _
  $region9: #{mlp_model_forward.1} parent=0 // pred_fallthru
    _
  // Predicated region
  $region10: #{mlp_model_forward.1} parent=0 // pred_check
    _
  $region11: #{mlp_model_forward.1} parent=0 // pred_check_branch
    %21 = sbr.rel (0) target = $region13
  $region12: #{mlp_model_forward.1} parent=0 // pred_region
    _
  $region13: #{mlp_model_forward.1} parent=0 // pred_fallthru
    _
  // Predicated region
  $region14: #{mlp_model_forward.1} parent=0 // pred_check
    _
  $region15: #{mlp_model_forward.1} parent=0 // pred_check_branch
    %23 = sbr.rel (0) target = $region17
  $region16: #{mlp_model_forward.1} parent=0 // pred_region
    _
  $region17: #{mlp_model_forward.1} parent=0 // pred_fallthru
    _
  // Predicated region
  $region18: #{mlp_model_forward.1} parent=0 // pred_check
    _
  $region19: #{mlp_model_forward.1} parent=0 // pred_check_branch
    %25 = sbr.rel (0) target = $region21
  $region20: #{mlp_model_forward.1} parent=0 // pred_region
    _
  $region21: #{mlp_model_forward.1} parent=0 // pred_fallthru
    _
  // Predicated region
  $region22: #{mlp_model_forward.1} parent=0 // pred_check
    _
  $region23: #{mlp_model_forward.1} parent=0 // pred_check_branch
    %27 = sbr.rel (0) target = $region25
  $region24: #{mlp_model_forward.1} parent=0 // pred_region
    _
  $region25: #{mlp_model_forward.1} parent=0 // pred_fallthru
    _
  // Predicated region
  $region26: #{mlp_model_forward.1} parent=0 // pred_check
    _
  $region27: #{mlp_model_forward.1} parent=0 // pred_check_branch
    %29 = sbr.rel (0) target = $region29
  $region28: #{mlp_model_forward.1} parent=0 // pred_region
    _
  $region29: #{mlp_model_forward.1} parent=0 // pred_fallthru
    _
  // Predicated region
  $region30: #{mlp_model_forward.1} parent=0 // pred_check
    _
  $region31: #{mlp_model_forward.1} parent=0 // pred_check_branch
    %31 = sbr.rel (0) target = $region33
  $region32: #{mlp_model_forward.1} parent=0 // pred_region
    _
  $region33: #{mlp_model_forward.1} parent=0 // pred_fallthru
    _
  // Predicated region
  $region34: #{mlp_model_forward.1} parent=0 // pred_check
    _
  $region35: #{mlp_model_forward.1} parent=0 // pred_check_branch
    %33 = sbr.rel (0) target = $region37
  $region36: #{mlp_model_forward.1} parent=0 // pred_region
    _
  $region37: #{mlp_model_forward.1} parent=0 // pred_fallthru
    _
  // Predicated region
  $region38: #{mlp_model_forward.1} parent=0 // pred_check
    _
  $region39: #{mlp_model_forward.1} parent=0 // pred_check_branch
    %35 = sbr.rel (0) target = $region41
  $region40: #{mlp_model_forward.1} parent=0 // pred_region
    _
  $region41: #{mlp_model_forward.1} parent=0 // pred_fallthru
    _
  // Predicated region
  $region42: #{mlp_model_forward.1} parent=0 // pred_check
    _
  $region43: #{mlp_model_forward.1} parent=0 // pred_check_branch
    %37 = sbr.rel (0) target = $region45
  $region44: #{mlp_model_forward.1} parent=0 // pred_region
    _
  $region45: #{mlp_model_forward.1} parent=0 // pred_fallthru
    _
  %v39 = vld [vmem:[%s0] sm:$0xff]
  %v40 = vld [vmem:[%s0 + $0x8] sm:$0xff]
  %v41 = vld [vmem:[%s0 + $0x10] sm:$0xff]
  %v42 = vld [vmem:[%s0 + $0x18] sm:$0xff]
  %v43 = vld [vmem:[%s0 + $0x20] sm:$0xff]
  %v44 = vld [vmem:[%s0 + $0x28] sm:$0xff]
  %v45 = vld [vmem:[%s0 + $0x30] sm:$0xff]
  %v46 = vld [vmem:[%s0 + $0x38] sm:$0xff]
  %v47 = vld [vmem:[%s0 + $0x40] sm:$0xff]
  %v48 = vld [vmem:[%s0 + $0x48] sm:$0xff]
  %v49 = vld [vmem:[%s0 + $0x50] sm:$0xff]
  %v50 = vld [vmem:[%s0 + $0x58] sm:$0xff]
  %v51 = vld [vmem:[%s0 + $0x60] sm:$0xff]
  %v52 = vld [vmem:[%s0 + $0x68] sm:$0xff]
  %v53 = vld [vmem:[%s0 + $0x70] sm:$0xff]
  %v54 = vld [vmem:[%s0 + $0x78] sm:$0xff]
  %v55 = vld [vmem:[%s0 + $0x80] sm:$0xff]
  %v56 = vld [vmem:[%s0 + $0x88] sm:$0xff]
  %v57 = vld [vmem:[%s0 + $0x90] sm:$0xff]
  %v58 = vld [vmem:[%s0 + $0x98] sm:$0xff]
  %v59 = vld [vmem:[%s0 + $0xa0] sm:$0xff]
  %v60 = vld [vmem:[%s0 + $0xa8] sm:$0xff]
  %v61 = vld [vmem:[%s0 + $0xb0] sm:$0xff]
  %v62 = vld [vmem:[%s0 + $0xb8] sm:$0xff]
  %v63 = vld [vmem:[%s0 + $0xc0] sm:$0xff]
  %v64 = vld [vmem:[%s0 + $0xc8] sm:$0xff]
  %v65 = vld [vmem:[%s0 + $0xd0] sm:$0xff]
  %v66 = vld [vmem:[%s0 + $0xd8] sm:$0xff]
  %v67 = vld [vmem:[%s0 + $0xe0] sm:$0xff]
  %v68 = vld [vmem:[%s0 + $0xe8] sm:$0xff]
  %v69 = vld [vmem:[%s0 + $0xf0] sm:$0xff]
  %v70 = vld [vmem:[%s0 + $0xf8] sm:$0xf]
  %v71 = vld [vmem:[%s1] sm:$0xff]
  %v72 = vld [vmem:[%s1 + $0x8] sm:$0xff]
  %v73 = vld [vmem:[%s1 + $0x10] sm:$0xff]
  %v74 = vld [vmem:[%s1 + $0x18] sm:$0xff]
  %v75 = vld [vmem:[%s1 + $0x20] sm:$0xff]
  %v76 = vld [vmem:[%s1 + $0x28] sm:$0xff]
  %v77 = vld [vmem:[%s1 + $0x30] sm:$0xff]
  %v78 = vld [vmem:[%s1 + $0x38] sm:$0xff]
  %v79 = vld [vmem:[%s1 + $0x40] sm:$0xff]
  %v80 = vld [vmem:[%s1 + $0x48] sm:$0xff]
  %v81 = vld [vmem:[%s1 + $0x50] sm:$0xff]
  %v82 = vld [vmem:[%s1 + $0x58] sm:$0xff]
  %v83 = vld [vmem:[%s1 + $0x60] sm:$0xff]
  %v84 = vld [vmem:[%s1 + $0x68] sm:$0xff]
  %v85 = vld [vmem:[%s1 + $0x70] sm:$0xff]
  %v86 = vld [vmem:[%s1 + $0x78] sm:$0xff]
  %v87 = vld [vmem:[%s1 + $0x80] sm:$0xff]
  %v88 = vld [vmem:[%s1 + $0x88] sm:$0xff]
  %v89 = vld [vmem:[%s1 + $0x90] sm:$0xff]
  %v90 = vld [vmem:[%s1 + $0x98] sm:$0xff]
  %v91 = vld [vmem:[%s1 + $0xa0] sm:$0xff]
  %v92 = vld [vmem:[%s1 + $0xa8] sm:$0xff]
  %v93 = vld [vmem:[%s1 + $0xb0] sm:$0xff]
  %v94 = vld [vmem:[%s1 + $0xb8] sm:$0xff]
  %v95 = vld [vmem:[%s1 + $0xc0] sm:$0xff]
  %v96 = vld [vmem:[%s1 + $0xc8] sm:$0xff]
  %v97 = vld [vmem:[%s1 + $0xd0] sm:$0xff]
  %v98 = vld [vmem:[%s1 + $0xd8] sm:$0xff]
  %v99 = vld [vmem:[%s1 + $0xe0] sm:$0xff]
  %v100 = vld [vmem:[%s1 + $0xe8] sm:$0xff]
  %v101 = vld [vmem:[%s1 + $0xf0] sm:$0xff]
  %v102 = vld [vmem:[%s1 + $0xf8] sm:$0xff]
  %v103 = vld [vmem:[%s1 + $0x100] sm:$0xff]
  %v104 = vld [vmem:[%s1 + $0x108] sm:$0xff]
  %v105 = vld [vmem:[%s1 + $0x110] sm:$0xff]
  %v106 = vld [vmem:[%s1 + $0x118] sm:$0xff]
  %v107 = vld [vmem:[%s1 + $0x120] sm:$0xff]
  %v108 = vld [vmem:[%s1 + $0x128] sm:$0xff]
  %v109 = vld [vmem:[%s1 + $0x130] sm:$0xff]
  %v110 = vld [vmem:[%s1 + $0x138] sm:$0xff]
  %v111 = vld [vmem:[%s1 + $0x140] sm:$0xff]
  %v112 = vld [vmem:[%s1 + $0x148] sm:$0xff]
  %v113 = vld [vmem:[%s1 + $0x150] sm:$0xff]
  %v114 = vld [vmem:[%s1 + $0x158] sm:$0xff]
  %v115 = vld [vmem:[%s1 + $0x160] sm:$0xff]
  %v116 = vld [vmem:[%s1 + $0x168] sm:$0xff]
  %v117 = vld [vmem:[%s1 + $0x170] sm:$0xff]
  %v118 = vld [vmem:[%s1 + $0x178] sm:$0xff]
  %v119 = vld [vmem:[%s1 + $0x180] sm:$0xff]
  %v120 = vld [vmem:[%s1 + $0x188] sm:$0xff]
  %v121 = vld [vmem:[%s1 + $0x190] sm:$0xff]
  %v122 = vld [vmem:[%s1 + $0x198] sm:$0xff]
  %v123 = vld [vmem:[%s1 + $0x1a0] sm:$0xff]
  %v124 = vld [vmem:[%s1 + $0x1a8] sm:$0xff]
  %v125 = vld [vmem:[%s1 + $0x1b0] sm:$0xff]
  %v126 = vld [vmem:[%s1 + $0x1b8] sm:$0xff]
  %v127 = vld [vmem:[%s1 + $0x1c0] sm:$0xff]
  %v128 = vld [vmem:[%s1 + $0x1c8] sm:$0xff]
  %v129 = vld [vmem:[%s1 + $0x1d0] sm:$0xff]
  %v130 = vld [vmem:[%s1 + $0x1d8] sm:$0xff]
  %v131 = vld [vmem:[%s1 + $0x1e0] sm:$0xff]
  %v132 = vld [vmem:[%s1 + $0x1e8] sm:$0xff]
  %v133 = vld [vmem:[%s1 + $0x1f0] sm:$0xff]
  %v134 = vld [vmem:[%s1 + $0x1f8] sm:$0xff]
  %v135 = vld [vmem:[%s1 + $0x200] sm:$0xff]
  %v136 = vld [vmem:[%s1 + $0x208] sm:$0xff]
  %v137 = vld [vmem:[%s1 + $0x210] sm:$0xff]
  %v138 = vld [vmem:[%s1 + $0x218] sm:$0xff]
  %v139 = vld [vmem:[%s1 + $0x220] sm:$0xff]
  %v140 = vld [vmem:[%s1 + $0x228] sm:$0xff]
  %v141 = vld [vmem:[%s1 + $0x230] sm:$0xff]
  %v142 = vld [vmem:[%s1 + $0x238] sm:$0xff]
  %v143 = vld [vmem:[%s1 + $0x240] sm:$0xff]
  %v144 = vld [vmem:[%s1 + $0x248] sm:$0xff]
  %v145 = vld [vmem:[%s1 + $0x250] sm:$0xff]
  %v146 = vld [vmem:[%s1 + $0x258] sm:$0xff]
  %v147 = vld [vmem:[%s1 + $0x260] sm:$0xff]
  %v148 = vld [vmem:[%s1 + $0x268] sm:$0xff]
  %v149 = vld [vmem:[%s1 + $0x270] sm:$0xff]
  %v150 = vld [vmem:[%s1 + $0x278] sm:$0xff]
  %v151 = vld [vmem:[%s1 + $0x280] sm:$0xff]
  %v152 = vld [vmem:[%s1 + $0x288] sm:$0xff]
  %v153 = vld [vmem:[%s1 + $0x290] sm:$0xff]
  %v154 = vld [vmem:[%s1 + $0x298] sm:$0xff]
  %v155 = vld [vmem:[%s1 + $0x2a0] sm:$0xff]
  %v156 = vld [vmem:[%s1 + $0x2a8] sm:$0xff]
  %v157 = vld [vmem:[%s1 + $0x2b0] sm:$0xff]
  %v158 = vld [vmem:[%s1 + $0x2b8] sm:$0xff]
  %v159 = vld [vmem:[%s1 + $0x2c0] sm:$0xff]
  %v160 = vld [vmem:[%s1 + $0x2c8] sm:$0xff]
  %v161 = vld [vmem:[%s1 + $0x2d0] sm:$0xff]
  %v162 = vld [vmem:[%s1 + $0x2d8] sm:$0xff]
  %v163 = vld [vmem:[%s1 + $0x2e0] sm:$0xff]
  %v164 = vld [vmem:[%s1 + $0x2e8] sm:$0xff]
  %v165 = vld [vmem:[%s1 + $0x2f0] sm:$0xff]
  %v166 = vld [vmem:[%s1 + $0x2f8] sm:$0xff]
  %v167 = vld [vmem:[%s1 + $0x300] sm:$0xff]
  %v168 = vld [vmem:[%s1 + $0x308] sm:$0xff]
  %v169 = vld [vmem:[%s1 + $0x310] sm:$0xff]
  %v170 = vld [vmem:[%s1 + $0x318] sm:$0xff]
  %v171 = vld [vmem:[%s1 + $0x320] sm:$0xff]
  %v172 = vld [vmem:[%s1 + $0x328] sm:$0xff]
  %v173 = vld [vmem:[%s1 + $0x330] sm:$0xff]
  %v174 = vld [vmem:[%s1 + $0x338] sm:$0xff]
  %v175 = vld [vmem:[%s1 + $0x340] sm:$0xff]
  %v176 = vld [vmem:[%s1 + $0x348] sm:$0xff]
  %v177 = vld [vmem:[%s1 + $0x350] sm:$0xff]
  %v178 = vld [vmem:[%s1 + $0x358] sm:$0xff]
  %v179 = vld [vmem:[%s1 + $0x360] sm:$0xff]
  %v180 = vld [vmem:[%s1 + $0x368] sm:$0xff]
  %v181 = vld [vmem:[%s1 + $0x370] sm:$0xff]
  %v182 = vld [vmem:[%s1 + $0x378] sm:$0xff]
  %v183 = vld [vmem:[%s1 + $0x380] sm:$0xff]
  %v184 = vld [vmem:[%s1 + $0x388] sm:$0xff]
  %v185 = vld [vmem:[%s1 + $0x390] sm:$0xff]
  %v186 = vld [vmem:[%s1 + $0x398] sm:$0xff]
  %v187 = vld [vmem:[%s1 + $0x3a0] sm:$0xff]
  %v188 = vld [vmem:[%s1 + $0x3a8] sm:$0xff]
  %v189 = vld [vmem:[%s1 + $0x3b0] sm:$0xff]
  %v190 = vld [vmem:[%s1 + $0x3b8] sm:$0xff]
  %v191 = vld [vmem:[%s1 + $0x3c0] sm:$0xff]
  %v192 = vld [vmem:[%s1 + $0x3c8] sm:$0xff]
  %v193 = vld [vmem:[%s1 + $0x3d0] sm:$0xff]
  %v194 = vld [vmem:[%s1 + $0x3d8] sm:$0xff]
  %v195 = vld [vmem:[%s1 + $0x3e0] sm:$0xff]
  %v196 = vld [vmem:[%s1 + $0x3e8] sm:$0xff]
  %v197 = vld [vmem:[%s1 + $0x3f0] sm:$0xff]
  %v198 = vld [vmem:[%s1 + $0x3f8] sm:$0xff]
  %v199 = vld [vmem:[%s1 + $0x400] sm:$0xff]
  %v200 = vld [vmem:[%s1 + $0x408] sm:$0xff]
  %v201 = vld [vmem:[%s1 + $0x410] sm:$0xff]
  %v202 = vld [vmem:[%s1 + $0x418] sm:$0xff]
  %v203 = vld [vmem:[%s1 + $0x420] sm:$0xff]
  %v204 = vld [vmem:[%s1 + $0x428] sm:$0xff]
  %v205 = vld [vmem:[%s1 + $0x430] sm:$0xff]
  %v206 = vld [vmem:[%s1 + $0x438] sm:$0xff]
  %v207 = vld [vmem:[%s1 + $0x440] sm:$0xff]
  %v208 = vld [vmem:[%s1 + $0x448] sm:$0xff]
  %v209 = vld [vmem:[%s1 + $0x450] sm:$0xff]
  %v210 = vld [vmem:[%s1 + $0x458] sm:$0xff]
  %v211 = vld [vmem:[%s1 + $0x460] sm:$0xff]
  %v212 = vld [vmem:[%s1 + $0x468] sm:$0xff]
  %v213 = vld [vmem:[%s1 + $0x470] sm:$0xff]
  %v214 = vld [vmem:[%s1 + $0x478] sm:$0xff]
  %v215 = vld [vmem:[%s1 + $0x480] sm:$0xff]
  %v216 = vld [vmem:[%s1 + $0x488] sm:$0xff]
  %v217 = vld [vmem:[%s1 + $0x490] sm:$0xff]
  %v218 = vld [vmem:[%s1 + $0x498] sm:$0xff]
  %v219 = vld [vmem:[%s1 + $0x4a0] sm:$0xff]
  %v220 = vld [vmem:[%s1 + $0x4a8] sm:$0xff]
  %v221 = vld [vmem:[%s1 + $0x4b0] sm:$0xff]
  %v222 = vld [vmem:[%s1 + $0x4b8] sm:$0xff]
  %v223 = vld [vmem:[%s1 + $0x4c0] sm:$0xff]
  %v224 = vld [vmem:[%s1 + $0x4c8] sm:$0xff]
  %v225 = vld [vmem:[%s1 + $0x4d0] sm:$0xff]
  %v226 = vld [vmem:[%s1 + $0x4d8] sm:$0xff]
  %v227 = vld [vmem:[%s1 + $0x4e0] sm:$0xff]
  %v228 = vld [vmem:[%s1 + $0x4e8] sm:$0xff]
  %v229 = vld [vmem:[%s1 + $0x4f0] sm:$0xff]
  %v230 = vld [vmem:[%s1 + $0x4f8] sm:$0xff]
  %v231 = vld [vmem:[%s1 + $0x500] sm:$0xff]
  %v232 = vld [vmem:[%s1 + $0x508] sm:$0xff]
  %v233 = vld [vmem:[%s1 + $0x510] sm:$0xff]
  %v234 = vld [vmem:[%s1 + $0x518] sm:$0xff]
  %v235 = vld [vmem:[%s1 + $0x520] sm:$0xff]
  %v236 = vld [vmem:[%s1 + $0x528] sm:$0xff]
  %v237 = vld [vmem:[%s1 + $0x530] sm:$0xff]
  %v238 = vld [vmem:[%s1 + $0x538] sm:$0xff]
  %v239 = vld [vmem:[%s1 + $0x540] sm:$0xff]
  %v240 = vld [vmem:[%s1 + $0x548] sm:$0xff]
  %v241 = vld [vmem:[%s1 + $0x550] sm:$0xff]
  %v242 = vld [vmem:[%s1 + $0x558] sm:$0xff]
  %v243 = vld [vmem:[%s1 + $0x560] sm:$0xff]
  %v244 = vld [vmem:[%s1 + $0x568] sm:$0xff]
  %v245 = vld [vmem:[%s1 + $0x570] sm:$0xff]
  %v246 = vld [vmem:[%s1 + $0x578] sm:$0xff]
  %v247 = vld [vmem:[%s1 + $0x580] sm:$0xff]
  %v248 = vld [vmem:[%s1 + $0x588] sm:$0xff]
  %v249 = vld [vmem:[%s1 + $0x590] sm:$0xff]
  %v250 = vld [vmem:[%s1 + $0x598] sm:$0xff]
  %v251 = vld [vmem:[%s1 + $0x5a0] sm:$0xff]
  %v252 = vld [vmem:[%s1 + $0x5a8] sm:$0xff]
  %v253 = vld [vmem:[%s1 + $0x5b0] sm:$0xff]
  %v254 = vld [vmem:[%s1 + $0x5b8] sm:$0xff]
  %v255 = vld [vmem:[%s1 + $0x5c0] sm:$0xff]
  %v256 = vld [vmem:[%s1 + $0x5c8] sm:$0xff]
  %v257 = vld [vmem:[%s1 + $0x5d0] sm:$0xff]
  %v258 = vld [vmem:[%s1 + $0x5d8] sm:$0xff]
  %v259 = vld [vmem:[%s1 + $0x5e0] sm:$0xff]
  %v260 = vld [vmem:[%s1 + $0x5e8] sm:$0xff]
  %v261 = vld [vmem:[%s1 + $0x5f0] sm:$0xff]
  %v262 = vld [vmem:[%s1 + $0x5f8] sm:$0xff]
  %v263 = vld [vmem:[%s1 + $0x600] sm:$0xff]
  %v264 = vld [vmem:[%s1 + $0x608] sm:$0xff]
  %v265 = vld [vmem:[%s1 + $0x610] sm:$0xff]
  %v266 = vld [vmem:[%s1 + $0x618] sm:$0xff]
  %v267 = vld [vmem:[%s1 + $0x620] sm:$0xff]
  %v268 = vld [vmem:[%s1 + $0x628] sm:$0xff]
  %v269 = vld [vmem:[%s1 + $0x630] sm:$0xff]
  %v270 = vld [vmem:[%s1 + $0x638] sm:$0xff]
  %v271 = vld [vmem:[%s1 + $0x640] sm:$0xff]
  %v272 = vld [vmem:[%s1 + $0x648] sm:$0xff]
  %v273 = vld [vmem:[%s1 + $0x650] sm:$0xff]
  %v274 = vld [vmem:[%s1 + $0x658] sm:$0xff]
  %v275 = vld [vmem:[%s1 + $0x660] sm:$0xff]
  %v276 = vld [vmem:[%s1 + $0x668] sm:$0xff]
  %v277 = vld [vmem:[%s1 + $0x670] sm:$0xff]
  %v278 = vld [vmem:[%s1 + $0x678] sm:$0xff]
  %v279 = vld [vmem:[%s1 + $0x680] sm:$0xff]
  %v280 = vld [vmem:[%s1 + $0x688] sm:$0xff]
  %v281 = vld [vmem:[%s1 + $0x690] sm:$0xff]
  %v282 = vld [vmem:[%s1 + $0x698] sm:$0xff]
  %v283 = vld [vmem:[%s1 + $0x6a0] sm:$0xff]
  %v284 = vld [vmem:[%s1 + $0x6a8] sm:$0xff]
  %v285 = vld [vmem:[%s1 + $0x6b0] sm:$0xff]
  %v286 = vld [vmem:[%s1 + $0x6b8] sm:$0xff]
  %v287 = vld [vmem:[%s1 + $0x6c0] sm:$0xff]
  %v288 = vld [vmem:[%s1 + $0x6c8] sm:$0xff]
  %v289 = vld [vmem:[%s1 + $0x6d0] sm:$0xff]
  %v290 = vld [vmem:[%s1 + $0x6d8] sm:$0xff]
  %v291 = vld [vmem:[%s1 + $0x6e0] sm:$0xff]
  %v292 = vld [vmem:[%s1 + $0x6e8] sm:$0xff]
  %v293 = vld [vmem:[%s1 + $0x6f0] sm:$0xff]
  %v294 = vld [vmem:[%s1 + $0x6f8] sm:$0xff]
  %v295 = vld [vmem:[%s1 + $0x700] sm:$0xff]
  %v296 = vld [vmem:[%s1 + $0x708] sm:$0xff]
  %v297 = vld [vmem:[%s1 + $0x710] sm:$0xff]
  %v298 = vld [vmem:[%s1 + $0x718] sm:$0xff]
  %v299 = vld [vmem:[%s1 + $0x720] sm:$0xff]
  %v300 = vld [vmem:[%s1 + $0x728] sm:$0xff]
  %v301 = vld [vmem:[%s1 + $0x730] sm:$0xff]
  %v302 = vld [vmem:[%s1 + $0x738] sm:$0xff]
  %v303 = vld [vmem:[%s1 + $0x740] sm:$0xff]
  %v304 = vld [vmem:[%s1 + $0x748] sm:$0xff]
  %v305 = vld [vmem:[%s1 + $0x750] sm:$0xff]
  %v306 = vld [vmem:[%s1 + $0x758] sm:$0xff]
  %v307 = vld [vmem:[%s1 + $0x760] sm:$0xff]
  %v308 = vld [vmem:[%s1 + $0x768] sm:$0xff]
  %v309 = vld [vmem:[%s1 + $0x770] sm:$0xff]
  %v310 = vld [vmem:[%s1 + $0x778] sm:$0xff]
  %v311 = vld [vmem:[%s1 + $0x780] sm:$0xff]
  %v312 = vld [vmem:[%s1 + $0x788] sm:$0xff]
  %v313 = vld [vmem:[%s1 + $0x790] sm:$0xff]
  %v314 = vld [vmem:[%s1 + $0x798] sm:$0xff]
  %v315 = vld [vmem:[%s1 + $0x7a0] sm:$0xff]
  %v316 = vld [vmem:[%s1 + $0x7a8] sm:$0xff]
  %v317 = vld [vmem:[%s1 + $0x7b0] sm:$0xff]
  %v318 = vld [vmem:[%s1 + $0x7b8] sm:$0xff]
  %v319 = vld [vmem:[%s1 + $0x7c0] sm:$0xff]
  %v320 = vld [vmem:[%s1 + $0x7c8] sm:$0xff]
  %v321 = vld [vmem:[%s1 + $0x7d0] sm:$0xff]
  %v322 = vld [vmem:[%s1 + $0x7d8] sm:$0xff]
  %v323 = vld [vmem:[%s1 + $0x7e0] sm:$0xff]
  %v324 = vld [vmem:[%s1 + $0x7e8] sm:$0xff]
  %v325 = vld [vmem:[%s1 + $0x7f0] sm:$0xff]
  %v326 = vld [vmem:[%s1 + $0x7f8] sm:$0xff]
  %v327 = vld [vmem:[%s1 + $0x800] sm:$0xff]
  %v328 = vld [vmem:[%s1 + $0x808] sm:$0xff]
  %v329 = vld [vmem:[%s1 + $0x810] sm:$0xff]
  %v330 = vld [vmem:[%s1 + $0x818] sm:$0xff]
  %v331 = vld [vmem:[%s1 + $0x820] sm:$0xff]
  %v332 = vld [vmem:[%s1 + $0x828] sm:$0xff]
  %v333 = vld [vmem:[%s1 + $0x830] sm:$0xff]
  %v334 = vld [vmem:[%s1 + $0x838] sm:$0xff]
  %v335 = vld [vmem:[%s1 + $0x840] sm:$0xff]
  %v336 = vld [vmem:[%s1 + $0x848] sm:$0xff]
  %v337 = vld [vmem:[%s1 + $0x850] sm:$0xff]
  %v338 = vld [vmem:[%s1 + $0x858] sm:$0xff]
  %v339 = vld [vmem:[%s1 + $0x860] sm:$0xff]
  %v340 = vld [vmem:[%s1 + $0x868] sm:$0xff]
  %v341 = vld [vmem:[%s1 + $0x870] sm:$0xff]
  %v342 = vld [vmem:[%s1 + $0x878] sm:$0xff]
  %v343 = vld [vmem:[%s1 + $0x880] sm:$0xff]
  %v344 = vld [vmem:[%s1 + $0x888] sm:$0xff]
  %v345 = vld [vmem:[%s1 + $0x890] sm:$0xff]
  %v346 = vld [vmem:[%s1 + $0x898] sm:$0xff]
  %v347 = vld [vmem:[%s1 + $0x8a0] sm:$0xff]
  %v348 = vld [vmem:[%s1 + $0x8a8] sm:$0xff]
  %v349 = vld [vmem:[%s1 + $0x8b0] sm:$0xff]
  %v350 = vld [vmem:[%s1 + $0x8b8] sm:$0xff]
  %v351 = vld [vmem:[%s1 + $0x8c0] sm:$0xff]
  %v352 = vld [vmem:[%s1 + $0x8c8] sm:$0xff]
  %v353 = vld [vmem:[%s1 + $0x8d0] sm:$0xff]
  %v354 = vld [vmem:[%s1 + $0x8d8] sm:$0xff]
  %v355 = vld [vmem:[%s1 + $0x8e0] sm:$0xff]
  %v356 = vld [vmem:[%s1 + $0x8e8] sm:$0xff]
  %v357 = vld [vmem:[%s1 + $0x8f0] sm:$0xff]
  %v358 = vld [vmem:[%s1 + $0x8f8] sm:$0xff]
  %v359 = vld [vmem:[%s1 + $0x900] sm:$0xff]
  %v360 = vld [vmem:[%s1 + $0x908] sm:$0xff]
  %v361 = vld [vmem:[%s1 + $0x910] sm:$0xff]
  %v362 = vld [vmem:[%s1 + $0x918] sm:$0xff]
  %v363 = vld [vmem:[%s1 + $0x920] sm:$0xff]
  %v364 = vld [vmem:[%s1 + $0x928] sm:$0xff]
  %v365 = vld [vmem:[%s1 + $0x930] sm:$0xff]
  %v366 = vld [vmem:[%s1 + $0x938] sm:$0xff]
  %v367 = vld [vmem:[%s1 + $0x940] sm:$0xff]
  %v368 = vld [vmem:[%s1 + $0x948] sm:$0xff]
  %v369 = vld [vmem:[%s1 + $0x950] sm:$0xff]
  %v370 = vld [vmem:[%s1 + $0x958] sm:$0xff]
  %v371 = vld [vmem:[%s1 + $0x960] sm:$0xff]
  %v372 = vld [vmem:[%s1 + $0x968] sm:$0xff]
  %v373 = vld [vmem:[%s1 + $0x970] sm:$0xff]
  %v374 = vld [vmem:[%s1 + $0x978] sm:$0xff]
  %v375 = vld [vmem:[%s1 + $0x980] sm:$0xff]
  %v376 = vld [vmem:[%s1 + $0x988] sm:$0xff]
  %v377 = vld [vmem:[%s1 + $0x990] sm:$0xff]
  %v378 = vld [vmem:[%s1 + $0x998] sm:$0xff]
  %v379 = vld [vmem:[%s1 + $0x9a0] sm:$0xff]
  %v380 = vld [vmem:[%s1 + $0x9a8] sm:$0xff]
  %v381 = vld [vmem:[%s1 + $0x9b0] sm:$0xff]
  %v382 = vld [vmem:[%s1 + $0x9b8] sm:$0xff]
  %v383 = vld [vmem:[%s1 + $0x9c0] sm:$0xff]
  %v384 = vld [vmem:[%s1 + $0x9c8] sm:$0xff]
  %v385 = vld [vmem:[%s1 + $0x9d0] sm:$0xff]
  %v386 = vld [vmem:[%s1 + $0x9d8] sm:$0xff]
  %v387 = vld [vmem:[%s1 + $0x9e0] sm:$0xff]
  %v388 = vld [vmem:[%s1 + $0x9e8] sm:$0xff]
  %v389 = vld [vmem:[%s1 + $0x9f0] sm:$0xff]
  %v390 = vld [vmem:[%s1 + $0x9f8] sm:$0xff]
  %v391 = vld [vmem:[%s1 + $0xa00] sm:$0xff]
  %v392 = vld [vmem:[%s1 + $0xa08] sm:$0xff]
  %v393 = vld [vmem:[%s1 + $0xa10] sm:$0xff]
  %v394 = vld [vmem:[%s1 + $0xa18] sm:$0xff]
  %v395 = vld [vmem:[%s1 + $0xa20] sm:$0xff]
  %v396 = vld [vmem:[%s1 + $0xa28] sm:$0xff]
  %v397 = vld [vmem:[%s1 + $0xa30] sm:$0xff]
  %v398 = vld [vmem:[%s1 + $0xa38] sm:$0xff]
  %v399 = vld [vmem:[%s1 + $0xa40] sm:$0xff]
  %v400 = vld [vmem:[%s1 + $0xa48] sm:$0xff]
  %v401 = vld [vmem:[%s1 + $0xa50] sm:$0xff]
  %v402 = vld [vmem:[%s1 + $0xa58] sm:$0xff]
  %v403 = vld [vmem:[%s1 + $0xa60] sm:$0xff]
  %v404 = vld [vmem:[%s1 + $0xa68] sm:$0xff]
  %v405 = vld [vmem:[%s1 + $0xa70] sm:$0xff]
  %v406 = vld [vmem:[%s1 + $0xa78] sm:$0xff]
  %v407 = vld [vmem:[%s1 + $0xa80] sm:$0xff]
  %v408 = vld [vmem:[%s1 + $0xa88] sm:$0xff]
  %v409 = vld [vmem:[%s1 + $0xa90] sm:$0xff]
  %v410 = vld [vmem:[%s1 + $0xa98] sm:$0xff]
  %v411 = vld [vmem:[%s1 + $0xaa0] sm:$0xff]
  %v412 = vld [vmem:[%s1 + $0xaa8] sm:$0xff]
  %v413 = vld [vmem:[%s1 + $0xab0] sm:$0xff]
  %v414 = vld [vmem:[%s1 + $0xab8] sm:$0xff]
  %v415 = vld [vmem:[%s1 + $0xac0] sm:$0xff]
  %v416 = vld [vmem:[%s1 + $0xac8] sm:$0xff]
  %v417 = vld [vmem:[%s1 + $0xad0] sm:$0xff]
  %v418 = vld [vmem:[%s1 + $0xad8] sm:$0xff]
  %v419 = vld [vmem:[%s1 + $0xae0] sm:$0xff]
  %v420 = vld [vmem:[%s1 + $0xae8] sm:$0xff]
  %v421 = vld [vmem:[%s1 + $0xaf0] sm:$0xff]
  %v422 = vld [vmem:[%s1 + $0xaf8] sm:$0xff]
  %v423 = vld [vmem:[%s1 + $0xb00] sm:$0xff]
  %v424 = vld [vmem:[%s1 + $0xb08] sm:$0xff]
  %v425 = vld [vmem:[%s1 + $0xb10] sm:$0xff]
  %v426 = vld [vmem:[%s1 + $0xb18] sm:$0xff]
  %v427 = vld [vmem:[%s1 + $0xb20] sm:$0xff]
  %v428 = vld [vmem:[%s1 + $0xb28] sm:$0xff]
  %v429 = vld [vmem:[%s1 + $0xb30] sm:$0xff]
  %v430 = vld [vmem:[%s1 + $0xb38] sm:$0xff]
  %v431 = vld [vmem:[%s1 + $0xb40] sm:$0xff]
  %v432 = vld [vmem:[%s1 + $0xb48] sm:$0xff]
  %v433 = vld [vmem:[%s1 + $0xb50] sm:$0xff]
  %v434 = vld [vmem:[%s1 + $0xb58] sm:$0xff]
  %v435 = vld [vmem:[%s1 + $0xb60] sm:$0xff]
  %v436 = vld [vmem:[%s1 + $0xb68] sm:$0xff]
  %v437 = vld [vmem:[%s1 + $0xb70] sm:$0xff]
  %v438 = vld [vmem:[%s1 + $0xb78] sm:$0xff]
  %v439 = vld [vmem:[%s1 + $0xb80] sm:$0xff]
  %v440 = vld [vmem:[%s1 + $0xb88] sm:$0xff]
  %v441 = vld [vmem:[%s1 + $0xb90] sm:$0xff]
  %v442 = vld [vmem:[%s1 + $0xb98] sm:$0xff]
  %v443 = vld [vmem:[%s1 + $0xba0] sm:$0xff]
  %v444 = vld [vmem:[%s1 + $0xba8] sm:$0xff]
  %v445 = vld [vmem:[%s1 + $0xbb0] sm:$0xff]
  %v446 = vld [vmem:[%s1 + $0xbb8] sm:$0xff]
  %v447 = vld [vmem:[%s1 + $0xbc0] sm:$0xff]
  %v448 = vld [vmem:[%s1 + $0xbc8] sm:$0xff]
  %v449 = vld [vmem:[%s1 + $0xbd0] sm:$0xff]
  %v450 = vld [vmem:[%s1 + $0xbd8] sm:$0xff]
  %v451 = vld [vmem:[%s1 + $0xbe0] sm:$0xff]
  %v452 = vld [vmem:[%s1 + $0xbe8] sm:$0xff]
  %v453 = vld [vmem:[%s1 + $0xbf0] sm:$0xff]
  %v454 = vld [vmem:[%s1 + $0xbf8] sm:$0xff]
  %v455 = vld [vmem:[%s1 + $0xc00] sm:$0xff]
  %v456 = vld [vmem:[%s1 + $0xc08] sm:$0xff]
  %v457 = vld [vmem:[%s1 + $0xc10] sm:$0xff]
  %v458 = vld [vmem:[%s1 + $0xc18] sm:$0xff]
  %v459 = vld [vmem:[%s1 + $0xc20] sm:$0xff]
  %v460 = vld [vmem:[%s1 + $0xc28] sm:$0xff]
  %v461 = vld [vmem:[%s1 + $0xc30] sm:$0xff]
  %v462 = vld [vmem:[%s1 + $0xc38] sm:$0xff]
  %v463 = vld [vmem:[%s1 + $0xc40] sm:$0xff]
  %v464 = vld [vmem:[%s1 + $0xc48] sm:$0xff]
  %v465 = vld [vmem:[%s1 + $0xc50] sm:$0xff]
  %v466 = vld [vmem:[%s1 + $0xc58] sm:$0xff]
  %v467 = vld [vmem:[%s1 + $0xc60] sm:$0xff]
  %v468 = vld [vmem:[%s1 + $0xc68] sm:$0xff]
  %v469 = vld [vmem:[%s1 + $0xc70] sm:$0xff]
  %v470 = vld [vmem:[%s1 + $0xc78] sm:$0xff]
  %v471 = vld [vmem:[%s1 + $0xc80] sm:$0xff]
  %v472 = vld [vmem:[%s1 + $0xc88] sm:$0xff]
  %v473 = vld [vmem:[%s1 + $0xc90] sm:$0xff]
  %v474 = vld [vmem:[%s1 + $0xc98] sm:$0xff]
  %v475 = vld [vmem:[%s1 + $0xca0] sm:$0xff]
  %v476 = vld [vmem:[%s1 + $0xca8] sm:$0xff]
  %v477 = vld [vmem:[%s1 + $0xcb0] sm:$0xff]
  %v478 = vld [vmem:[%s1 + $0xcb8] sm:$0xff]
  %v479 = vld [vmem:[%s1 + $0xcc0] sm:$0xff]
  %v480 = vld [vmem:[%s1 + $0xcc8] sm:$0xff]
  %v481 = vld [vmem:[%s1 + $0xcd0] sm:$0xff]
  %v482 = vld [vmem:[%s1 + $0xcd8] sm:$0xff]
  %v483 = vld [vmem:[%s1 + $0xce0] sm:$0xff]
  %v484 = vld [vmem:[%s1 + $0xce8] sm:$0xff]
  %v485 = vld [vmem:[%s1 + $0xcf0] sm:$0xff]
  %v486 = vld [vmem:[%s1 + $0xcf8] sm:$0xff]
  %v487 = vld [vmem:[%s1 + $0xd00] sm:$0xff]
  %v488 = vld [vmem:[%s1 + $0xd08] sm:$0xff]
  %v489 = vld [vmem:[%s1 + $0xd10] sm:$0xff]
  %v490 = vld [vmem:[%s1 + $0xd18] sm:$0xff]
  %v491 = vld [vmem:[%s1 + $0xd20] sm:$0xff]
  %v492 = vld [vmem:[%s1 + $0xd28] sm:$0xff]
  %v493 = vld [vmem:[%s1 + $0xd30] sm:$0xff]
  %v494 = vld [vmem:[%s1 + $0xd38] sm:$0xff]
  %v495 = vld [vmem:[%s1 + $0xd40] sm:$0xff]
  %v496 = vld [vmem:[%s1 + $0xd48] sm:$0xff]
  %v497 = vld [vmem:[%s1 + $0xd50] sm:$0xff]
  %v498 = vld [vmem:[%s1 + $0xd58] sm:$0xff]
  %v499 = vld [vmem:[%s1 + $0xd60] sm:$0xff]
  %v500 = vld [vmem:[%s1 + $0xd68] sm:$0xff]
  %v501 = vld [vmem:[%s1 + $0xd70] sm:$0xff]
  %v502 = vld [vmem:[%s1 + $0xd78] sm:$0xff]
  %v503 = vld [vmem:[%s1 + $0xd80] sm:$0xff]
  %v504 = vld [vmem:[%s1 + $0xd88] sm:$0xff]
  %v505 = vld [vmem:[%s1 + $0xd90] sm:$0xff]
  %v506 = vld [vmem:[%s1 + $0xd98] sm:$0xff]
  %v507 = vld [vmem:[%s1 + $0xda0] sm:$0xff]
  %v508 = vld [vmem:[%s1 + $0xda8] sm:$0xff]
  %v509 = vld [vmem:[%s1 + $0xdb0] sm:$0xff]
  %v510 = vld [vmem:[%s1 + $0xdb8] sm:$0xff]
  %v511 = vld [vmem:[%s1 + $0xdc0] sm:$0xff]
  %v512 = vld [vmem:[%s1 + $0xdc8] sm:$0xff]
  %v513 = vld [vmem:[%s1 + $0xdd0] sm:$0xff]
  %v514 = vld [vmem:[%s1 + $0xdd8] sm:$0xff]
  %v515 = vld [vmem:[%s1 + $0xde0] sm:$0xff]
  %v516 = vld [vmem:[%s1 + $0xde8] sm:$0xff]
  %v517 = vld [vmem:[%s1 + $0xdf0] sm:$0xff]
  %v518 = vld [vmem:[%s1 + $0xdf8] sm:$0xff]
  %v519 = vld [vmem:[%s1 + $0xe00] sm:$0xff]
  %v520 = vld [vmem:[%s1 + $0xe08] sm:$0xff]
  %v521 = vld [vmem:[%s1 + $0xe10] sm:$0xff]
  %v522 = vld [vmem:[%s1 + $0xe18] sm:$0xff]
  %v523 = vld [vmem:[%s1 + $0xe20] sm:$0xff]
  %v524 = vld [vmem:[%s1 + $0xe28] sm:$0xff]
  %v525 = vld [vmem:[%s1 + $0xe30] sm:$0xff]
  %v526 = vld [vmem:[%s1 + $0xe38] sm:$0xff]
  %v527 = vld [vmem:[%s1 + $0xe40] sm:$0xff]
  %v528 = vld [vmem:[%s1 + $0xe48] sm:$0xff]
  %v529 = vld [vmem:[%s1 + $0xe50] sm:$0xff]
  %v530 = vld [vmem:[%s1 + $0xe58] sm:$0xff]
  %v531 = vld [vmem:[%s1 + $0xe60] sm:$0xff]
  %v532 = vld [vmem:[%s1 + $0xe68] sm:$0xff]
  %v533 = vld [vmem:[%s1 + $0xe70] sm:$0xff]
  %v534 = vld [vmem:[%s1 + $0xe78] sm:$0xff]
  %v535 = vld [vmem:[%s1 + $0xe80] sm:$0xff]
  %v536 = vld [vmem:[%s1 + $0xe88] sm:$0xff]
  %v537 = vld [vmem:[%s1 + $0xe90] sm:$0xff]
  %v538 = vld [vmem:[%s1 + $0xe98] sm:$0xff]
  %v539 = vld [vmem:[%s1 + $0xea0] sm:$0xff]
  %v540 = vld [vmem:[%s1 + $0xea8] sm:$0xff]
  %v541 = vld [vmem:[%s1 + $0xeb0] sm:$0xff]
  %v542 = vld [vmem:[%s1 + $0xeb8] sm:$0xff]
  %v543 = vld [vmem:[%s1 + $0xec0] sm:$0xff]
  %v544 = vld [vmem:[%s1 + $0xec8] sm:$0xff]
  %v545 = vld [vmem:[%s1 + $0xed0] sm:$0xff]
  %v546 = vld [vmem:[%s1 + $0xed8] sm:$0xff]
  %v547 = vld [vmem:[%s1 + $0xee0] sm:$0xff]
  %v548 = vld [vmem:[%s1 + $0xee8] sm:$0xff]
  %v549 = vld [vmem:[%s1 + $0xef0] sm:$0xff]
  %v550 = vld [vmem:[%s1 + $0xef8] sm:$0xff]
  %v551 = vld [vmem:[%s1 + $0xf00] sm:$0xff]
  %v552 = vld [vmem:[%s1 + $0xf08] sm:$0xff]
  %v553 = vld [vmem:[%s1 + $0xf10] sm:$0xff]
  %v554 = vld [vmem:[%s1 + $0xf18] sm:$0xff]
  %v555 = vld [vmem:[%s1 + $0xf20] sm:$0xff]
  %v556 = vld [vmem:[%s1 + $0xf28] sm:$0xff]
  %v557 = vld [vmem:[%s1 + $0xf30] sm:$0xff]
  %v558 = vld [vmem:[%s1 + $0xf38] sm:$0xff]
  %v559 = vld [vmem:[%s1 + $0xf40] sm:$0xff]
  %v560 = vld [vmem:[%s1 + $0xf48] sm:$0xff]
  %v561 = vld [vmem:[%s1 + $0xf50] sm:$0xff]
  %v562 = vld [vmem:[%s1 + $0xf58] sm:$0xff]
  %v563 = vld [vmem:[%s1 + $0xf60] sm:$0xff]
  %v564 = vld [vmem:[%s1 + $0xf68] sm:$0xff]
  %v565 = vld [vmem:[%s1 + $0xf70] sm:$0xff]
  %v566 = vld [vmem:[%s1 + $0xf78] sm:$0xff]
  %v567 = vld [vmem:[%s1 + $0xf80] sm:$0xff]
  %v568 = vld [vmem:[%s1 + $0xf88] sm:$0xff]
  %v569 = vld [vmem:[%s1 + $0xf90] sm:$0xff]
  %v570 = vld [vmem:[%s1 + $0xf98] sm:$0xff]
  %v571 = vld [vmem:[%s1 + $0xfa0] sm:$0xff]
  %v572 = vld [vmem:[%s1 + $0xfa8] sm:$0xff]
  %v573 = vld [vmem:[%s1 + $0xfb0] sm:$0xff]
  %v574 = vld [vmem:[%s1 + $0xfb8] sm:$0xff]
  %v575 = vld [vmem:[%s1 + $0xfc0] sm:$0xff]
  %v576 = vld [vmem:[%s1 + $0xfc8] sm:$0xff]
  %v577 = vld [vmem:[%s1 + $0xfd0] sm:$0xff]
  %v578 = vld [vmem:[%s1 + $0xfd8] sm:$0xff]
  %v579 = vld [vmem:[%s1 + $0xfe0] sm:$0xff]
  %v580 = vld [vmem:[%s1 + $0xfe8] sm:$0xff]
  %v581 = vld [vmem:[%s1 + $0xff0] sm:$0xff]
  %v582 = vld [vmem:[%s1 + $0xff8] sm:$0xff]
  %v583 = vld [vmem:[%s1 + $0x1000] sm:$0xff]
  %v584 = vld [vmem:[%s1 + $0x1008] sm:$0xff]
  %v585 = vld [vmem:[%s1 + $0x1010] sm:$0xff]
  %v586 = vld [vmem:[%s1 + $0x1018] sm:$0xff]
  %v587 = vld [vmem:[%s1 + $0x1020] sm:$0xff]
  %v588 = vld [vmem:[%s1 + $0x1028] sm:$0xff]
  %v589 = vld [vmem:[%s1 + $0x1030] sm:$0xff]
  %v590 = vld [vmem:[%s1 + $0x1038] sm:$0xff]
  %v591 = vld [vmem:[%s1 + $0x1040] sm:$0xff]
  %v592 = vld [vmem:[%s1 + $0x1048] sm:$0xff]
  %v593 = vld [vmem:[%s1 + $0x1050] sm:$0xff]
  %v594 = vld [vmem:[%s1 + $0x1058] sm:$0xff]
  %v595 = vld [vmem:[%s1 + $0x1060] sm:$0xff]
  %v596 = vld [vmem:[%s1 + $0x1068] sm:$0xff]
  %v597 = vld [vmem:[%s1 + $0x1070] sm:$0xff]
  %v598 = vld [vmem:[%s1 + $0x1078] sm:$0xff]
  %v599 = vld [vmem:[%s1 + $0x1080] sm:$0xff]
  %v600 = vld [vmem:[%s1 + $0x1088] sm:$0xff]
  %v601 = vld [vmem:[%s1 + $0x1090] sm:$0xff]
  %v602 = vld [vmem:[%s1 + $0x1098] sm:$0xff]
  %v603 = vld [vmem:[%s1 + $0x10a0] sm:$0xff]
  %v604 = vld [vmem:[%s1 + $0x10a8] sm:$0xff]
  %v605 = vld [vmem:[%s1 + $0x10b0] sm:$0xff]
  %v606 = vld [vmem:[%s1 + $0x10b8] sm:$0xff]
  %v607 = vld [vmem:[%s1 + $0x10c0] sm:$0xff]
  %v608 = vld [vmem:[%s1 + $0x10c8] sm:$0xff]
  %v609 = vld [vmem:[%s1 + $0x10d0] sm:$0xff]
  %v610 = vld [vmem:[%s1 + $0x10d8] sm:$0xff]
  %v611 = vld [vmem:[%s1 + $0x10e0] sm:$0xff]
  %v612 = vld [vmem:[%s1 + $0x10e8] sm:$0xff]
  %v613 = vld [vmem:[%s1 + $0x10f0] sm:$0xff]
  %v614 = vld [vmem:[%s1 + $0x10f8] sm:$0xff]
  %v615 = vld [vmem:[%s1 + $0x1100] sm:$0xff]
  %v616 = vld [vmem:[%s1 + $0x1108] sm:$0xff]
  %v617 = vld [vmem:[%s1 + $0x1110] sm:$0xff]
  %v618 = vld [vmem:[%s1 + $0x1118] sm:$0xff]
  %v619 = vld [vmem:[%s1 + $0x1120] sm:$0xff]
  %v620 = vld [vmem:[%s1 + $0x1128] sm:$0xff]
  %v621 = vld [vmem:[%s1 + $0x1130] sm:$0xff]
  %v622 = vld [vmem:[%s1 + $0x1138] sm:$0xff]
  %v623 = vld [vmem:[%s1 + $0x1140] sm:$0xff]
  %v624 = vld [vmem:[%s1 + $0x1148] sm:$0xff]
  %v625 = vld [vmem:[%s1 + $0x1150] sm:$0xff]
  %v626 = vld [vmem:[%s1 + $0x1158] sm:$0xff]
  %v627 = vld [vmem:[%s1 + $0x1160] sm:$0xff]
  %v628 = vld [vmem:[%s1 + $0x1168] sm:$0xff]
  %v629 = vld [vmem:[%s1 + $0x1170] sm:$0xff]
  %v630 = vld [vmem:[%s1 + $0x1178] sm:$0xff]
  %v631 = vld [vmem:[%s1 + $0x1180] sm:$0xff]
  %v632 = vld [vmem:[%s1 + $0x1188] sm:$0xff]
  %v633 = vld [vmem:[%s1 + $0x1190] sm:$0xff]
  %v634 = vld [vmem:[%s1 + $0x1198] sm:$0xff]
  %v635 = vld [vmem:[%s1 + $0x11a0] sm:$0xff]
  %v636 = vld [vmem:[%s1 + $0x11a8] sm:$0xff]
  %v637 = vld [vmem:[%s1 + $0x11b0] sm:$0xff]
  %v638 = vld [vmem:[%s1 + $0x11b8] sm:$0xff]
  %v639 = vld [vmem:[%s1 + $0x11c0] sm:$0xff]
  %v640 = vld [vmem:[%s1 + $0x11c8] sm:$0xff]
  %v641 = vld [vmem:[%s1 + $0x11d0] sm:$0xff]
  %v642 = vld [vmem:[%s1 + $0x11d8] sm:$0xff]
  %v643 = vld [vmem:[%s1 + $0x11e0] sm:$0xff]
  %v644 = vld [vmem:[%s1 + $0x11e8] sm:$0xff]
  %v645 = vld [vmem:[%s1 + $0x11f0] sm:$0xff]
  %v646 = vld [vmem:[%s1 + $0x11f8] sm:$0xff]
  %v647 = vld [vmem:[%s1 + $0x1200] sm:$0xff]
  %v648 = vld [vmem:[%s1 + $0x1208] sm:$0xff]
  %v649 = vld [vmem:[%s1 + $0x1210] sm:$0xff]
  %v650 = vld [vmem:[%s1 + $0x1218] sm:$0xff]
  %v651 = vld [vmem:[%s1 + $0x1220] sm:$0xff]
  %v652 = vld [vmem:[%s1 + $0x1228] sm:$0xff]
  %v653 = vld [vmem:[%s1 + $0x1230] sm:$0xff]
  %v654 = vld [vmem:[%s1 + $0x1238] sm:$0xff]
  %v655 = vld [vmem:[%s1 + $0x1240] sm:$0xff]
  %v656 = vld [vmem:[%s1 + $0x1248] sm:$0xff]
  %v657 = vld [vmem:[%s1 + $0x1250] sm:$0xff]
  %v658 = vld [vmem:[%s1 + $0x1258] sm:$0xff]
  %v659 = vld [vmem:[%s1 + $0x1260] sm:$0xff]
  %v660 = vld [vmem:[%s1 + $0x1268] sm:$0xff]
  %v661 = vld [vmem:[%s1 + $0x1270] sm:$0xff]
  %v662 = vld [vmem:[%s1 + $0x1278] sm:$0xff]
  %v663 = vld [vmem:[%s1 + $0x1280] sm:$0xff]
  %v664 = vld [vmem:[%s1 + $0x1288] sm:$0xff]
  %v665 = vld [vmem:[%s1 + $0x1290] sm:$0xff]
  %v666 = vld [vmem:[%s1 + $0x1298] sm:$0xff]
  %v667 = vld [vmem:[%s1 + $0x12a0] sm:$0xff]
  %v668 = vld [vmem:[%s1 + $0x12a8] sm:$0xff]
  %v669 = vld [vmem:[%s1 + $0x12b0] sm:$0xff]
  %v670 = vld [vmem:[%s1 + $0x12b8] sm:$0xff]
  %v671 = vld [vmem:[%s1 + $0x12c0] sm:$0xff]
  %v672 = vld [vmem:[%s1 + $0x12c8] sm:$0xff]
  %v673 = vld [vmem:[%s1 + $0x12d0] sm:$0xff]
  %v674 = vld [vmem:[%s1 + $0x12d8] sm:$0xff]
  %v675 = vld [vmem:[%s1 + $0x12e0] sm:$0xff]
  %v676 = vld [vmem:[%s1 + $0x12e8] sm:$0xff]
  %v677 = vld [vmem:[%s1 + $0x12f0] sm:$0xff]
  %v678 = vld [vmem:[%s1 + $0x12f8] sm:$0xff]
  %v679 = vld [vmem:[%s1 + $0x1300] sm:$0xff]
  %v680 = vld [vmem:[%s1 + $0x1308] sm:$0xff]
  %v681 = vld [vmem:[%s1 + $0x1310] sm:$0xff]
  %v682 = vld [vmem:[%s1 + $0x1318] sm:$0xff]
  %v683 = vld [vmem:[%s1 + $0x1320] sm:$0xff]
  %v684 = vld [vmem:[%s1 + $0x1328] sm:$0xff]
  %v685 = vld [vmem:[%s1 + $0x1330] sm:$0xff]
  %v686 = vld [vmem:[%s1 + $0x1338] sm:$0xff]
  %v687 = vld [vmem:[%s1 + $0x1340] sm:$0xff]
  %v688 = vld [vmem:[%s1 + $0x1348] sm:$0xff]
  %v689 = vld [vmem:[%s1 + $0x1350] sm:$0xff]
  %v690 = vld [vmem:[%s1 + $0x1358] sm:$0xff]
  %v691 = vld [vmem:[%s1 + $0x1360] sm:$0xff]
  %v692 = vld [vmem:[%s1 + $0x1368] sm:$0xff]
  %v693 = vld [vmem:[%s1 + $0x1370] sm:$0xff]
  %v694 = vld [vmem:[%s1 + $0x1378] sm:$0xff]
  %v695 = vld [vmem:[%s1 + $0x1380] sm:$0xff]
  %v696 = vld [vmem:[%s1 + $0x1388] sm:$0xff]
  %v697 = vld [vmem:[%s1 + $0x1390] sm:$0xff]
  %v698 = vld [vmem:[%s1 + $0x1398] sm:$0xff]
  %v699 = vld [vmem:[%s1 + $0x13a0] sm:$0xff]
  %v700 = vld [vmem:[%s1 + $0x13a8] sm:$0xff]
  %v701 = vld [vmem:[%s1 + $0x13b0] sm:$0xff]
  %v702 = vld [vmem:[%s1 + $0x13b8] sm:$0xff]
  %v703 = vld [vmem:[%s1 + $0x13c0] sm:$0xff]
  %v704 = vld [vmem:[%s1 + $0x13c8] sm:$0xff]
  %v705 = vld [vmem:[%s1 + $0x13d0] sm:$0xff]
  %v706 = vld [vmem:[%s1 + $0x13d8] sm:$0xff]
  %v707 = vld [vmem:[%s1 + $0x13e0] sm:$0xff]
  %v708 = vld [vmem:[%s1 + $0x13e8] sm:$0xff]
  %v709 = vld [vmem:[%s1 + $0x13f0] sm:$0xff]
  %v710 = vld [vmem:[%s1 + $0x13f8] sm:$0xff]
  %v711 = vld [vmem:[%s1 + $0x1400] sm:$0xff]
  %v712 = vld [vmem:[%s1 + $0x1408] sm:$0xff]
  %v713 = vld [vmem:[%s1 + $0x1410] sm:$0xff]
  %v714 = vld [vmem:[%s1 + $0x1418] sm:$0xff]
  %v715 = vld [vmem:[%s1 + $0x1420] sm:$0xff]
  %v716 = vld [vmem:[%s1 + $0x1428] sm:$0xff]
  %v717 = vld [vmem:[%s1 + $0x1430] sm:$0xff]
  %v718 = vld [vmem:[%s1 + $0x1438] sm:$0xff]
  %v719 = vld [vmem:[%s1 + $0x1440] sm:$0xff]
  %v720 = vld [vmem:[%s1 + $0x1448] sm:$0xff]
  %v721 = vld [vmem:[%s1 + $0x1450] sm:$0xff]
  %v722 = vld [vmem:[%s1 + $0x1458] sm:$0xff]
  %v723 = vld [vmem:[%s1 + $0x1460] sm:$0xff]
  %v724 = vld [vmem:[%s1 + $0x1468] sm:$0xff]
  %v725 = vld [vmem:[%s1 + $0x1470] sm:$0xff]
  %v726 = vld [vmem:[%s1 + $0x1478] sm:$0xff]
  %v727 = vld [vmem:[%s1 + $0x1480] sm:$0xff]
  %v728 = vld [vmem:[%s1 + $0x1488] sm:$0xff]
  %v729 = vld [vmem:[%s1 + $0x1490] sm:$0xff]
  %v730 = vld [vmem:[%s1 + $0x1498] sm:$0xff]
  %v731 = vld [vmem:[%s1 + $0x14a0] sm:$0xff]
  %v732 = vld [vmem:[%s1 + $0x14a8] sm:$0xff]
  %v733 = vld [vmem:[%s1 + $0x14b0] sm:$0xff]
  %v734 = vld [vmem:[%s1 + $0x14b8] sm:$0xff]
  %v735 = vld [vmem:[%s1 + $0x14c0] sm:$0xff]
  %v736 = vld [vmem:[%s1 + $0x14c8] sm:$0xff]
  %v737 = vld [vmem:[%s1 + $0x14d0] sm:$0xff]
  %v738 = vld [vmem:[%s1 + $0x14d8] sm:$0xff]
  %v739 = vld [vmem:[%s1 + $0x14e0] sm:$0xff]
  %v740 = vld [vmem:[%s1 + $0x14e8] sm:$0xff]
  %v741 = vld [vmem:[%s1 + $0x14f0] sm:$0xff]
  %v742 = vld [vmem:[%s1 + $0x14f8] sm:$0xff]
  %v743 = vld [vmem:[%s1 + $0x1500] sm:$0xff]
  %v744 = vld [vmem:[%s1 + $0x1508] sm:$0xff]
  %v745 = vld [vmem:[%s1 + $0x1510] sm:$0xff]
  %v746 = vld [vmem:[%s1 + $0x1518] sm:$0xff]
  %v747 = vld [vmem:[%s1 + $0x1520] sm:$0xff]
  %v748 = vld [vmem:[%s1 + $0x1528] sm:$0xff]
  %v749 = vld [vmem:[%s1 + $0x1530] sm:$0xff]
  %v750 = vld [vmem:[%s1 + $0x1538] sm:$0xff]
  %v751 = vld [vmem:[%s1 + $0x1540] sm:$0xff]
  %v752 = vld [vmem:[%s1 + $0x1548] sm:$0xff]
  %v753 = vld [vmem:[%s1 + $0x1550] sm:$0xff]
  %v754 = vld [vmem:[%s1 + $0x1558] sm:$0xff]
  %v755 = vld [vmem:[%s1 + $0x1560] sm:$0xff]
  %v756 = vld [vmem:[%s1 + $0x1568] sm:$0xff]
  %v757 = vld [vmem:[%s1 + $0x1570] sm:$0xff]
  %v758 = vld [vmem:[%s1 + $0x1578] sm:$0xff]
  %v759 = vld [vmem:[%s1 + $0x1580] sm:$0xff]
  %v760 = vld [vmem:[%s1 + $0x1588] sm:$0xff]
  %v761 = vld [vmem:[%s1 + $0x1590] sm:$0xff]
  %v762 = vld [vmem:[%s1 + $0x1598] sm:$0xff]
  %v763 = vld [vmem:[%s1 + $0x15a0] sm:$0xff]
  %v764 = vld [vmem:[%s1 + $0x15a8] sm:$0xff]
  %v765 = vld [vmem:[%s1 + $0x15b0] sm:$0xff]
  %v766 = vld [vmem:[%s1 + $0x15b8] sm:$0xff]
  %v767 = vld [vmem:[%s1 + $0x15c0] sm:$0xff]
  %v768 = vld [vmem:[%s1 + $0x15c8] sm:$0xff]
  %v769 = vld [vmem:[%s1 + $0x15d0] sm:$0xff]
  %v770 = vld [vmem:[%s1 + $0x15d8] sm:$0xff]
  %v771 = vld [vmem:[%s1 + $0x15e0] sm:$0xff]
  %v772 = vld [vmem:[%s1 + $0x15e8] sm:$0xff]
  %v773 = vld [vmem:[%s1 + $0x15f0] sm:$0xff]
  %v774 = vld [vmem:[%s1 + $0x15f8] sm:$0xff]
  %v775 = vld [vmem:[%s1 + $0x1600] sm:$0xff]
  %v776 = vld [vmem:[%s1 + $0x1608] sm:$0xff]
  %v777 = vld [vmem:[%s1 + $0x1610] sm:$0xff]
  %v778 = vld [vmem:[%s1 + $0x1618] sm:$0xff]
  %v779 = vld [vmem:[%s1 + $0x1620] sm:$0xff]
  %v780 = vld [vmem:[%s1 + $0x1628] sm:$0xff]
  %v781 = vld [vmem:[%s1 + $0x1630] sm:$0xff]
  %v782 = vld [vmem:[%s1 + $0x1638] sm:$0xff]
  %v783 = vld [vmem:[%s1 + $0x1640] sm:$0xff]
  %v784 = vld [vmem:[%s1 + $0x1648] sm:$0xff]
  %v785 = vld [vmem:[%s1 + $0x1650] sm:$0xff]
  %v786 = vld [vmem:[%s1 + $0x1658] sm:$0xff]
  %v787 = vld [vmem:[%s1 + $0x1660] sm:$0xff]
  %v788 = vld [vmem:[%s1 + $0x1668] sm:$0xff]
  %v789 = vld [vmem:[%s1 + $0x1670] sm:$0xff]
  %v790 = vld [vmem:[%s1 + $0x1678] sm:$0xff]
  %v791 = vld [vmem:[%s1 + $0x1680] sm:$0xff]
  %v792 = vld [vmem:[%s1 + $0x1688] sm:$0xff]
  %v793 = vld [vmem:[%s1 + $0x1690] sm:$0xff]
  %v794 = vld [vmem:[%s1 + $0x1698] sm:$0xff]
  %v795 = vld [vmem:[%s1 + $0x16a0] sm:$0xff]
  %v796 = vld [vmem:[%s1 + $0x16a8] sm:$0xff]
  %v797 = vld [vmem:[%s1 + $0x16b0] sm:$0xff]
  %v798 = vld [vmem:[%s1 + $0x16b8] sm:$0xff]
  %v799 = vld [vmem:[%s1 + $0x16c0] sm:$0xff]
  %v800 = vld [vmem:[%s1 + $0x16c8] sm:$0xff]
  %v801 = vld [vmem:[%s1 + $0x16d0] sm:$0xff]
  %v802 = vld [vmem:[%s1 + $0x16d8] sm:$0xff]
  %v803 = vld [vmem:[%s1 + $0x16e0] sm:$0xff]
  %v804 = vld [vmem:[%s1 + $0x16e8] sm:$0xff]
  %v805 = vld [vmem:[%s1 + $0x16f0] sm:$0xff]
  %v806 = vld [vmem:[%s1 + $0x16f8] sm:$0xff]
  %v807 = vld [vmem:[%s1 + $0x1700] sm:$0xff]
  %v808 = vld [vmem:[%s1 + $0x1708] sm:$0xff]
  %v809 = vld [vmem:[%s1 + $0x1710] sm:$0xff]
  %v810 = vld [vmem:[%s1 + $0x1718] sm:$0xff]
  %v811 = vld [vmem:[%s1 + $0x1720] sm:$0xff]
  %v812 = vld [vmem:[%s1 + $0x1728] sm:$0xff]
  %v813 = vld [vmem:[%s1 + $0x1730] sm:$0xff]
  %v814 = vld [vmem:[%s1 + $0x1738] sm:$0xff]
  %v815 = vld [vmem:[%s1 + $0x1740] sm:$0xff]
  %v816 = vld [vmem:[%s1 + $0x1748] sm:$0xff]
  %v817 = vld [vmem:[%s1 + $0x1750] sm:$0xff]
  %v818 = vld [vmem:[%s1 + $0x1758] sm:$0xff]
  %v819 = vld [vmem:[%s1 + $0x1760] sm:$0xff]
  %v820 = vld [vmem:[%s1 + $0x1768] sm:$0xff]
  %v821 = vld [vmem:[%s1 + $0x1770] sm:$0xff]
  %v822 = vld [vmem:[%s1 + $0x1778] sm:$0xff]
  %v823 = vld [vmem:[%s1 + $0x1780] sm:$0xff]
  %v824 = vld [vmem:[%s1 + $0x1788] sm:$0xff]
  %v825 = vld [vmem:[%s1 + $0x1790] sm:$0xff]
  %v826 = vld [vmem:[%s1 + $0x1798] sm:$0xff]
  %v827 = vld [vmem:[%s1 + $0x17a0] sm:$0xff]
  %v828 = vld [vmem:[%s1 + $0x17a8] sm:$0xff]
  %v829 = vld [vmem:[%s1 + $0x17b0] sm:$0xff]
  %v830 = vld [vmem:[%s1 + $0x17b8] sm:$0xff]
  %v831 = vld [vmem:[%s1 + $0x17c0] sm:$0xff]
  %v832 = vld [vmem:[%s1 + $0x17c8] sm:$0xff]
  %v833 = vld [vmem:[%s1 + $0x17d0] sm:$0xff]
  %v834 = vld [vmem:[%s1 + $0x17d8] sm:$0xff]
  %v835 = vld [vmem:[%s1 + $0x17e0] sm:$0xff]
  %v836 = vld [vmem:[%s1 + $0x17e8] sm:$0xff]
  %v837 = vld [vmem:[%s1 + $0x17f0] sm:$0xff]
  %v838 = vld [vmem:[%s1 + $0x17f8] sm:$0xff]
  %v839 = vld [vmem:[%s1 + $0x1800] sm:$0xff]
  %v840 = vld [vmem:[%s1 + $0x1808] sm:$0xff]
  %v841 = vld [vmem:[%s1 + $0x1810] sm:$0xff]
  %v842 = vld [vmem:[%s1 + $0x1818] sm:$0xff]
  %v843 = vld [vmem:[%s1 + $0x1820] sm:$0xff]
  %v844 = vld [vmem:[%s1 + $0x1828] sm:$0xff]
  %v845 = vld [vmem:[%s1 + $0x1830] sm:$0xff]
  %v846 = vld [vmem:[%s1 + $0x1838] sm:$0xff]
  %v847 = vld [vmem:[%s1 + $0x1840] sm:$0xff]
  %v848 = vld [vmem:[%s1 + $0x1848] sm:$0xff]
  %v849 = vld [vmem:[%s1 + $0x1850] sm:$0xff]
  %v850 = vld [vmem:[%s1 + $0x1858] sm:$0xff]
  %v851 = vld [vmem:[%s1 + $0x1860] sm:$0xff]
  %v852 = vld [vmem:[%s1 + $0x1868] sm:$0xff]
  %v853 = vld [vmem:[%s1 + $0x1870] sm:$0xff]
  %v854 = vld [vmem:[%s1 + $0x1878] sm:$0xff]
  %v855 = vld [vmem:[%s1 + $0x1880] sm:$0xff]
  %v856 = vld [vmem:[%s1 + $0x1888] sm:$0xff]
  %v857 = vld [vmem:[%s1 + $0x1890] sm:$0xff]
  %v858 = vld [vmem:[%s1 + $0x1898] sm:$0xff]
  %v859 = vld [vmem:[%s1 + $0x18a0] sm:$0xff]
  %v860 = vld [vmem:[%s1 + $0x18a8] sm:$0xff]
  %v861 = vld [vmem:[%s1 + $0x18b0] sm:$0xff]
  %v862 = vld [vmem:[%s1 + $0x18b8] sm:$0xff]
  %v863 = vld [vmem:[%s1 + $0x18c0] sm:$0xff]
  %v864 = vld [vmem:[%s1 + $0x18c8] sm:$0xff]
  %v865 = vld [vmem:[%s1 + $0x18d0] sm:$0xff]
  %v866 = vld [vmem:[%s1 + $0x18d8] sm:$0xff]
  %v867 = vld [vmem:[%s1 + $0x18e0] sm:$0xff]
  %v868 = vld [vmem:[%s1 + $0x18e8] sm:$0xff]
  %v869 = vld [vmem:[%s1 + $0x18f0] sm:$0xff]
  %v870 = vld [vmem:[%s1 + $0x18f8] sm:$0xff]
  %v871 = vld [vmem:[%s1 + $0x1900] sm:$0xff]
  %v872 = vld [vmem:[%s1 + $0x1908] sm:$0xff]
  %v873 = vld [vmem:[%s1 + $0x1910] sm:$0xff]
  %v874 = vld [vmem:[%s1 + $0x1918] sm:$0xff]
  %v875 = vld [vmem:[%s1 + $0x1920] sm:$0xff]
  %v876 = vld [vmem:[%s1 + $0x1928] sm:$0xff]
  %v877 = vld [vmem:[%s1 + $0x1930] sm:$0xff]
  %v878 = vld [vmem:[%s1 + $0x1938] sm:$0xff]
  %v879 = vld [vmem:[%s1 + $0x1940] sm:$0xff]
  %v880 = vld [vmem:[%s1 + $0x1948] sm:$0xff]
  %v881 = vld [vmem:[%s1 + $0x1950] sm:$0xff]
  %v882 = vld [vmem:[%s1 + $0x1958] sm:$0xff]
  %v883 = vld [vmem:[%s1 + $0x1960] sm:$0xff]
  %v884 = vld [vmem:[%s1 + $0x1968] sm:$0xff]
  %v885 = vld [vmem:[%s1 + $0x1970] sm:$0xff]
  %v886 = vld [vmem:[%s1 + $0x1978] sm:$0xff]
  %v887 = vld [vmem:[%s1 + $0x1980] sm:$0xff]
  %v888 = vld [vmem:[%s1 + $0x1988] sm:$0xff]
  %v889 = vld [vmem:[%s1 + $0x1990] sm:$0xff]
  %v890 = vld [vmem:[%s1 + $0x1998] sm:$0xff]
  %v891 = vld [vmem:[%s1 + $0x19a0] sm:$0xff]
  %v892 = vld [vmem:[%s1 + $0x19a8] sm:$0xff]
  %v893 = vld [vmem:[%s1 + $0x19b0] sm:$0xff]
  %v894 = vld [vmem:[%s1 + $0x19b8] sm:$0xff]
  %v895 = vld [vmem:[%s1 + $0x19c0] sm:$0xff]
  %v896 = vld [vmem:[%s1 + $0x19c8] sm:$0xff]
  %v897 = vld [vmem:[%s1 + $0x19d0] sm:$0xff]
  %v898 = vld [vmem:[%s1 + $0x19d8] sm:$0xff]
  %v899 = vld [vmem:[%s1 + $0x19e0] sm:$0xff]
  %v900 = vld [vmem:[%s1 + $0x19e8] sm:$0xff]
  %v901 = vld [vmem:[%s1 + $0x19f0] sm:$0xff]
  %v902 = vld [vmem:[%s1 + $0x19f8] sm:$0xff]
  %v903 = vld [vmem:[%s1 + $0x1a00] sm:$0xff]
  %v904 = vld [vmem:[%s1 + $0x1a08] sm:$0xff]
  %v905 = vld [vmem:[%s1 + $0x1a10] sm:$0xff]
  %v906 = vld [vmem:[%s1 + $0x1a18] sm:$0xff]
  %v907 = vld [vmem:[%s1 + $0x1a20] sm:$0xff]
  %v908 = vld [vmem:[%s1 + $0x1a28] sm:$0xff]
  %v909 = vld [vmem:[%s1 + $0x1a30] sm:$0xff]
  %v910 = vld [vmem:[%s1 + $0x1a38] sm:$0xff]
  %v911 = vld [vmem:[%s1 + $0x1a40] sm:$0xff]
  %v912 = vld [vmem:[%s1 + $0x1a48] sm:$0xff]
  %v913 = vld [vmem:[%s1 + $0x1a50] sm:$0xff]
  %v914 = vld [vmem:[%s1 + $0x1a58] sm:$0xff]
  %v915 = vld [vmem:[%s1 + $0x1a60] sm:$0xff]
  %v916 = vld [vmem:[%s1 + $0x1a68] sm:$0xff]
  %v917 = vld [vmem:[%s1 + $0x1a70] sm:$0xff]
  %v918 = vld [vmem:[%s1 + $0x1a78] sm:$0xff]
  %v919 = vld [vmem:[%s1 + $0x1a80] sm:$0xff]
  %v920 = vld [vmem:[%s1 + $0x1a88] sm:$0xff]
  %v921 = vld [vmem:[%s1 + $0x1a90] sm:$0xff]
  %v922 = vld [vmem:[%s1 + $0x1a98] sm:$0xff]
  %v923 = vld [vmem:[%s1 + $0x1aa0] sm:$0xff]
  %v924 = vld [vmem:[%s1 + $0x1aa8] sm:$0xff]
  %v925 = vld [vmem:[%s1 + $0x1ab0] sm:$0xff]
  %v926 = vld [vmem:[%s1 + $0x1ab8] sm:$0xff]
  %v927 = vld [vmem:[%s1 + $0x1ac0] sm:$0xff]
  %v928 = vld [vmem:[%s1 + $0x1ac8] sm:$0xff]
  %v929 = vld [vmem:[%s1 + $0x1ad0] sm:$0xff]
  %v930 = vld [vmem:[%s1 + $0x1ad8] sm:$0xff]
  %v931 = vld [vmem:[%s1 + $0x1ae0] sm:$0xff]
  %v932 = vld [vmem:[%s1 + $0x1ae8] sm:$0xff]
  %v933 = vld [vmem:[%s1 + $0x1af0] sm:$0xff]
  %v934 = vld [vmem:[%s1 + $0x1af8] sm:$0xff]
  %v935 = vld [vmem:[%s1 + $0x1b00] sm:$0xff]
  %v936 = vld [vmem:[%s1 + $0x1b08] sm:$0xff]
  %v937 = vld [vmem:[%s1 + $0x1b10] sm:$0xff]
  %v938 = vld [vmem:[%s1 + $0x1b18] sm:$0xff]
  %v939 = vld [vmem:[%s1 + $0x1b20] sm:$0xff]
  %v940 = vld [vmem:[%s1 + $0x1b28] sm:$0xff]
  %v941 = vld [vmem:[%s1 + $0x1b30] sm:$0xff]
  %v942 = vld [vmem:[%s1 + $0x1b38] sm:$0xff]
  %v943 = vld [vmem:[%s1 + $0x1b40] sm:$0xff]
  %v944 = vld [vmem:[%s1 + $0x1b48] sm:$0xff]
  %v945 = vld [vmem:[%s1 + $0x1b50] sm:$0xff]
  %v946 = vld [vmem:[%s1 + $0x1b58] sm:$0xff]
  %v947 = vld [vmem:[%s1 + $0x1b60] sm:$0xff]
  %v948 = vld [vmem:[%s1 + $0x1b68] sm:$0xff]
  %v949 = vld [vmem:[%s1 + $0x1b70] sm:$0xff]
  %v950 = vld [vmem:[%s1 + $0x1b78] sm:$0xff]
  %v951 = vld [vmem:[%s1 + $0x1b80] sm:$0xff]
  %v952 = vld [vmem:[%s1 + $0x1b88] sm:$0xff]
  %v953 = vld [vmem:[%s1 + $0x1b90] sm:$0xff]
  %v954 = vld [vmem:[%s1 + $0x1b98] sm:$0xff]
  %v955 = vld [vmem:[%s1 + $0x1ba0] sm:$0xff]
  %v956 = vld [vmem:[%s1 + $0x1ba8] sm:$0xff]
  %v957 = vld [vmem:[%s1 + $0x1bb0] sm:$0xff]
  %v958 = vld [vmem:[%s1 + $0x1bb8] sm:$0xff]
  %v959 = vld [vmem:[%s1 + $0x1bc0] sm:$0xff]
  %v960 = vld [vmem:[%s1 + $0x1bc8] sm:$0xff]
  %v961 = vld [vmem:[%s1 + $0x1bd0] sm:$0xff]
  %v962 = vld [vmem:[%s1 + $0x1bd8] sm:$0xff]
  %v963 = vld [vmem:[%s1 + $0x1be0] sm:$0xff]
  %v964 = vld [vmem:[%s1 + $0x1be8] sm:$0xff]
  %v965 = vld [vmem:[%s1 + $0x1bf0] sm:$0xff]
  %v966 = vld [vmem:[%s1 + $0x1bf8] sm:$0xff]
  %v967 = vld [vmem:[%s1 + $0x1c00] sm:$0xff]
  %v968 = vld [vmem:[%s1 + $0x1c08] sm:$0xff]
  %v969 = vld [vmem:[%s1 + $0x1c10] sm:$0xff]
  %v970 = vld [vmem:[%s1 + $0x1c18] sm:$0xff]
  %v971 = vld [vmem:[%s1 + $0x1c20] sm:$0xff]
  %v972 = vld [vmem:[%s1 + $0x1c28] sm:$0xff]
  %v973 = vld [vmem:[%s1 + $0x1c30] sm:$0xff]
  %v974 = vld [vmem:[%s1 + $0x1c38] sm:$0xff]
  %v975 = vld [vmem:[%s1 + $0x1c40] sm:$0xff]
  %v976 = vld [vmem:[%s1 + $0x1c48] sm:$0xff]
  %v977 = vld [vmem:[%s1 + $0x1c50] sm:$0xff]
  %v978 = vld [vmem:[%s1 + $0x1c58] sm:$0xff]
  %v979 = vld [vmem:[%s1 + $0x1c60] sm:$0xff]
  %v980 = vld [vmem:[%s1 + $0x1c68] sm:$0xff]
  %v981 = vld [vmem:[%s1 + $0x1c70] sm:$0xff]
  %v982 = vld [vmem:[%s1 + $0x1c78] sm:$0xff]
  %v983 = vld [vmem:[%s1 + $0x1c80] sm:$0xff]
  %v984 = vld [vmem:[%s1 + $0x1c88] sm:$0xff]
  %v985 = vld [vmem:[%s1 + $0x1c90] sm:$0xff]
  %v986 = vld [vmem:[%s1 + $0x1c98] sm:$0xff]
  %v987 = vld [vmem:[%s1 + $0x1ca0] sm:$0xff]
  %v988 = vld [vmem:[%s1 + $0x1ca8] sm:$0xff]
  %v989 = vld [vmem:[%s1 + $0x1cb0] sm:$0xff]
  %v990 = vld [vmem:[%s1 + $0x1cb8] sm:$0xff]
  %v991 = vld [vmem:[%s1 + $0x1cc0] sm:$0xff]
  %v992 = vld [vmem:[%s1 + $0x1cc8] sm:$0xff]
  %v993 = vld [vmem:[%s1 + $0x1cd0] sm:$0xff]
  %v994 = vld [vmem:[%s1 + $0x1cd8] sm:$0xff]
  %v995 = vld [vmem:[%s1 + $0x1ce0] sm:$0xff]
  %v996 = vld [vmem:[%s1 + $0x1ce8] sm:$0xff]
  %v997 = vld [vmem:[%s1 + $0x1cf0] sm:$0xff]
  %v998 = vld [vmem:[%s1 + $0x1cf8] sm:$0xff]
  %v999 = vld [vmem:[%s1 + $0x1d00] sm:$0xff]
  %v1000 = vld [vmem:[%s1 + $0x1d08] sm:$0xff]
  %v1001 = vld [vmem:[%s1 + $0x1d10] sm:$0xff]
  %v1002 = vld [vmem:[%s1 + $0x1d18] sm:$0xff]
  %v1003 = vld [vmem:[%s1 + $0x1d20] sm:$0xff]
  %v1004 = vld [vmem:[%s1 + $0x1d28] sm:$0xff]
  %v1005 = vld [vmem:[%s1 + $0x1d30] sm:$0xff]
  %v1006 = vld [vmem:[%s1 + $0x1d38] sm:$0xff]
  %v1007 = vld [vmem:[%s1 + $0x1d40] sm:$0xff]
  %v1008 = vld [vmem:[%s1 + $0x1d48] sm:$0xff]
  %v1009 = vld [vmem:[%s1 + $0x1d50] sm:$0xff]
  %v1010 = vld [vmem:[%s1 + $0x1d58] sm:$0xff]
  %v1011 = vld [vmem:[%s1 + $0x1d60] sm:$0xff]
  %v1012 = vld [vmem:[%s1 + $0x1d68] sm:$0xff]
  %v1013 = vld [vmem:[%s1 + $0x1d70] sm:$0xff]
  %v1014 = vld [vmem:[%s1 + $0x1d78] sm:$0xff]
  %v1015 = vld [vmem:[%s1 + $0x1d80] sm:$0xff]
  %v1016 = vld [vmem:[%s1 + $0x1d88] sm:$0xff]
  %v1017 = vld [vmem:[%s1 + $0x1d90] sm:$0xff]
  %v1018 = vld [vmem:[%s1 + $0x1d98] sm:$0xff]
  %v1019 = vld [vmem:[%s1 + $0x1da0] sm:$0xff]
  %v1020 = vld [vmem:[%s1 + $0x1da8] sm:$0xff]
  %v1021 = vld [vmem:[%s1 + $0x1db0] sm:$0xff]
  %v1022 = vld [vmem:[%s1 + $0x1db8] sm:$0xff]
  %v1023 = vld [vmem:[%s1 + $0x1dc0] sm:$0xff]
  %v1024 = vld [vmem:[%s1 + $0x1dc8] sm:$0xff]
  %v1025 = vld [vmem:[%s1 + $0x1dd0] sm:$0xff]
  %v1026 = vld [vmem:[%s1 + $0x1dd8] sm:$0xff]
  %v1027 = vld [vmem:[%s1 + $0x1de0] sm:$0xff]
  %v1028 = vld [vmem:[%s1 + $0x1de8] sm:$0xff]
  %v1029 = vld [vmem:[%s1 + $0x1df0] sm:$0xff]
  %v1030 = vld [vmem:[%s1 + $0x1df8] sm:$0xff]
  %v1031 = vld [vmem:[%s1 + $0x1e00] sm:$0xff]
  %v1032 = vld [vmem:[%s1 + $0x1e08] sm:$0xff]
  %v1033 = vld [vmem:[%s1 + $0x1e10] sm:$0xff]
  %v1034 = vld [vmem:[%s1 + $0x1e18] sm:$0xff]
  %v1035 = vld [vmem:[%s1 + $0x1e20] sm:$0xff]
  %v1036 = vld [vmem:[%s1 + $0x1e28] sm:$0xff]
  %v1037 = vld [vmem:[%s1 + $0x1e30] sm:$0xff]
  %v1038 = vld [vmem:[%s1 + $0x1e38] sm:$0xff]
  %v1039 = vld [vmem:[%s1 + $0x1e40] sm:$0xff]
  %v1040 = vld [vmem:[%s1 + $0x1e48] sm:$0xff]
  %v1041 = vld [vmem:[%s1 + $0x1e50] sm:$0xff]
  %v1042 = vld [vmem:[%s1 + $0x1e58] sm:$0xff]
  %v1043 = vld [vmem:[%s1 + $0x1e60] sm:$0xff]
  %v1044 = vld [vmem:[%s1 + $0x1e68] sm:$0xff]
  %v1045 = vld [vmem:[%s1 + $0x1e70] sm:$0xff]
  %v1046 = vld [vmem:[%s1 + $0x1e78] sm:$0xff]
  %v1047 = vld [vmem:[%s1 + $0x1e80] sm:$0xff]
  %v1048 = vld [vmem:[%s1 + $0x1e88] sm:$0xff]
  %v1049 = vld [vmem:[%s1 + $0x1e90] sm:$0xff]
  %v1050 = vld [vmem:[%s1 + $0x1e98] sm:$0xff]
  %v1051 = vld [vmem:[%s1 + $0x1ea0] sm:$0xff]
  %v1052 = vld [vmem:[%s1 + $0x1ea8] sm:$0xff]
  %v1053 = vld [vmem:[%s1 + $0x1eb0] sm:$0xff]
  %v1054 = vld [vmem:[%s1 + $0x1eb8] sm:$0xff]
  %v1055 = vld [vmem:[%s1 + $0x1ec0] sm:$0xff]
  %v1056 = vld [vmem:[%s1 + $0x1ec8] sm:$0xff]
  %v1057 = vld [vmem:[%s1 + $0x1ed0] sm:$0xff]
  %v1058 = vld [vmem:[%s1 + $0x1ed8] sm:$0xff]
  %v1059 = vld [vmem:[%s1 + $0x1ee0] sm:$0xff]
  %v1060 = vld [vmem:[%s1 + $0x1ee8] sm:$0xff]
  %v1061 = vld [vmem:[%s1 + $0x1ef0] sm:$0xff]
  %v1062 = vld [vmem:[%s1 + $0x1ef8] sm:$0xff]
  %v1063 = vld [vmem:[%s1 + $0x1f00] sm:$0xff]
  %v1064 = vld [vmem:[%s1 + $0x1f08] sm:$0xff]
  %v1065 = vld [vmem:[%s1 + $0x1f10] sm:$0xff]
  %v1066 = vld [vmem:[%s1 + $0x1f18] sm:$0xff]
  %v1067 = vld [vmem:[%s1 + $0x1f20] sm:$0xff]
  %v1068 = vld [vmem:[%s1 + $0x1f28] sm:$0xff]
  %v1069 = vld [vmem:[%s1 + $0x1f30] sm:$0xff]
  %v1070 = vld [vmem:[%s1 + $0x1f38] sm:$0xff]
  %v1071 = vld [vmem:[%s2] sm:$0x3]
  %v1073 = vlaneseq
  %v1074 = vshrl.u32 %v1073, 7
  %v1075 = vsub.s32 0, %v1074
  %v1076 = vrot.slane %v1071, %v1075
  %v1077 = vlaneseq
  %v1078 = vshrl.u32 %v1077, 7
  %v1079 = vsub.s32 1, %v1078
  %v1080 = vrot.slane %v1071, %v1079
  %v1115 = vunpack.c.l.b16 %v39
  %v1116 = vunpack.c.h.b16 %v39
  %v1117 = vunpack.c.l.b16 %v40
  %v1118 = vunpack.c.h.b16 %v40
  %v1119 = vunpack.c.l.b16 %v41
  %v1120 = vunpack.c.h.b16 %v41
  %v1121 = vunpack.c.l.b16 %v42
  %v1122 = vunpack.c.h.b16 %v42
  %v1123 = vunpack.c.l.b16 %v43
  %v1124 = vunpack.c.h.b16 %v43
  %v1125 = vunpack.c.l.b16 %v44
  %v1126 = vunpack.c.h.b16 %v44
  %v1127 = vunpack.c.l.b16 %v45
  %v1128 = vunpack.c.h.b16 %v45
  %v1129 = vunpack.c.l.b16 %v46
  %v1130 = vunpack.c.h.b16 %v46
  %v1131 = vunpack.c.l.b16 %v47
  %v1132 = vunpack.c.h.b16 %v47
  %v1133 = vunpack.c.l.b16 %v48
  %v1134 = vunpack.c.h.b16 %v48
  %v1135 = vunpack.c.l.b16 %v49
  %v1136 = vunpack.c.h.b16 %v49
  %v1137 = vunpack.c.l.b16 %v50
  %v1138 = vunpack.c.h.b16 %v50
  %v1139 = vunpack.c.l.b16 %v51
  %v1140 = vunpack.c.h.b16 %v51
  %v1141 = vunpack.c.l.b16 %v52
  %v1142 = vunpack.c.h.b16 %v52
  %v1143 = vunpack.c.l.b16 %v53
  %v1144 = vunpack.c.h.b16 %v53
  %v1145 = vunpack.c.l.b16 %v54
  %v1146 = vunpack.c.h.b16 %v54
  %v1147 = vunpack.c.l.b16 %v55
  %v1148 = vunpack.c.h.b16 %v55
  %v1149 = vunpack.c.l.b16 %v56
  %v1150 = vunpack.c.h.b16 %v56
  %v1151 = vunpack.c.l.b16 %v57
  %v1152 = vunpack.c.h.b16 %v57
  %v1153 = vunpack.c.l.b16 %v58
  %v1154 = vunpack.c.h.b16 %v58
  %v1155 = vunpack.c.l.b16 %v59
  %v1156 = vunpack.c.h.b16 %v59
  %v1157 = vunpack.c.l.b16 %v60
  %v1158 = vunpack.c.h.b16 %v60
  %v1159 = vunpack.c.l.b16 %v61
  %v1160 = vunpack.c.h.b16 %v61
  %v1161 = vunpack.c.l.b16 %v62
  %v1162 = vunpack.c.h.b16 %v62
  %v1163 = vunpack.c.l.b16 %v63
  %v1164 = vunpack.c.h.b16 %v63
  %v1165 = vunpack.c.l.b16 %v64
  %v1166 = vunpack.c.h.b16 %v64
  %v1167 = vunpack.c.l.b16 %v65
  %v1168 = vunpack.c.h.b16 %v65
  %v1169 = vunpack.c.l.b16 %v66
  %v1170 = vunpack.c.h.b16 %v66
  %v1171 = vunpack.c.l.b16 %v67
  %v1172 = vunpack.c.h.b16 %v67
  %v1173 = vunpack.c.l.b16 %v68
  %v1174 = vunpack.c.h.b16 %v68
  %v1175 = vunpack.c.l.b16 %v69
  %v1176 = vunpack.c.h.b16 %v69
  %v1177 = vunpack.c.l.b16 %v70
  %v1178 = vpack.c.b16 %v1115, %v1115
  %v1179 = vpack.c.b16 %v1116, %v1116
  %v1180 = vpack.c.b16 %v1117, %v1117
  %v1181 = vpack.c.b16 %v1118, %v1118
  %v1182 = vpack.c.b16 %v1119, %v1119
  %v1183 = vpack.c.b16 %v1120, %v1120
  %v1184 = vpack.c.b16 %v1121, %v1121
  %v1185 = vpack.c.b16 %v1122, %v1122
  %v1186 = vpack.c.b16 %v1123, %v1123
  %v1187 = vpack.c.b16 %v1124, %v1124
  %v1188 = vpack.c.b16 %v1125, %v1125
  %v1189 = vpack.c.b16 %v1126, %v1126
  %v1190 = vpack.c.b16 %v1127, %v1127
  %v1191 = vpack.c.b16 %v1128, %v1128
  %v1192 = vpack.c.b16 %v1129, %v1129
  %v1193 = vpack.c.b16 %v1130, %v1130
  %v1194 = vpack.c.b16 %v1131, %v1131
  %v1195 = vpack.c.b16 %v1132, %v1132
  %v1196 = vpack.c.b16 %v1133, %v1133
  %v1197 = vpack.c.b16 %v1134, %v1134
  %v1198 = vpack.c.b16 %v1135, %v1135
  %v1199 = vpack.c.b16 %v1136, %v1136
  %v1200 = vpack.c.b16 %v1137, %v1137
  %v1201 = vpack.c.b16 %v1138, %v1138
  %v1202 = vpack.c.b16 %v1139, %v1139
  %v1203 = vpack.c.b16 %v1140, %v1140
  %v1204 = vpack.c.b16 %v1141, %v1141
  %v1205 = vpack.c.b16 %v1142, %v1142
  %v1206 = vpack.c.b16 %v1143, %v1143
  %v1207 = vpack.c.b16 %v1144, %v1144
  %v1208 = vpack.c.b16 %v1145, %v1145
  %v1209 = vpack.c.b16 %v1146, %v1146
  %v1210 = vpack.c.b16 %v1147, %v1147
  %v1211 = vpack.c.b16 %v1148, %v1148
  %v1212 = vpack.c.b16 %v1149, %v1149
  %v1213 = vpack.c.b16 %v1150, %v1150
  %v1214 = vpack.c.b16 %v1151, %v1151
  %v1215 = vpack.c.b16 %v1152, %v1152
  %v1216 = vpack.c.b16 %v1153, %v1153
  %v1217 = vpack.c.b16 %v1154, %v1154
  %v1218 = vpack.c.b16 %v1155, %v1155
  %v1219 = vpack.c.b16 %v1156, %v1156
  %v1220 = vpack.c.b16 %v1157, %v1157
  %v1221 = vpack.c.b16 %v1158, %v1158
  %v1222 = vpack.c.b16 %v1159, %v1159
  %v1223 = vpack.c.b16 %v1160, %v1160
  %v1224 = vpack.c.b16 %v1161, %v1161
  %v1225 = vpack.c.b16 %v1162, %v1162
  %v1226 = vpack.c.b16 %v1163, %v1163
  %v1227 = vpack.c.b16 %v1164, %v1164
  %v1228 = vpack.c.b16 %v1165, %v1165
  %v1229 = vpack.c.b16 %v1166, %v1166
  %v1230 = vpack.c.b16 %v1167, %v1167
  %v1231 = vpack.c.b16 %v1168, %v1168
  %v1232 = vpack.c.b16 %v1169, %v1169
  %v1233 = vpack.c.b16 %v1170, %v1170
  %v1234 = vpack.c.b16 %v1171, %v1171
  %v1235 = vpack.c.b16 %v1172, %v1172
  %v1236 = vpack.c.b16 %v1173, %v1173
  %v1237 = vpack.c.b16 %v1174, %v1174
  %v1238 = vpack.c.b16 %v1175, %v1175
  %v1239 = vpack.c.b16 %v1176, %v1176
  %v1240 = vpack.c.b16 %v1177, %v1177
  %v2303 = vunpack.c.l.b16 %v71
  %v2304 = vunpack.c.h.b16 %v71
  %v2305 = vunpack.c.l.b16 %v72
  %v2306 = vunpack.c.h.b16 %v72
  %v2307 = vunpack.c.l.b16 %v73
  %v2308 = vunpack.c.h.b16 %v73
  %v2309 = vunpack.c.l.b16 %v74
  %v2310 = vunpack.c.h.b16 %v74
  %v2311 = vunpack.c.l.b16 %v75
  %v2312 = vunpack.c.h.b16 %v75
  %v2313 = vunpack.c.l.b16 %v76
  %v2314 = vunpack.c.h.b16 %v76
  %v2315 = vunpack.c.l.b16 %v77
  %v2316 = vunpack.c.h.b16 %v77
  %v2317 = vunpack.c.l.b16 %v78
  %v2318 = vunpack.c.h.b16 %v78
  %v2319 = vunpack.c.l.b16 %v79
  %v2320 = vunpack.c.h.b16 %v79
  %v2321 = vunpack.c.l.b16 %v80
  %v2322 = vunpack.c.h.b16 %v80
  %v2323 = vunpack.c.l.b16 %v81
  %v2324 = vunpack.c.h.b16 %v81
  %v2325 = vunpack.c.l.b16 %v82
  %v2326 = vunpack.c.h.b16 %v82
  %v2327 = vunpack.c.l.b16 %v83
  %v2328 = vunpack.c.h.b16 %v83
  %v2329 = vunpack.c.l.b16 %v84
  %v2330 = vunpack.c.h.b16 %v84
  %v2331 = vunpack.c.l.b16 %v85
  %v2332 = vunpack.c.h.b16 %v85
  %v2333 = vunpack.c.l.b16 %v86
  %v2334 = vunpack.c.h.b16 %v86
  %v2335 = vunpack.c.l.b16 %v87
  %v2336 = vunpack.c.h.b16 %v87
  %v2337 = vunpack.c.l.b16 %v88
  %v2338 = vunpack.c.h.b16 %v88
  %v2339 = vunpack.c.l.b16 %v89
  %v2340 = vunpack.c.h.b16 %v89
  %v2341 = vunpack.c.l.b16 %v90
  %v2342 = vunpack.c.h.b16 %v90
  %v2343 = vunpack.c.l.b16 %v91
  %v2344 = vunpack.c.h.b16 %v91
  %v2345 = vunpack.c.l.b16 %v92
  %v2346 = vunpack.c.h.b16 %v92
  %v2347 = vunpack.c.l.b16 %v93
  %v2348 = vunpack.c.h.b16 %v93
  %v2349 = vunpack.c.l.b16 %v94
  %v2350 = vunpack.c.h.b16 %v94
  %v2351 = vunpack.c.l.b16 %v95
  %v2352 = vunpack.c.h.b16 %v95
  %v2353 = vunpack.c.l.b16 %v96
  %v2354 = vunpack.c.h.b16 %v96
  %v2355 = vunpack.c.l.b16 %v97
  %v2356 = vunpack.c.h.b16 %v97
  %v2357 = vunpack.c.l.b16 %v98
  %v2358 = vunpack.c.h.b16 %v98
  %v2359 = vunpack.c.l.b16 %v99
  %v2360 = vunpack.c.h.b16 %v99
  %v2361 = vunpack.c.l.b16 %v100
  %v2362 = vunpack.c.h.b16 %v100
  %v2363 = vunpack.c.l.b16 %v101
  %v2364 = vunpack.c.h.b16 %v101
  %v2365 = vunpack.c.l.b16 %v102
  %v2366 = vunpack.c.h.b16 %v102
  %v2367 = vunpack.c.l.b16 %v103
  %v2368 = vunpack.c.h.b16 %v103
  %v2369 = vunpack.c.l.b16 %v104
  %v2370 = vunpack.c.h.b16 %v104
  %v2371 = vunpack.c.l.b16 %v105
  %v2372 = vunpack.c.h.b16 %v105
  %v2373 = vunpack.c.l.b16 %v106
  %v2374 = vunpack.c.h.b16 %v106
  %v2375 = vunpack.c.l.b16 %v107
  %v2376 = vunpack.c.h.b16 %v107
  %v2377 = vunpack.c.l.b16 %v108
  %v2378 = vunpack.c.h.b16 %v108
  %v2379 = vunpack.c.l.b16 %v109
  %v2380 = vunpack.c.h.b16 %v109
  %v2381 = vunpack.c.l.b16 %v110
  %v2382 = vunpack.c.h.b16 %v110
  %v2383 = vunpack.c.l.b16 %v111
  %v2384 = vunpack.c.h.b16 %v111
  %v2385 = vunpack.c.l.b16 %v112
  %v2386 = vunpack.c.h.b16 %v112
  %v2387 = vunpack.c.l.b16 %v113
  %v2388 = vunpack.c.h.b16 %v113
  %v2389 = vunpack.c.l.b16 %v114
  %v2390 = vunpack.c.h.b16 %v114
  %v2391 = vunpack.c.l.b16 %v115
  %v2392 = vunpack.c.h.b16 %v115
  %v2393 = vunpack.c.l.b16 %v116
  %v2394 = vunpack.c.h.b16 %v116
  %v2395 = vunpack.c.l.b16 %v117
  %v2396 = vunpack.c.h.b16 %v117
  %v2397 = vunpack.c.l.b16 %v118
  %v2398 = vunpack.c.h.b16 %v118
  %v2399 = vunpack.c.l.b16 %v119
  %v2400 = vunpack.c.h.b16 %v119
  %v2401 = vunpack.c.l.b16 %v120
  %v2402 = vunpack.c.h.b16 %v120
  %v2403 = vunpack.c.l.b16 %v121
  %v2404 = vunpack.c.h.b16 %v121
  %v2405 = vunpack.c.l.b16 %v122
  %v2406 = vunpack.c.h.b16 %v122
  %v2407 = vunpack.c.l.b16 %v123
  %v2408 = vunpack.c.h.b16 %v123
  %v2409 = vunpack.c.l.b16 %v124
  %v2410 = vunpack.c.h.b16 %v124
  %v2411 = vunpack.c.l.b16 %v125
  %v2412 = vunpack.c.h.b16 %v125
  %v2413 = vunpack.c.l.b16 %v126
  %v2414 = vunpack.c.h.b16 %v126
  %v2415 = vunpack.c.l.b16 %v127
  %v2416 = vunpack.c.h.b16 %v127
  %v2417 = vunpack.c.l.b16 %v128
  %v2418 = vunpack.c.h.b16 %v128
  %v2419 = vunpack.c.l.b16 %v129
  %v2420 = vunpack.c.h.b16 %v129
  %v2421 = vunpack.c.l.b16 %v130
  %v2422 = vunpack.c.h.b16 %v130
  %v2423 = vunpack.c.l.b16 %v131
  %v2424 = vunpack.c.h.b16 %v131
  %v2425 = vunpack.c.l.b16 %v132
  %v2426 = vunpack.c.h.b16 %v132
  %v2427 = vunpack.c.l.b16 %v133
  %v2428 = vunpack.c.h.b16 %v133
  %v2429 = vunpack.c.l.b16 %v134
  %v2430 = vunpack.c.h.b16 %v134
  %v2431 = vunpack.c.l.b16 %v135
  %v2432 = vunpack.c.h.b16 %v135
  %v2433 = vunpack.c.l.b16 %v136
  %v2434 = vunpack.c.h.b16 %v136
  %v2435 = vunpack.c.l.b16 %v137
  %v2436 = vunpack.c.h.b16 %v137
  %v2437 = vunpack.c.l.b16 %v138
  %v2438 = vunpack.c.h.b16 %v138
  %v2439 = vunpack.c.l.b16 %v139
  %v2440 = vunpack.c.h.b16 %v139
  %v2441 = vunpack.c.l.b16 %v140
  %v2442 = vunpack.c.h.b16 %v140
  %v2443 = vunpack.c.l.b16 %v141
  %v2444 = vunpack.c.h.b16 %v141
  %v2445 = vunpack.c.l.b16 %v142
  %v2446 = vunpack.c.h.b16 %v142
  %v2447 = vunpack.c.l.b16 %v143
  %v2448 = vunpack.c.h.b16 %v143
  %v2449 = vunpack.c.l.b16 %v144
  %v2450 = vunpack.c.h.b16 %v144
  %v2451 = vunpack.c.l.b16 %v145
  %v2452 = vunpack.c.h.b16 %v145
  %v2453 = vunpack.c.l.b16 %v146
  %v2454 = vunpack.c.h.b16 %v146
  %v2455 = vunpack.c.l.b16 %v147
  %v2456 = vunpack.c.h.b16 %v147
  %v2457 = vunpack.c.l.b16 %v148
  %v2458 = vunpack.c.h.b16 %v148
  %v2459 = vunpack.c.l.b16 %v149
  %v2460 = vunpack.c.h.b16 %v149
  %v2461 = vunpack.c.l.b16 %v150
  %v2462 = vunpack.c.h.b16 %v150
  %v2463 = vunpack.c.l.b16 %v151
  %v2464 = vunpack.c.h.b16 %v151
  %v2465 = vunpack.c.l.b16 %v152
  %v2466 = vunpack.c.h.b16 %v152
  %v2467 = vunpack.c.l.b16 %v153
  %v2468 = vunpack.c.h.b16 %v153
  %v2469 = vunpack.c.l.b16 %v154
  %v2470 = vunpack.c.h.b16 %v154
  %v2471 = vunpack.c.l.b16 %v155
  %v2472 = vunpack.c.h.b16 %v155
  %v2473 = vunpack.c.l.b16 %v156
  %v2474 = vunpack.c.h.b16 %v156
  %v2475 = vunpack.c.l.b16 %v157
  %v2476 = vunpack.c.h.b16 %v157
  %v2477 = vunpack.c.l.b16 %v158
  %v2478 = vunpack.c.h.b16 %v158
  %v2479 = vunpack.c.l.b16 %v159
  %v2480 = vunpack.c.h.b16 %v159
  %v2481 = vunpack.c.l.b16 %v160
  %v2482 = vunpack.c.h.b16 %v160
  %v2483 = vunpack.c.l.b16 %v161
  %v2484 = vunpack.c.h.b16 %v161
  %v2485 = vunpack.c.l.b16 %v162
  %v2486 = vunpack.c.h.b16 %v162
  %v2487 = vunpack.c.l.b16 %v163
  %v2488 = vunpack.c.h.b16 %v163
  %v2489 = vunpack.c.l.b16 %v164
  %v2490 = vunpack.c.h.b16 %v164
  %v2491 = vunpack.c.l.b16 %v165
  %v2492 = vunpack.c.h.b16 %v165
  %v2493 = vunpack.c.l.b16 %v166
  %v2494 = vunpack.c.h.b16 %v166
  %v2495 = vunpack.c.l.b16 %v167
  %v2496 = vunpack.c.h.b16 %v167
  %v2497 = vunpack.c.l.b16 %v168
  %v2498 = vunpack.c.h.b16 %v168
  %v2499 = vunpack.c.l.b16 %v169
  %v2500 = vunpack.c.h.b16 %v169
  %v2501 = vunpack.c.l.b16 %v170
  %v2502 = vunpack.c.h.b16 %v170
  %v2503 = vunpack.c.l.b16 %v171
  %v2504 = vunpack.c.h.b16 %v171
  %v2505 = vunpack.c.l.b16 %v172
  %v2506 = vunpack.c.h.b16 %v172
  %v2507 = vunpack.c.l.b16 %v173
  %v2508 = vunpack.c.h.b16 %v173
  %v2509 = vunpack.c.l.b16 %v174
  %v2510 = vunpack.c.h.b16 %v174
  %v2511 = vunpack.c.l.b16 %v175
  %v2512 = vunpack.c.h.b16 %v175
  %v2513 = vunpack.c.l.b16 %v176
  %v2514 = vunpack.c.h.b16 %v176
  %v2515 = vunpack.c.l.b16 %v177
  %v2516 = vunpack.c.h.b16 %v177
  %v2517 = vunpack.c.l.b16 %v178
  %v2518 = vunpack.c.h.b16 %v178
  %v2519 = vunpack.c.l.b16 %v179
  %v2520 = vunpack.c.h.b16 %v179
  %v2521 = vunpack.c.l.b16 %v180
  %v2522 = vunpack.c.h.b16 %v180
  %v2523 = vunpack.c.l.b16 %v181
  %v2524 = vunpack.c.h.b16 %v181
  %v2525 = vunpack.c.l.b16 %v182
  %v2526 = vunpack.c.h.b16 %v182
  %v2527 = vunpack.c.l.b16 %v183
  %v2528 = vunpack.c.h.b16 %v183
  %v2529 = vunpack.c.l.b16 %v184
  %v2530 = vunpack.c.h.b16 %v184
  %v2531 = vunpack.c.l.b16 %v185
  %v2532 = vunpack.c.h.b16 %v185
  %v2533 = vunpack.c.l.b16 %v186
  %v2534 = vunpack.c.h.b16 %v186
  %v2535 = vunpack.c.l.b16 %v187
  %v2536 = vunpack.c.h.b16 %v187
  %v2537 = vunpack.c.l.b16 %v188
  %v2538 = vunpack.c.h.b16 %v188
  %v2539 = vunpack.c.l.b16 %v189
  %v2540 = vunpack.c.h.b16 %v189
  %v2541 = vunpack.c.l.b16 %v190
  %v2542 = vunpack.c.h.b16 %v190
  %v2543 = vunpack.c.l.b16 %v191
  %v2544 = vunpack.c.h.b16 %v191
  %v2545 = vunpack.c.l.b16 %v192
  %v2546 = vunpack.c.h.b16 %v192
  %v2547 = vunpack.c.l.b16 %v193
  %v2548 = vunpack.c.h.b16 %v193
  %v2549 = vunpack.c.l.b16 %v194
  %v2550 = vunpack.c.h.b16 %v194
  %v2551 = vunpack.c.l.b16 %v195
  %v2552 = vunpack.c.h.b16 %v195
  %v2553 = vunpack.c.l.b16 %v196
  %v2554 = vunpack.c.h.b16 %v196
  %v2555 = vunpack.c.l.b16 %v197
  %v2556 = vunpack.c.h.b16 %v197
  %v2557 = vunpack.c.l.b16 %v198
  %v2558 = vunpack.c.h.b16 %v198
  %v2559 = vunpack.c.l.b16 %v199
  %v2560 = vunpack.c.h.b16 %v199
  %v2561 = vunpack.c.l.b16 %v200
  %v2562 = vunpack.c.h.b16 %v200
  %v2563 = vunpack.c.l.b16 %v201
  %v2564 = vunpack.c.h.b16 %v201
  %v2565 = vunpack.c.l.b16 %v202
  %v2566 = vunpack.c.h.b16 %v202
  %v2567 = vunpack.c.l.b16 %v203
  %v2568 = vunpack.c.h.b16 %v203
  %v2569 = vunpack.c.l.b16 %v204
  %v2570 = vunpack.c.h.b16 %v204
  %v2571 = vunpack.c.l.b16 %v205
  %v2572 = vunpack.c.h.b16 %v205
  %v2573 = vunpack.c.l.b16 %v206
  %v2574 = vunpack.c.h.b16 %v206
  %v2575 = vunpack.c.l.b16 %v207
  %v2576 = vunpack.c.h.b16 %v207
  %v2577 = vunpack.c.l.b16 %v208
  %v2578 = vunpack.c.h.b16 %v208
  %v2579 = vunpack.c.l.b16 %v209
  %v2580 = vunpack.c.h.b16 %v209
  %v2581 = vunpack.c.l.b16 %v210
  %v2582 = vunpack.c.h.b16 %v210
  %v2583 = vunpack.c.l.b16 %v211
  %v2584 = vunpack.c.h.b16 %v211
  %v2585 = vunpack.c.l.b16 %v212
  %v2586 = vunpack.c.h.b16 %v212
  %v2587 = vunpack.c.l.b16 %v213
  %v2588 = vunpack.c.h.b16 %v213
  %v2589 = vunpack.c.l.b16 %v214
  %v2590 = vunpack.c.h.b16 %v214
  %v2591 = vunpack.c.l.b16 %v215
  %v2592 = vunpack.c.h.b16 %v215
  %v2593 = vunpack.c.l.b16 %v216
  %v2594 = vunpack.c.h.b16 %v216
  %v2595 = vunpack.c.l.b16 %v217
  %v2596 = vunpack.c.h.b16 %v217
  %v2597 = vunpack.c.l.b16 %v218
  %v2598 = vunpack.c.h.b16 %v218
  %v2599 = vunpack.c.l.b16 %v219
  %v2600 = vunpack.c.h.b16 %v219
  %v2601 = vunpack.c.l.b16 %v220
  %v2602 = vunpack.c.h.b16 %v220
  %v2603 = vunpack.c.l.b16 %v221
  %v2604 = vunpack.c.h.b16 %v221
  %v2605 = vunpack.c.l.b16 %v222
  %v2606 = vunpack.c.h.b16 %v222
  %v2607 = vunpack.c.l.b16 %v223
  %v2608 = vunpack.c.h.b16 %v223
  %v2609 = vunpack.c.l.b16 %v224
  %v2610 = vunpack.c.h.b16 %v224
  %v2611 = vunpack.c.l.b16 %v225
  %v2612 = vunpack.c.h.b16 %v225
  %v2613 = vunpack.c.l.b16 %v226
  %v2614 = vunpack.c.h.b16 %v226
  %v2615 = vunpack.c.l.b16 %v227
  %v2616 = vunpack.c.h.b16 %v227
  %v2617 = vunpack.c.l.b16 %v228
  %v2618 = vunpack.c.h.b16 %v228
  %v2619 = vunpack.c.l.b16 %v229
  %v2620 = vunpack.c.h.b16 %v229
  %v2621 = vunpack.c.l.b16 %v230
  %v2622 = vunpack.c.h.b16 %v230
  %v2623 = vunpack.c.l.b16 %v231
  %v2624 = vunpack.c.h.b16 %v231
  %v2625 = vunpack.c.l.b16 %v232
  %v2626 = vunpack.c.h.b16 %v232
  %v2627 = vunpack.c.l.b16 %v233
  %v2628 = vunpack.c.h.b16 %v233
  %v2629 = vunpack.c.l.b16 %v234
  %v2630 = vunpack.c.h.b16 %v234
  %v2631 = vunpack.c.l.b16 %v235
  %v2632 = vunpack.c.h.b16 %v235
  %v2633 = vunpack.c.l.b16 %v236
  %v2634 = vunpack.c.h.b16 %v236
  %v2635 = vunpack.c.l.b16 %v237
  %v2636 = vunpack.c.h.b16 %v237
  %v2637 = vunpack.c.l.b16 %v238
  %v2638 = vunpack.c.h.b16 %v238
  %v2639 = vunpack.c.l.b16 %v239
  %v2640 = vunpack.c.h.b16 %v239
  %v2641 = vunpack.c.l.b16 %v240
  %v2642 = vunpack.c.h.b16 %v240
  %v2643 = vunpack.c.l.b16 %v241
  %v2644 = vunpack.c.h.b16 %v241
  %v2645 = vunpack.c.l.b16 %v242
  %v2646 = vunpack.c.h.b16 %v242
  %v2647 = vunpack.c.l.b16 %v243
  %v2648 = vunpack.c.h.b16 %v243
  %v2649 = vunpack.c.l.b16 %v244
  %v2650 = vunpack.c.h.b16 %v244
  %v2651 = vunpack.c.l.b16 %v245
  %v2652 = vunpack.c.h.b16 %v245
  %v2653 = vunpack.c.l.b16 %v246
  %v2654 = vunpack.c.h.b16 %v246
  %v2655 = vunpack.c.l.b16 %v247
  %v2656 = vunpack.c.h.b16 %v247
  %v2657 = vunpack.c.l.b16 %v248
  %v2658 = vunpack.c.h.b16 %v248
  %v2659 = vunpack.c.l.b16 %v249
  %v2660 = vunpack.c.h.b16 %v249
  %v2661 = vunpack.c.l.b16 %v250
  %v2662 = vunpack.c.h.b16 %v250
  %v2663 = vunpack.c.l.b16 %v251
  %v2664 = vunpack.c.h.b16 %v251
  %v2665 = vunpack.c.l.b16 %v252
  %v2666 = vunpack.c.h.b16 %v252
  %v2667 = vunpack.c.l.b16 %v253
  %v2668 = vunpack.c.h.b16 %v253
  %v2669 = vunpack.c.l.b16 %v254
  %v2670 = vunpack.c.h.b16 %v254
  %v2671 = vunpack.c.l.b16 %v255
  %v2672 = vunpack.c.h.b16 %v255
  %v2673 = vunpack.c.l.b16 %v256
  %v2674 = vunpack.c.h.b16 %v256
  %v2675 = vunpack.c.l.b16 %v257
  %v2676 = vunpack.c.h.b16 %v257
  %v2677 = vunpack.c.l.b16 %v258
  %v2678 = vunpack.c.h.b16 %v258
  %v2679 = vunpack.c.l.b16 %v259
  %v2680 = vunpack.c.h.b16 %v259
  %v2681 = vunpack.c.l.b16 %v260
  %v2682 = vunpack.c.h.b16 %v260
  %v2683 = vunpack.c.l.b16 %v261
  %v2684 = vunpack.c.h.b16 %v261
  %v2685 = vunpack.c.l.b16 %v262
  %v2686 = vunpack.c.h.b16 %v262
  %v2687 = vunpack.c.l.b16 %v263
  %v2688 = vunpack.c.h.b16 %v263
  %v2689 = vunpack.c.l.b16 %v264
  %v2690 = vunpack.c.h.b16 %v264
  %v2691 = vunpack.c.l.b16 %v265
  %v2692 = vunpack.c.h.b16 %v265
  %v2693 = vunpack.c.l.b16 %v266
  %v2694 = vunpack.c.h.b16 %v266
  %v2695 = vunpack.c.l.b16 %v267
  %v2696 = vunpack.c.h.b16 %v267
  %v2697 = vunpack.c.l.b16 %v268
  %v2698 = vunpack.c.h.b16 %v268
  %v2699 = vunpack.c.l.b16 %v269
  %v2700 = vunpack.c.h.b16 %v269
  %v2701 = vunpack.c.l.b16 %v270
  %v2702 = vunpack.c.h.b16 %v270
  %v2703 = vunpack.c.l.b16 %v271
  %v2704 = vunpack.c.h.b16 %v271
  %v2705 = vunpack.c.l.b16 %v272
  %v2706 = vunpack.c.h.b16 %v272
  %v2707 = vunpack.c.l.b16 %v273
  %v2708 = vunpack.c.h.b16 %v273
  %v2709 = vunpack.c.l.b16 %v274
  %v2710 = vunpack.c.h.b16 %v274
  %v2711 = vunpack.c.l.b16 %v275
  %v2712 = vunpack.c.h.b16 %v275
  %v2713 = vunpack.c.l.b16 %v276
  %v2714 = vunpack.c.h.b16 %v276
  %v2715 = vunpack.c.l.b16 %v277
  %v2716 = vunpack.c.h.b16 %v277
  %v2717 = vunpack.c.l.b16 %v278
  %v2718 = vunpack.c.h.b16 %v278
  %v2719 = vunpack.c.l.b16 %v279
  %v2720 = vunpack.c.h.b16 %v279
  %v2721 = vunpack.c.l.b16 %v280
  %v2722 = vunpack.c.h.b16 %v280
  %v2723 = vunpack.c.l.b16 %v281
  %v2724 = vunpack.c.h.b16 %v281
  %v2725 = vunpack.c.l.b16 %v282
  %v2726 = vunpack.c.h.b16 %v282
  %v2727 = vunpack.c.l.b16 %v283
  %v2728 = vunpack.c.h.b16 %v283
  %v2729 = vunpack.c.l.b16 %v284
  %v2730 = vunpack.c.h.b16 %v284
  %v2731 = vunpack.c.l.b16 %v285
  %v2732 = vunpack.c.h.b16 %v285
  %v2733 = vunpack.c.l.b16 %v286
  %v2734 = vunpack.c.h.b16 %v286
  %v2735 = vunpack.c.l.b16 %v287
  %v2736 = vunpack.c.h.b16 %v287
  %v2737 = vunpack.c.l.b16 %v288
  %v2738 = vunpack.c.h.b16 %v288
  %v2739 = vunpack.c.l.b16 %v289
  %v2740 = vunpack.c.h.b16 %v289
  %v2741 = vunpack.c.l.b16 %v290
  %v2742 = vunpack.c.h.b16 %v290
  %v2743 = vunpack.c.l.b16 %v291
  %v2744 = vunpack.c.h.b16 %v291
  %v2745 = vunpack.c.l.b16 %v292
  %v2746 = vunpack.c.h.b16 %v292
  %v2747 = vunpack.c.l.b16 %v293
  %v2748 = vunpack.c.h.b16 %v293
  %v2749 = vunpack.c.l.b16 %v294
  %v2750 = vunpack.c.h.b16 %v294
  %v2751 = vunpack.c.l.b16 %v295
  %v2752 = vunpack.c.h.b16 %v295
  %v2753 = vunpack.c.l.b16 %v296
  %v2754 = vunpack.c.h.b16 %v296
  %v2755 = vunpack.c.l.b16 %v297
  %v2756 = vunpack.c.h.b16 %v297
  %v2757 = vunpack.c.l.b16 %v298
  %v2758 = vunpack.c.h.b16 %v298
  %v2759 = vunpack.c.l.b16 %v299
  %v2760 = vunpack.c.h.b16 %v299
  %v2761 = vunpack.c.l.b16 %v300
  %v2762 = vunpack.c.h.b16 %v300
  %v2763 = vunpack.c.l.b16 %v301
  %v2764 = vunpack.c.h.b16 %v301
  %v2765 = vunpack.c.l.b16 %v302
  %v2766 = vunpack.c.h.b16 %v302
  %v2767 = vunpack.c.l.b16 %v303
  %v2768 = vunpack.c.h.b16 %v303
  %v2769 = vunpack.c.l.b16 %v304
  %v2770 = vunpack.c.h.b16 %v304
  %v2771 = vunpack.c.l.b16 %v305
  %v2772 = vunpack.c.h.b16 %v305
  %v2773 = vunpack.c.l.b16 %v306
  %v2774 = vunpack.c.h.b16 %v306
  %v2775 = vunpack.c.l.b16 %v307
  %v2776 = vunpack.c.h.b16 %v307
  %v2777 = vunpack.c.l.b16 %v308
  %v2778 = vunpack.c.h.b16 %v308
  %v2779 = vunpack.c.l.b16 %v309
  %v2780 = vunpack.c.h.b16 %v309
  %v2781 = vunpack.c.l.b16 %v310
  %v2782 = vunpack.c.h.b16 %v310
  %v2783 = vunpack.c.l.b16 %v311
  %v2784 = vunpack.c.h.b16 %v311
  %v2785 = vunpack.c.l.b16 %v312
  %v2786 = vunpack.c.h.b16 %v312
  %v2787 = vunpack.c.l.b16 %v313
  %v2788 = vunpack.c.h.b16 %v313
  %v2789 = vunpack.c.l.b16 %v314
  %v2790 = vunpack.c.h.b16 %v314
  %v2791 = vunpack.c.l.b16 %v315
  %v2792 = vunpack.c.h.b16 %v315
  %v2793 = vunpack.c.l.b16 %v316
  %v2794 = vunpack.c.h.b16 %v316
  %v2795 = vunpack.c.l.b16 %v317
  %v2796 = vunpack.c.h.b16 %v317
  %v2797 = vunpack.c.l.b16 %v318
  %v2798 = vunpack.c.h.b16 %v318
  %v2799 = vunpack.c.l.b16 %v319
  %v2800 = vunpack.c.h.b16 %v319
  %v2801 = vunpack.c.l.b16 %v320
  %v2802 = vunpack.c.h.b16 %v320
  %v2803 = vunpack.c.l.b16 %v321
  %v2804 = vunpack.c.h.b16 %v321
  %v2805 = vunpack.c.l.b16 %v322
  %v2806 = vunpack.c.h.b16 %v322
  %v2807 = vunpack.c.l.b16 %v323
  %v2808 = vunpack.c.h.b16 %v323
  %v2809 = vunpack.c.l.b16 %v324
  %v2810 = vunpack.c.h.b16 %v324
  %v2811 = vunpack.c.l.b16 %v325
  %v2812 = vunpack.c.h.b16 %v325
  %v2813 = vunpack.c.l.b16 %v326
  %v2814 = vunpack.c.h.b16 %v326
  %v2815 = vunpack.c.l.b16 %v327
  %v2816 = vunpack.c.h.b16 %v327
  %v2817 = vunpack.c.l.b16 %v328
  %v2818 = vunpack.c.h.b16 %v328
  %v2819 = vunpack.c.l.b16 %v329
  %v2820 = vunpack.c.h.b16 %v329
  %v2821 = vunpack.c.l.b16 %v330
  %v2822 = vunpack.c.h.b16 %v330
  %v2823 = vunpack.c.l.b16 %v331
  %v2824 = vunpack.c.h.b16 %v331
  %v2825 = vunpack.c.l.b16 %v332
  %v2826 = vunpack.c.h.b16 %v332
  %v2827 = vunpack.c.l.b16 %v333
  %v2828 = vunpack.c.h.b16 %v333
  %v2829 = vunpack.c.l.b16 %v334
  %v2830 = vunpack.c.h.b16 %v334
  %v2831 = vunpack.c.l.b16 %v335
  %v2832 = vunpack.c.h.b16 %v335
  %v2833 = vunpack.c.l.b16 %v336
  %v2834 = vunpack.c.h.b16 %v336
  %v2835 = vunpack.c.l.b16 %v337
  %v2836 = vunpack.c.h.b16 %v337
  %v2837 = vunpack.c.l.b16 %v338
  %v2838 = vunpack.c.h.b16 %v338
  %v2839 = vunpack.c.l.b16 %v339
  %v2840 = vunpack.c.h.b16 %v339
  %v2841 = vunpack.c.l.b16 %v340
  %v2842 = vunpack.c.h.b16 %v340
  %v2843 = vunpack.c.l.b16 %v341
  %v2844 = vunpack.c.h.b16 %v341
  %v2845 = vunpack.c.l.b16 %v342
  %v2846 = vunpack.c.h.b16 %v342
  %v2847 = vunpack.c.l.b16 %v343
  %v2848 = vunpack.c.h.b16 %v343
  %v2849 = vunpack.c.l.b16 %v344
  %v2850 = vunpack.c.h.b16 %v344
  %v2851 = vunpack.c.l.b16 %v345
  %v2852 = vunpack.c.h.b16 %v345
  %v2853 = vunpack.c.l.b16 %v346
  %v2854 = vunpack.c.h.b16 %v346
  %v2855 = vunpack.c.l.b16 %v347
  %v2856 = vunpack.c.h.b16 %v347
  %v2857 = vunpack.c.l.b16 %v348
  %v2858 = vunpack.c.h.b16 %v348
  %v2859 = vunpack.c.l.b16 %v349
  %v2860 = vunpack.c.h.b16 %v349
  %v2861 = vunpack.c.l.b16 %v350
  %v2862 = vunpack.c.h.b16 %v350
  %v2863 = vunpack.c.l.b16 %v351
  %v2864 = vunpack.c.h.b16 %v351
  %v2865 = vunpack.c.l.b16 %v352
  %v2866 = vunpack.c.h.b16 %v352
  %v2867 = vunpack.c.l.b16 %v353
  %v2868 = vunpack.c.h.b16 %v353
  %v2869 = vunpack.c.l.b16 %v354
  %v2870 = vunpack.c.h.b16 %v354
  %v2871 = vunpack.c.l.b16 %v355
  %v2872 = vunpack.c.h.b16 %v355
  %v2873 = vunpack.c.l.b16 %v356
  %v2874 = vunpack.c.h.b16 %v356
  %v2875 = vunpack.c.l.b16 %v357
  %v2876 = vunpack.c.h.b16 %v357
  %v2877 = vunpack.c.l.b16 %v358
  %v2878 = vunpack.c.h.b16 %v358
  %v2879 = vunpack.c.l.b16 %v359
  %v2880 = vunpack.c.h.b16 %v359
  %v2881 = vunpack.c.l.b16 %v360
  %v2882 = vunpack.c.h.b16 %v360
  %v2883 = vunpack.c.l.b16 %v361
  %v2884 = vunpack.c.h.b16 %v361
  %v2885 = vunpack.c.l.b16 %v362
  %v2886 = vunpack.c.h.b16 %v362
  %v2887 = vunpack.c.l.b16 %v363
  %v2888 = vunpack.c.h.b16 %v363
  %v2889 = vunpack.c.l.b16 %v364
  %v2890 = vunpack.c.h.b16 %v364
  %v2891 = vunpack.c.l.b16 %v365
  %v2892 = vunpack.c.h.b16 %v365
  %v2893 = vunpack.c.l.b16 %v366
  %v2894 = vunpack.c.h.b16 %v366
  %v2895 = vunpack.c.l.b16 %v367
  %v2896 = vunpack.c.h.b16 %v367
  %v2897 = vunpack.c.l.b16 %v368
  %v2898 = vunpack.c.h.b16 %v368
  %v2899 = vunpack.c.l.b16 %v369
  %v2900 = vunpack.c.h.b16 %v369
  %v2901 = vunpack.c.l.b16 %v370
  %v2902 = vunpack.c.h.b16 %v370
  %v2903 = vunpack.c.l.b16 %v371
  %v2904 = vunpack.c.h.b16 %v371
  %v2905 = vunpack.c.l.b16 %v372
  %v2906 = vunpack.c.h.b16 %v372
  %v2907 = vunpack.c.l.b16 %v373
  %v2908 = vunpack.c.h.b16 %v373
  %v2909 = vunpack.c.l.b16 %v374
  %v2910 = vunpack.c.h.b16 %v374
  %v2911 = vunpack.c.l.b16 %v375
  %v2912 = vunpack.c.h.b16 %v375
  %v2913 = vunpack.c.l.b16 %v376
  %v2914 = vunpack.c.h.b16 %v376
  %v2915 = vunpack.c.l.b16 %v377
  %v2916 = vunpack.c.h.b16 %v377
  %v2917 = vunpack.c.l.b16 %v378
  %v2918 = vunpack.c.h.b16 %v378
  %v2919 = vunpack.c.l.b16 %v379
  %v2920 = vunpack.c.h.b16 %v379
  %v2921 = vunpack.c.l.b16 %v380
  %v2922 = vunpack.c.h.b16 %v380
  %v2923 = vunpack.c.l.b16 %v381
  %v2924 = vunpack.c.h.b16 %v381
  %v2925 = vunpack.c.l.b16 %v382
  %v2926 = vunpack.c.h.b16 %v382
  %v2927 = vunpack.c.l.b16 %v383
  %v2928 = vunpack.c.h.b16 %v383
  %v2929 = vunpack.c.l.b16 %v384
  %v2930 = vunpack.c.h.b16 %v384
  %v2931 = vunpack.c.l.b16 %v385
  %v2932 = vunpack.c.h.b16 %v385
  %v2933 = vunpack.c.l.b16 %v386
  %v2934 = vunpack.c.h.b16 %v386
  %v2935 = vunpack.c.l.b16 %v387
  %v2936 = vunpack.c.h.b16 %v387
  %v2937 = vunpack.c.l.b16 %v388
  %v2938 = vunpack.c.h.b16 %v388
  %v2939 = vunpack.c.l.b16 %v389
  %v2940 = vunpack.c.h.b16 %v389
  %v2941 = vunpack.c.l.b16 %v390
  %v2942 = vunpack.c.h.b16 %v390
  %v2943 = vunpack.c.l.b16 %v391
  %v2944 = vunpack.c.h.b16 %v391
  %v2945 = vunpack.c.l.b16 %v392
  %v2946 = vunpack.c.h.b16 %v392
  %v2947 = vunpack.c.l.b16 %v393
  %v2948 = vunpack.c.h.b16 %v393
  %v2949 = vunpack.c.l.b16 %v394
  %v2950 = vunpack.c.h.b16 %v394
  %v2951 = vunpack.c.l.b16 %v395
  %v2952 = vunpack.c.h.b16 %v395
  %v2953 = vunpack.c.l.b16 %v396
  %v2954 = vunpack.c.h.b16 %v396
  %v2955 = vunpack.c.l.b16 %v397
  %v2956 = vunpack.c.h.b16 %v397
  %v2957 = vunpack.c.l.b16 %v398
  %v2958 = vunpack.c.h.b16 %v398
  %v2959 = vunpack.c.l.b16 %v399
  %v2960 = vunpack.c.h.b16 %v399
  %v2961 = vunpack.c.l.b16 %v400
  %v2962 = vunpack.c.h.b16 %v400
  %v2963 = vunpack.c.l.b16 %v401
  %v2964 = vunpack.c.h.b16 %v401
  %v2965 = vunpack.c.l.b16 %v402
  %v2966 = vunpack.c.h.b16 %v402
  %v2967 = vunpack.c.l.b16 %v403
  %v2968 = vunpack.c.h.b16 %v403
  %v2969 = vunpack.c.l.b16 %v404
  %v2970 = vunpack.c.h.b16 %v404
  %v2971 = vunpack.c.l.b16 %v405
  %v2972 = vunpack.c.h.b16 %v405
  %v2973 = vunpack.c.l.b16 %v406
  %v2974 = vunpack.c.h.b16 %v406
  %v2975 = vunpack.c.l.b16 %v407
  %v2976 = vunpack.c.h.b16 %v407
  %v2977 = vunpack.c.l.b16 %v408
  %v2978 = vunpack.c.h.b16 %v408
  %v2979 = vunpack.c.l.b16 %v409
  %v2980 = vunpack.c.h.b16 %v409
  %v2981 = vunpack.c.l.b16 %v410
  %v2982 = vunpack.c.h.b16 %v410
  %v2983 = vunpack.c.l.b16 %v411
  %v2984 = vunpack.c.h.b16 %v411
  %v2985 = vunpack.c.l.b16 %v412
  %v2986 = vunpack.c.h.b16 %v412
  %v2987 = vunpack.c.l.b16 %v413
  %v2988 = vunpack.c.h.b16 %v413
  %v2989 = vunpack.c.l.b16 %v414
  %v2990 = vunpack.c.h.b16 %v414
  %v2991 = vunpack.c.l.b16 %v415
  %v2992 = vunpack.c.h.b16 %v415
  %v2993 = vunpack.c.l.b16 %v416
  %v2994 = vunpack.c.h.b16 %v416
  %v2995 = vunpack.c.l.b16 %v417
  %v2996 = vunpack.c.h.b16 %v417
  %v2997 = vunpack.c.l.b16 %v418
  %v2998 = vunpack.c.h.b16 %v418
  %v2999 = vunpack.c.l.b16 %v419
  %v3000 = vunpack.c.h.b16 %v419
  %v3001 = vunpack.c.l.b16 %v420
  %v3002 = vunpack.c.h.b16 %v420
  %v3003 = vunpack.c.l.b16 %v421
  %v3004 = vunpack.c.h.b16 %v421
  %v3005 = vunpack.c.l.b16 %v422
  %v3006 = vunpack.c.h.b16 %v422
  %v3007 = vunpack.c.l.b16 %v423
  %v3008 = vunpack.c.h.b16 %v423
  %v3009 = vunpack.c.l.b16 %v424
  %v3010 = vunpack.c.h.b16 %v424
  %v3011 = vunpack.c.l.b16 %v425
  %v3012 = vunpack.c.h.b16 %v425
  %v3013 = vunpack.c.l.b16 %v426
  %v3014 = vunpack.c.h.b16 %v426
  %v3015 = vunpack.c.l.b16 %v427
  %v3016 = vunpack.c.h.b16 %v427
  %v3017 = vunpack.c.l.b16 %v428
  %v3018 = vunpack.c.h.b16 %v428
  %v3019 = vunpack.c.l.b16 %v429
  %v3020 = vunpack.c.h.b16 %v429
  %v3021 = vunpack.c.l.b16 %v430
  %v3022 = vunpack.c.h.b16 %v430
  %v3023 = vunpack.c.l.b16 %v431
  %v3024 = vunpack.c.h.b16 %v431
  %v3025 = vunpack.c.l.b16 %v432
  %v3026 = vunpack.c.h.b16 %v432
  %v3027 = vunpack.c.l.b16 %v433
  %v3028 = vunpack.c.h.b16 %v433
  %v3029 = vunpack.c.l.b16 %v434
  %v3030 = vunpack.c.h.b16 %v434
  %v3031 = vunpack.c.l.b16 %v435
  %v3032 = vunpack.c.h.b16 %v435
  %v3033 = vunpack.c.l.b16 %v436
  %v3034 = vunpack.c.h.b16 %v436
  %v3035 = vunpack.c.l.b16 %v437
  %v3036 = vunpack.c.h.b16 %v437
  %v3037 = vunpack.c.l.b16 %v438
  %v3038 = vunpack.c.h.b16 %v438
  %v3039 = vunpack.c.l.b16 %v439
  %v3040 = vunpack.c.h.b16 %v439
  %v3041 = vunpack.c.l.b16 %v440
  %v3042 = vunpack.c.h.b16 %v440
  %v3043 = vunpack.c.l.b16 %v441
  %v3044 = vunpack.c.h.b16 %v441
  %v3045 = vunpack.c.l.b16 %v442
  %v3046 = vunpack.c.h.b16 %v442
  %v3047 = vunpack.c.l.b16 %v443
  %v3048 = vunpack.c.h.b16 %v443
  %v3049 = vunpack.c.l.b16 %v444
  %v3050 = vunpack.c.h.b16 %v444
  %v3051 = vunpack.c.l.b16 %v445
  %v3052 = vunpack.c.h.b16 %v445
  %v3053 = vunpack.c.l.b16 %v446
  %v3054 = vunpack.c.h.b16 %v446
  %v3055 = vunpack.c.l.b16 %v447
  %v3056 = vunpack.c.h.b16 %v447
  %v3057 = vunpack.c.l.b16 %v448
  %v3058 = vunpack.c.h.b16 %v448
  %v3059 = vunpack.c.l.b16 %v449
  %v3060 = vunpack.c.h.b16 %v449
  %v3061 = vunpack.c.l.b16 %v450
  %v3062 = vunpack.c.h.b16 %v450
  %v3063 = vunpack.c.l.b16 %v451
  %v3064 = vunpack.c.h.b16 %v451
  %v3065 = vunpack.c.l.b16 %v452
  %v3066 = vunpack.c.h.b16 %v452
  %v3067 = vunpack.c.l.b16 %v453
  %v3068 = vunpack.c.h.b16 %v453
  %v3069 = vunpack.c.l.b16 %v454
  %v3070 = vunpack.c.h.b16 %v454
  %v3071 = vunpack.c.l.b16 %v455
  %v3072 = vunpack.c.h.b16 %v455
  %v3073 = vunpack.c.l.b16 %v456
  %v3074 = vunpack.c.h.b16 %v456
  %v3075 = vunpack.c.l.b16 %v457
  %v3076 = vunpack.c.h.b16 %v457
  %v3077 = vunpack.c.l.b16 %v458
  %v3078 = vunpack.c.h.b16 %v458
  %v3079 = vunpack.c.l.b16 %v459
  %v3080 = vunpack.c.h.b16 %v459
  %v3081 = vunpack.c.l.b16 %v460
  %v3082 = vunpack.c.h.b16 %v460
  %v3083 = vunpack.c.l.b16 %v461
  %v3084 = vunpack.c.h.b16 %v461
  %v3085 = vunpack.c.l.b16 %v462
  %v3086 = vunpack.c.h.b16 %v462
  %v3087 = vunpack.c.l.b16 %v463
  %v3088 = vunpack.c.h.b16 %v463
  %v3089 = vunpack.c.l.b16 %v464
  %v3090 = vunpack.c.h.b16 %v464
  %v3091 = vunpack.c.l.b16 %v465
  %v3092 = vunpack.c.h.b16 %v465
  %v3093 = vunpack.c.l.b16 %v466
  %v3094 = vunpack.c.h.b16 %v466
  %v3095 = vunpack.c.l.b16 %v467
  %v3096 = vunpack.c.h.b16 %v467
  %v3097 = vunpack.c.l.b16 %v468
  %v3098 = vunpack.c.h.b16 %v468
  %v3099 = vunpack.c.l.b16 %v469
  %v3100 = vunpack.c.h.b16 %v469
  %v3101 = vunpack.c.l.b16 %v470
  %v3102 = vunpack.c.h.b16 %v470
  %v3103 = vunpack.c.l.b16 %v471
  %v3104 = vunpack.c.h.b16 %v471
  %v3105 = vunpack.c.l.b16 %v472
  %v3106 = vunpack.c.h.b16 %v472
  %v3107 = vunpack.c.l.b16 %v473
  %v3108 = vunpack.c.h.b16 %v473
  %v3109 = vunpack.c.l.b16 %v474
  %v3110 = vunpack.c.h.b16 %v474
  %v3111 = vunpack.c.l.b16 %v475
  %v3112 = vunpack.c.h.b16 %v475
  %v3113 = vunpack.c.l.b16 %v476
  %v3114 = vunpack.c.h.b16 %v476
  %v3115 = vunpack.c.l.b16 %v477
  %v3116 = vunpack.c.h.b16 %v477
  %v3117 = vunpack.c.l.b16 %v478
  %v3118 = vunpack.c.h.b16 %v478
  %v3119 = vunpack.c.l.b16 %v479
  %v3120 = vunpack.c.h.b16 %v479
  %v3121 = vunpack.c.l.b16 %v480
  %v3122 = vunpack.c.h.b16 %v480
  %v3123 = vunpack.c.l.b16 %v481
  %v3124 = vunpack.c.h.b16 %v481
  %v3125 = vunpack.c.l.b16 %v482
  %v3126 = vunpack.c.h.b16 %v482
  %v3127 = vunpack.c.l.b16 %v483
  %v3128 = vunpack.c.h.b16 %v483
  %v3129 = vunpack.c.l.b16 %v484
  %v3130 = vunpack.c.h.b16 %v484
  %v3131 = vunpack.c.l.b16 %v485
  %v3132 = vunpack.c.h.b16 %v485
  %v3133 = vunpack.c.l.b16 %v486
  %v3134 = vunpack.c.h.b16 %v486
  %v3135 = vunpack.c.l.b16 %v487
  %v3136 = vunpack.c.h.b16 %v487
  %v3137 = vunpack.c.l.b16 %v488
  %v3138 = vunpack.c.h.b16 %v488
  %v3139 = vunpack.c.l.b16 %v489
  %v3140 = vunpack.c.h.b16 %v489
  %v3141 = vunpack.c.l.b16 %v490
  %v3142 = vunpack.c.h.b16 %v490
  %v3143 = vunpack.c.l.b16 %v491
  %v3144 = vunpack.c.h.b16 %v491
  %v3145 = vunpack.c.l.b16 %v492
  %v3146 = vunpack.c.h.b16 %v492
  %v3147 = vunpack.c.l.b16 %v493
  %v3148 = vunpack.c.h.b16 %v493
  %v3149 = vunpack.c.l.b16 %v494
  %v3150 = vunpack.c.h.b16 %v494
  %v3151 = vunpack.c.l.b16 %v495
  %v3152 = vunpack.c.h.b16 %v495
  %v3153 = vunpack.c.l.b16 %v496
  %v3154 = vunpack.c.h.b16 %v496
  %v3155 = vunpack.c.l.b16 %v497
  %v3156 = vunpack.c.h.b16 %v497
  %v3157 = vunpack.c.l.b16 %v498
  %v3158 = vunpack.c.h.b16 %v498
  %v3159 = vunpack.c.l.b16 %v499
  %v3160 = vunpack.c.h.b16 %v499
  %v3161 = vunpack.c.l.b16 %v500
  %v3162 = vunpack.c.h.b16 %v500
  %v3163 = vunpack.c.l.b16 %v501
  %v3164 = vunpack.c.h.b16 %v501
  %v3165 = vunpack.c.l.b16 %v502
  %v3166 = vunpack.c.h.b16 %v502
  %v3167 = vunpack.c.l.b16 %v503
  %v3168 = vunpack.c.h.b16 %v503
  %v3169 = vunpack.c.l.b16 %v504
  %v3170 = vunpack.c.h.b16 %v504
  %v3171 = vunpack.c.l.b16 %v505
  %v3172 = vunpack.c.h.b16 %v505
  %v3173 = vunpack.c.l.b16 %v506
  %v3174 = vunpack.c.h.b16 %v506
  %v3175 = vunpack.c.l.b16 %v507
  %v3176 = vunpack.c.h.b16 %v507
  %v3177 = vunpack.c.l.b16 %v508
  %v3178 = vunpack.c.h.b16 %v508
  %v3179 = vunpack.c.l.b16 %v509
  %v3180 = vunpack.c.h.b16 %v509
  %v3181 = vunpack.c.l.b16 %v510
  %v3182 = vunpack.c.h.b16 %v510
  %v3183 = vunpack.c.l.b16 %v511
  %v3184 = vunpack.c.h.b16 %v511
  %v3185 = vunpack.c.l.b16 %v512
  %v3186 = vunpack.c.h.b16 %v512
  %v3187 = vunpack.c.l.b16 %v513
  %v3188 = vunpack.c.h.b16 %v513
  %v3189 = vunpack.c.l.b16 %v514
  %v3190 = vunpack.c.h.b16 %v514
  %v3191 = vunpack.c.l.b16 %v515
  %v3192 = vunpack.c.h.b16 %v515
  %v3193 = vunpack.c.l.b16 %v516
  %v3194 = vunpack.c.h.b16 %v516
  %v3195 = vunpack.c.l.b16 %v517
  %v3196 = vunpack.c.h.b16 %v517
  %v3197 = vunpack.c.l.b16 %v518
  %v3198 = vunpack.c.h.b16 %v518
  %v3199 = vunpack.c.l.b16 %v519
  %v3200 = vunpack.c.h.b16 %v519
  %v3201 = vunpack.c.l.b16 %v520
  %v3202 = vunpack.c.h.b16 %v520
  %v3203 = vunpack.c.l.b16 %v521
  %v3204 = vunpack.c.h.b16 %v521
  %v3205 = vunpack.c.l.b16 %v522
  %v3206 = vunpack.c.h.b16 %v522
  %v3207 = vunpack.c.l.b16 %v523
  %v3208 = vunpack.c.h.b16 %v523
  %v3209 = vunpack.c.l.b16 %v524
  %v3210 = vunpack.c.h.b16 %v524
  %v3211 = vunpack.c.l.b16 %v525
  %v3212 = vunpack.c.h.b16 %v525
  %v3213 = vunpack.c.l.b16 %v526
  %v3214 = vunpack.c.h.b16 %v526
  %v3215 = vunpack.c.l.b16 %v527
  %v3216 = vunpack.c.h.b16 %v527
  %v3217 = vunpack.c.l.b16 %v528
  %v3218 = vunpack.c.h.b16 %v528
  %v3219 = vunpack.c.l.b16 %v529
  %v3220 = vunpack.c.h.b16 %v529
  %v3221 = vunpack.c.l.b16 %v530
  %v3222 = vunpack.c.h.b16 %v530
  %v3223 = vunpack.c.l.b16 %v531
  %v3224 = vunpack.c.h.b16 %v531
  %v3225 = vunpack.c.l.b16 %v532
  %v3226 = vunpack.c.h.b16 %v532
  %v3227 = vunpack.c.l.b16 %v533
  %v3228 = vunpack.c.h.b16 %v533
  %v3229 = vunpack.c.l.b16 %v534
  %v3230 = vunpack.c.h.b16 %v534
  %v3231 = vunpack.c.l.b16 %v535
  %v3232 = vunpack.c.h.b16 %v535
  %v3233 = vunpack.c.l.b16 %v536
  %v3234 = vunpack.c.h.b16 %v536
  %v3235 = vunpack.c.l.b16 %v537
  %v3236 = vunpack.c.h.b16 %v537
  %v3237 = vunpack.c.l.b16 %v538
  %v3238 = vunpack.c.h.b16 %v538
  %v3239 = vunpack.c.l.b16 %v539
  %v3240 = vunpack.c.h.b16 %v539
  %v3241 = vunpack.c.l.b16 %v540
  %v3242 = vunpack.c.h.b16 %v540
  %v3243 = vunpack.c.l.b16 %v541
  %v3244 = vunpack.c.h.b16 %v541
  %v3245 = vunpack.c.l.b16 %v542
  %v3246 = vunpack.c.h.b16 %v542
  %v3247 = vunpack.c.l.b16 %v543
  %v3248 = vunpack.c.h.b16 %v543
  %v3249 = vunpack.c.l.b16 %v544
  %v3250 = vunpack.c.h.b16 %v544
  %v3251 = vunpack.c.l.b16 %v545
  %v3252 = vunpack.c.h.b16 %v545
  %v3253 = vunpack.c.l.b16 %v546
  %v3254 = vunpack.c.h.b16 %v546
  %v3255 = vunpack.c.l.b16 %v547
  %v3256 = vunpack.c.h.b16 %v547
  %v3257 = vunpack.c.l.b16 %v548
  %v3258 = vunpack.c.h.b16 %v548
  %v3259 = vunpack.c.l.b16 %v549
  %v3260 = vunpack.c.h.b16 %v549
  %v3261 = vunpack.c.l.b16 %v550
  %v3262 = vunpack.c.h.b16 %v550
  %v3263 = vunpack.c.l.b16 %v551
  %v3264 = vunpack.c.h.b16 %v551
  %v3265 = vunpack.c.l.b16 %v552
  %v3266 = vunpack.c.h.b16 %v552
  %v3267 = vunpack.c.l.b16 %v553
  %v3268 = vunpack.c.h.b16 %v553
  %v3269 = vunpack.c.l.b16 %v554
  %v3270 = vunpack.c.h.b16 %v554
  %v3271 = vunpack.c.l.b16 %v555
  %v3272 = vunpack.c.h.b16 %v555
  %v3273 = vunpack.c.l.b16 %v556
  %v3274 = vunpack.c.h.b16 %v556
  %v3275 = vunpack.c.l.b16 %v557
  %v3276 = vunpack.c.h.b16 %v557
  %v3277 = vunpack.c.l.b16 %v558
  %v3278 = vunpack.c.h.b16 %v558
  %v3279 = vunpack.c.l.b16 %v559
  %v3280 = vunpack.c.h.b16 %v559
  %v3281 = vunpack.c.l.b16 %v560
  %v3282 = vunpack.c.h.b16 %v560
  %v3283 = vunpack.c.l.b16 %v561
  %v3284 = vunpack.c.h.b16 %v561
  %v3285 = vunpack.c.l.b16 %v562
  %v3286 = vunpack.c.h.b16 %v562
  %v3287 = vunpack.c.l.b16 %v563
  %v3288 = vunpack.c.h.b16 %v563
  %v3289 = vunpack.c.l.b16 %v564
  %v3290 = vunpack.c.h.b16 %v564
  %v3291 = vunpack.c.l.b16 %v565
  %v3292 = vunpack.c.h.b16 %v565
  %v3293 = vunpack.c.l.b16 %v566
  %v3294 = vunpack.c.h.b16 %v566
  %v3295 = vunpack.c.l.b16 %v567
  %v3296 = vunpack.c.h.b16 %v567
  %v3297 = vunpack.c.l.b16 %v568
  %v3298 = vunpack.c.h.b16 %v568
  %v3299 = vunpack.c.l.b16 %v569
  %v3300 = vunpack.c.h.b16 %v569
  %v3301 = vunpack.c.l.b16 %v570
  %v3302 = vunpack.c.h.b16 %v570
  %v3303 = vunpack.c.l.b16 %v571
  %v3304 = vunpack.c.h.b16 %v571
  %v3305 = vunpack.c.l.b16 %v572
  %v3306 = vunpack.c.h.b16 %v572
  %v3307 = vunpack.c.l.b16 %v573
  %v3308 = vunpack.c.h.b16 %v573
  %v3309 = vunpack.c.l.b16 %v574
  %v3310 = vunpack.c.h.b16 %v574
  %v3311 = vunpack.c.l.b16 %v575
  %v3312 = vunpack.c.h.b16 %v575
  %v3313 = vunpack.c.l.b16 %v576
  %v3314 = vunpack.c.h.b16 %v576
  %v3315 = vunpack.c.l.b16 %v577
  %v3316 = vunpack.c.h.b16 %v577
  %v3317 = vunpack.c.l.b16 %v578
  %v3318 = vunpack.c.h.b16 %v578
  %v3319 = vunpack.c.l.b16 %v579
  %v3320 = vunpack.c.h.b16 %v579
  %v3321 = vunpack.c.l.b16 %v580
  %v3322 = vunpack.c.h.b16 %v580
  %v3323 = vunpack.c.l.b16 %v581
  %v3324 = vunpack.c.h.b16 %v581
  %v3325 = vunpack.c.l.b16 %v582
  %v3326 = vunpack.c.h.b16 %v582
  %v3327 = vunpack.c.l.b16 %v583
  %v3328 = vunpack.c.h.b16 %v583
  %v3329 = vunpack.c.l.b16 %v584
  %v3330 = vunpack.c.h.b16 %v584
  %v3331 = vunpack.c.l.b16 %v585
  %v3332 = vunpack.c.h.b16 %v585
  %v3333 = vunpack.c.l.b16 %v586
  %v3334 = vunpack.c.h.b16 %v586
  %v3335 = vunpack.c.l.b16 %v587
  %v3336 = vunpack.c.h.b16 %v587
  %v3337 = vunpack.c.l.b16 %v588
  %v3338 = vunpack.c.h.b16 %v588
  %v3339 = vunpack.c.l.b16 %v589
  %v3340 = vunpack.c.h.b16 %v589
  %v3341 = vunpack.c.l.b16 %v590
  %v3342 = vunpack.c.h.b16 %v590
  %v3343 = vunpack.c.l.b16 %v591
  %v3344 = vunpack.c.h.b16 %v591
  %v3345 = vunpack.c.l.b16 %v592
  %v3346 = vunpack.c.h.b16 %v592
  %v3347 = vunpack.c.l.b16 %v593
  %v3348 = vunpack.c.h.b16 %v593
  %v3349 = vunpack.c.l.b16 %v594
  %v3350 = vunpack.c.h.b16 %v594
  %v3351 = vunpack.c.l.b16 %v595
  %v3352 = vunpack.c.h.b16 %v595
  %v3353 = vunpack.c.l.b16 %v596
  %v3354 = vunpack.c.h.b16 %v596
  %v3355 = vunpack.c.l.b16 %v597
  %v3356 = vunpack.c.h.b16 %v597
  %v3357 = vunpack.c.l.b16 %v598
  %v3358 = vunpack.c.h.b16 %v598
  %v3359 = vunpack.c.l.b16 %v599
  %v3360 = vunpack.c.h.b16 %v599
  %v3361 = vunpack.c.l.b16 %v600
  %v3362 = vunpack.c.h.b16 %v600
  %v3363 = vunpack.c.l.b16 %v601
  %v3364 = vunpack.c.h.b16 %v601
  %v3365 = vunpack.c.l.b16 %v602
  %v3366 = vunpack.c.h.b16 %v602
  %v3367 = vunpack.c.l.b16 %v603
  %v3368 = vunpack.c.h.b16 %v603
  %v3369 = vunpack.c.l.b16 %v604
  %v3370 = vunpack.c.h.b16 %v604
  %v3371 = vunpack.c.l.b16 %v605
  %v3372 = vunpack.c.h.b16 %v605
  %v3373 = vunpack.c.l.b16 %v606
  %v3374 = vunpack.c.h.b16 %v606
  %v3375 = vunpack.c.l.b16 %v607
  %v3376 = vunpack.c.h.b16 %v607
  %v3377 = vunpack.c.l.b16 %v608
  %v3378 = vunpack.c.h.b16 %v608
  %v3379 = vunpack.c.l.b16 %v609
  %v3380 = vunpack.c.h.b16 %v609
  %v3381 = vunpack.c.l.b16 %v610
  %v3382 = vunpack.c.h.b16 %v610
  %v3383 = vunpack.c.l.b16 %v611
  %v3384 = vunpack.c.h.b16 %v611
  %v3385 = vunpack.c.l.b16 %v612
  %v3386 = vunpack.c.h.b16 %v612
  %v3387 = vunpack.c.l.b16 %v613
  %v3388 = vunpack.c.h.b16 %v613
  %v3389 = vunpack.c.l.b16 %v614
  %v3390 = vunpack.c.h.b16 %v614
  %v3391 = vunpack.c.l.b16 %v615
  %v3392 = vunpack.c.h.b16 %v615
  %v3393 = vunpack.c.l.b16 %v616
  %v3394 = vunpack.c.h.b16 %v616
  %v3395 = vunpack.c.l.b16 %v617
  %v3396 = vunpack.c.h.b16 %v617
  %v3397 = vunpack.c.l.b16 %v618
  %v3398 = vunpack.c.h.b16 %v618
  %v3399 = vunpack.c.l.b16 %v619
  %v3400 = vunpack.c.h.b16 %v619
  %v3401 = vunpack.c.l.b16 %v620
  %v3402 = vunpack.c.h.b16 %v620
  %v3403 = vunpack.c.l.b16 %v621
  %v3404 = vunpack.c.h.b16 %v621
  %v3405 = vunpack.c.l.b16 %v622
  %v3406 = vunpack.c.h.b16 %v622
  %v3407 = vunpack.c.l.b16 %v623
  %v3408 = vunpack.c.h.b16 %v623
  %v3409 = vunpack.c.l.b16 %v624
  %v3410 = vunpack.c.h.b16 %v624
  %v3411 = vunpack.c.l.b16 %v625
  %v3412 = vunpack.c.h.b16 %v625
  %v3413 = vunpack.c.l.b16 %v626
  %v3414 = vunpack.c.h.b16 %v626
  %v3415 = vunpack.c.l.b16 %v627
  %v3416 = vunpack.c.h.b16 %v627
  %v3417 = vunpack.c.l.b16 %v628
  %v3418 = vunpack.c.h.b16 %v628
  %v3419 = vunpack.c.l.b16 %v629
  %v3420 = vunpack.c.h.b16 %v629
  %v3421 = vunpack.c.l.b16 %v630
  %v3422 = vunpack.c.h.b16 %v630
  %v3423 = vunpack.c.l.b16 %v631
  %v3424 = vunpack.c.h.b16 %v631
  %v3425 = vunpack.c.l.b16 %v632
  %v3426 = vunpack.c.h.b16 %v632
  %v3427 = vunpack.c.l.b16 %v633
  %v3428 = vunpack.c.h.b16 %v633
  %v3429 = vunpack.c.l.b16 %v634
  %v3430 = vunpack.c.h.b16 %v634
  %v3431 = vunpack.c.l.b16 %v635
  %v3432 = vunpack.c.h.b16 %v635
  %v3433 = vunpack.c.l.b16 %v636
  %v3434 = vunpack.c.h.b16 %v636
  %v3435 = vunpack.c.l.b16 %v637
  %v3436 = vunpack.c.h.b16 %v637
  %v3437 = vunpack.c.l.b16 %v638
  %v3438 = vunpack.c.h.b16 %v638
  %v3439 = vunpack.c.l.b16 %v639
  %v3440 = vunpack.c.h.b16 %v639
  %v3441 = vunpack.c.l.b16 %v640
  %v3442 = vunpack.c.h.b16 %v640
  %v3443 = vunpack.c.l.b16 %v641
  %v3444 = vunpack.c.h.b16 %v641
  %v3445 = vunpack.c.l.b16 %v642
  %v3446 = vunpack.c.h.b16 %v642
  %v3447 = vunpack.c.l.b16 %v643
  %v3448 = vunpack.c.h.b16 %v643
  %v3449 = vunpack.c.l.b16 %v644
  %v3450 = vunpack.c.h.b16 %v644
  %v3451 = vunpack.c.l.b16 %v645
  %v3452 = vunpack.c.h.b16 %v645
  %v3453 = vunpack.c.l.b16 %v646
  %v3454 = vunpack.c.h.b16 %v646
  %v3455 = vunpack.c.l.b16 %v647
  %v3456 = vunpack.c.h.b16 %v647
  %v3457 = vunpack.c.l.b16 %v648
  %v3458 = vunpack.c.h.b16 %v648
  %v3459 = vunpack.c.l.b16 %v649
  %v3460 = vunpack.c.h.b16 %v649
  %v3461 = vunpack.c.l.b16 %v650
  %v3462 = vunpack.c.h.b16 %v650
  %v3463 = vunpack.c.l.b16 %v651
  %v3464 = vunpack.c.h.b16 %v651
  %v3465 = vunpack.c.l.b16 %v652
  %v3466 = vunpack.c.h.b16 %v652
  %v3467 = vunpack.c.l.b16 %v653
  %v3468 = vunpack.c.h.b16 %v653
  %v3469 = vunpack.c.l.b16 %v654
  %v3470 = vunpack.c.h.b16 %v654
  %v3471 = vunpack.c.l.b16 %v655
  %v3472 = vunpack.c.h.b16 %v655
  %v3473 = vunpack.c.l.b16 %v656
  %v3474 = vunpack.c.h.b16 %v656
  %v3475 = vunpack.c.l.b16 %v657
  %v3476 = vunpack.c.h.b16 %v657
  %v3477 = vunpack.c.l.b16 %v658
  %v3478 = vunpack.c.h.b16 %v658
  %v3479 = vunpack.c.l.b16 %v659
  %v3480 = vunpack.c.h.b16 %v659
  %v3481 = vunpack.c.l.b16 %v660
  %v3482 = vunpack.c.h.b16 %v660
  %v3483 = vunpack.c.l.b16 %v661
  %v3484 = vunpack.c.h.b16 %v661
  %v3485 = vunpack.c.l.b16 %v662
  %v3486 = vunpack.c.h.b16 %v662
  %v3487 = vunpack.c.l.b16 %v663
  %v3488 = vunpack.c.h.b16 %v663
  %v3489 = vunpack.c.l.b16 %v664
  %v3490 = vunpack.c.h.b16 %v664
  %v3491 = vunpack.c.l.b16 %v665
  %v3492 = vunpack.c.h.b16 %v665
  %v3493 = vunpack.c.l.b16 %v666
  %v3494 = vunpack.c.h.b16 %v666
  %v3495 = vunpack.c.l.b16 %v667
  %v3496 = vunpack.c.h.b16 %v667
  %v3497 = vunpack.c.l.b16 %v668
  %v3498 = vunpack.c.h.b16 %v668
  %v3499 = vunpack.c.l.b16 %v669
  %v3500 = vunpack.c.h.b16 %v669
  %v3501 = vunpack.c.l.b16 %v670
  %v3502 = vunpack.c.h.b16 %v670
  %v3503 = vunpack.c.l.b16 %v671
  %v3504 = vunpack.c.h.b16 %v671
  %v3505 = vunpack.c.l.b16 %v672
  %v3506 = vunpack.c.h.b16 %v672
  %v3507 = vunpack.c.l.b16 %v673
  %v3508 = vunpack.c.h.b16 %v673
  %v3509 = vunpack.c.l.b16 %v674
  %v3510 = vunpack.c.h.b16 %v674
  %v3511 = vunpack.c.l.b16 %v675
  %v3512 = vunpack.c.h.b16 %v675
  %v3513 = vunpack.c.l.b16 %v676
  %v3514 = vunpack.c.h.b16 %v676
  %v3515 = vunpack.c.l.b16 %v677
  %v3516 = vunpack.c.h.b16 %v677
  %v3517 = vunpack.c.l.b16 %v678
  %v3518 = vunpack.c.h.b16 %v678
  %v3519 = vunpack.c.l.b16 %v679
  %v3520 = vunpack.c.h.b16 %v679
  %v3521 = vunpack.c.l.b16 %v680
  %v3522 = vunpack.c.h.b16 %v680
  %v3523 = vunpack.c.l.b16 %v681
  %v3524 = vunpack.c.h.b16 %v681
  %v3525 = vunpack.c.l.b16 %v682
  %v3526 = vunpack.c.h.b16 %v682
  %v3527 = vunpack.c.l.b16 %v683
  %v3528 = vunpack.c.h.b16 %v683
  %v3529 = vunpack.c.l.b16 %v684
  %v3530 = vunpack.c.h.b16 %v684
  %v3531 = vunpack.c.l.b16 %v685
  %v3532 = vunpack.c.h.b16 %v685
  %v3533 = vunpack.c.l.b16 %v686
  %v3534 = vunpack.c.h.b16 %v686
  %v3535 = vunpack.c.l.b16 %v687
  %v3536 = vunpack.c.h.b16 %v687
  %v3537 = vunpack.c.l.b16 %v688
  %v3538 = vunpack.c.h.b16 %v688
  %v3539 = vunpack.c.l.b16 %v689
  %v3540 = vunpack.c.h.b16 %v689
  %v3541 = vunpack.c.l.b16 %v690
  %v3542 = vunpack.c.h.b16 %v690
  %v3543 = vunpack.c.l.b16 %v691
  %v3544 = vunpack.c.h.b16 %v691
  %v3545 = vunpack.c.l.b16 %v692
  %v3546 = vunpack.c.h.b16 %v692
  %v3547 = vunpack.c.l.b16 %v693
  %v3548 = vunpack.c.h.b16 %v693
  %v3549 = vunpack.c.l.b16 %v694
  %v3550 = vunpack.c.h.b16 %v694
  %v3551 = vunpack.c.l.b16 %v695
  %v3552 = vunpack.c.h.b16 %v695
  %v3553 = vunpack.c.l.b16 %v696
  %v3554 = vunpack.c.h.b16 %v696
  %v3555 = vunpack.c.l.b16 %v697
  %v3556 = vunpack.c.h.b16 %v697
  %v3557 = vunpack.c.l.b16 %v698
  %v3558 = vunpack.c.h.b16 %v698
  %v3559 = vunpack.c.l.b16 %v699
  %v3560 = vunpack.c.h.b16 %v699
  %v3561 = vunpack.c.l.b16 %v700
  %v3562 = vunpack.c.h.b16 %v700
  %v3563 = vunpack.c.l.b16 %v701
  %v3564 = vunpack.c.h.b16 %v701
  %v3565 = vunpack.c.l.b16 %v702
  %v3566 = vunpack.c.h.b16 %v702
  %v3567 = vunpack.c.l.b16 %v703
  %v3568 = vunpack.c.h.b16 %v703
  %v3569 = vunpack.c.l.b16 %v704
  %v3570 = vunpack.c.h.b16 %v704
  %v3571 = vunpack.c.l.b16 %v705
  %v3572 = vunpack.c.h.b16 %v705
  %v3573 = vunpack.c.l.b16 %v706
  %v3574 = vunpack.c.h.b16 %v706
  %v3575 = vunpack.c.l.b16 %v707
  %v3576 = vunpack.c.h.b16 %v707
  %v3577 = vunpack.c.l.b16 %v708
  %v3578 = vunpack.c.h.b16 %v708
  %v3579 = vunpack.c.l.b16 %v709
  %v3580 = vunpack.c.h.b16 %v709
  %v3581 = vunpack.c.l.b16 %v710
  %v3582 = vunpack.c.h.b16 %v710
  %v3583 = vunpack.c.l.b16 %v711
  %v3584 = vunpack.c.h.b16 %v711
  %v3585 = vunpack.c.l.b16 %v712
  %v3586 = vunpack.c.h.b16 %v712
  %v3587 = vunpack.c.l.b16 %v713
  %v3588 = vunpack.c.h.b16 %v713
  %v3589 = vunpack.c.l.b16 %v714
  %v3590 = vunpack.c.h.b16 %v714
  %v3591 = vunpack.c.l.b16 %v715
  %v3592 = vunpack.c.h.b16 %v715
  %v3593 = vunpack.c.l.b16 %v716
  %v3594 = vunpack.c.h.b16 %v716
  %v3595 = vunpack.c.l.b16 %v717
  %v3596 = vunpack.c.h.b16 %v717
  %v3597 = vunpack.c.l.b16 %v718
  %v3598 = vunpack.c.h.b16 %v718
  %v3599 = vunpack.c.l.b16 %v719
  %v3600 = vunpack.c.h.b16 %v719
  %v3601 = vunpack.c.l.b16 %v720
  %v3602 = vunpack.c.h.b16 %v720
  %v3603 = vunpack.c.l.b16 %v721
  %v3604 = vunpack.c.h.b16 %v721
  %v3605 = vunpack.c.l.b16 %v722
  %v3606 = vunpack.c.h.b16 %v722
  %v3607 = vunpack.c.l.b16 %v723
  %v3608 = vunpack.c.h.b16 %v723
  %v3609 = vunpack.c.l.b16 %v724
  %v3610 = vunpack.c.h.b16 %v724
  %v3611 = vunpack.c.l.b16 %v725
  %v3612 = vunpack.c.h.b16 %v725
  %v3613 = vunpack.c.l.b16 %v726
  %v3614 = vunpack.c.h.b16 %v726
  %v3615 = vunpack.c.l.b16 %v727
  %v3616 = vunpack.c.h.b16 %v727
  %v3617 = vunpack.c.l.b16 %v728
  %v3618 = vunpack.c.h.b16 %v728
  %v3619 = vunpack.c.l.b16 %v729
  %v3620 = vunpack.c.h.b16 %v729
  %v3621 = vunpack.c.l.b16 %v730
  %v3622 = vunpack.c.h.b16 %v730
  %v3623 = vunpack.c.l.b16 %v731
  %v3624 = vunpack.c.h.b16 %v731
  %v3625 = vunpack.c.l.b16 %v732
  %v3626 = vunpack.c.h.b16 %v732
  %v3627 = vunpack.c.l.b16 %v733
  %v3628 = vunpack.c.h.b16 %v733
  %v3629 = vunpack.c.l.b16 %v734
  %v3630 = vunpack.c.h.b16 %v734
  %v3631 = vunpack.c.l.b16 %v735
  %v3632 = vunpack.c.h.b16 %v735
  %v3633 = vunpack.c.l.b16 %v736
  %v3634 = vunpack.c.h.b16 %v736
  %v3635 = vunpack.c.l.b16 %v737
  %v3636 = vunpack.c.h.b16 %v737
  %v3637 = vunpack.c.l.b16 %v738
  %v3638 = vunpack.c.h.b16 %v738
  %v3639 = vunpack.c.l.b16 %v739
  %v3640 = vunpack.c.h.b16 %v739
  %v3641 = vunpack.c.l.b16 %v740
  %v3642 = vunpack.c.h.b16 %v740
  %v3643 = vunpack.c.l.b16 %v741
  %v3644 = vunpack.c.h.b16 %v741
  %v3645 = vunpack.c.l.b16 %v742
  %v3646 = vunpack.c.h.b16 %v742
  %v3647 = vunpack.c.l.b16 %v743
  %v3648 = vunpack.c.h.b16 %v743
  %v3649 = vunpack.c.l.b16 %v744
  %v3650 = vunpack.c.h.b16 %v744
  %v3651 = vunpack.c.l.b16 %v745
  %v3652 = vunpack.c.h.b16 %v745
  %v3653 = vunpack.c.l.b16 %v746
  %v3654 = vunpack.c.h.b16 %v746
  %v3655 = vunpack.c.l.b16 %v747
  %v3656 = vunpack.c.h.b16 %v747
  %v3657 = vunpack.c.l.b16 %v748
  %v3658 = vunpack.c.h.b16 %v748
  %v3659 = vunpack.c.l.b16 %v749
  %v3660 = vunpack.c.h.b16 %v749
  %v3661 = vunpack.c.l.b16 %v750
  %v3662 = vunpack.c.h.b16 %v750
  %v3663 = vunpack.c.l.b16 %v751
  %v3664 = vunpack.c.h.b16 %v751
  %v3665 = vunpack.c.l.b16 %v752
  %v3666 = vunpack.c.h.b16 %v752
  %v3667 = vunpack.c.l.b16 %v753
  %v3668 = vunpack.c.h.b16 %v753
  %v3669 = vunpack.c.l.b16 %v754
  %v3670 = vunpack.c.h.b16 %v754
  %v3671 = vunpack.c.l.b16 %v755
  %v3672 = vunpack.c.h.b16 %v755
  %v3673 = vunpack.c.l.b16 %v756
  %v3674 = vunpack.c.h.b16 %v756
  %v3675 = vunpack.c.l.b16 %v757
  %v3676 = vunpack.c.h.b16 %v757
  %v3677 = vunpack.c.l.b16 %v758
  %v3678 = vunpack.c.h.b16 %v758
  %v3679 = vunpack.c.l.b16 %v759
  %v3680 = vunpack.c.h.b16 %v759
  %v3681 = vunpack.c.l.b16 %v760
  %v3682 = vunpack.c.h.b16 %v760
  %v3683 = vunpack.c.l.b16 %v761
  %v3684 = vunpack.c.h.b16 %v761
  %v3685 = vunpack.c.l.b16 %v762
  %v3686 = vunpack.c.h.b16 %v762
  %v3687 = vunpack.c.l.b16 %v763
  %v3688 = vunpack.c.h.b16 %v763
  %v3689 = vunpack.c.l.b16 %v764
  %v3690 = vunpack.c.h.b16 %v764
  %v3691 = vunpack.c.l.b16 %v765
  %v3692 = vunpack.c.h.b16 %v765
  %v3693 = vunpack.c.l.b16 %v766
  %v3694 = vunpack.c.h.b16 %v766
  %v3695 = vunpack.c.l.b16 %v767
  %v3696 = vunpack.c.h.b16 %v767
  %v3697 = vunpack.c.l.b16 %v768
  %v3698 = vunpack.c.h.b16 %v768
  %v3699 = vunpack.c.l.b16 %v769
  %v3700 = vunpack.c.h.b16 %v769
  %v3701 = vunpack.c.l.b16 %v770
  %v3702 = vunpack.c.h.b16 %v770
  %v3703 = vunpack.c.l.b16 %v771
  %v3704 = vunpack.c.h.b16 %v771
  %v3705 = vunpack.c.l.b16 %v772
  %v3706 = vunpack.c.h.b16 %v772
  %v3707 = vunpack.c.l.b16 %v773
  %v3708 = vunpack.c.h.b16 %v773
  %v3709 = vunpack.c.l.b16 %v774
  %v3710 = vunpack.c.h.b16 %v774
  %v3711 = vunpack.c.l.b16 %v775
  %v3712 = vunpack.c.h.b16 %v775
  %v3713 = vunpack.c.l.b16 %v776
  %v3714 = vunpack.c.h.b16 %v776
  %v3715 = vunpack.c.l.b16 %v777
  %v3716 = vunpack.c.h.b16 %v777
  %v3717 = vunpack.c.l.b16 %v778
  %v3718 = vunpack.c.h.b16 %v778
  %v3719 = vunpack.c.l.b16 %v779
  %v3720 = vunpack.c.h.b16 %v779
  %v3721 = vunpack.c.l.b16 %v780
  %v3722 = vunpack.c.h.b16 %v780
  %v3723 = vunpack.c.l.b16 %v781
  %v3724 = vunpack.c.h.b16 %v781
  %v3725 = vunpack.c.l.b16 %v782
  %v3726 = vunpack.c.h.b16 %v782
  %v3727 = vunpack.c.l.b16 %v783
  %v3728 = vunpack.c.h.b16 %v783
  %v3729 = vunpack.c.l.b16 %v784
  %v3730 = vunpack.c.h.b16 %v784
  %v3731 = vunpack.c.l.b16 %v785
  %v3732 = vunpack.c.h.b16 %v785
  %v3733 = vunpack.c.l.b16 %v786
  %v3734 = vunpack.c.h.b16 %v786
  %v3735 = vunpack.c.l.b16 %v787
  %v3736 = vunpack.c.h.b16 %v787
  %v3737 = vunpack.c.l.b16 %v788
  %v3738 = vunpack.c.h.b16 %v788
  %v3739 = vunpack.c.l.b16 %v789
  %v3740 = vunpack.c.h.b16 %v789
  %v3741 = vunpack.c.l.b16 %v790
  %v3742 = vunpack.c.h.b16 %v790
  %v3743 = vunpack.c.l.b16 %v791
  %v3744 = vunpack.c.h.b16 %v791
  %v3745 = vunpack.c.l.b16 %v792
  %v3746 = vunpack.c.h.b16 %v792
  %v3747 = vunpack.c.l.b16 %v793
  %v3748 = vunpack.c.h.b16 %v793
  %v3749 = vunpack.c.l.b16 %v794
  %v3750 = vunpack.c.h.b16 %v794
  %v3751 = vunpack.c.l.b16 %v795
  %v3752 = vunpack.c.h.b16 %v795
  %v3753 = vunpack.c.l.b16 %v796
  %v3754 = vunpack.c.h.b16 %v796
  %v3755 = vunpack.c.l.b16 %v797
  %v3756 = vunpack.c.h.b16 %v797
  %v3757 = vunpack.c.l.b16 %v798
  %v3758 = vunpack.c.h.b16 %v798
  %v3759 = vunpack.c.l.b16 %v799
  %v3760 = vunpack.c.h.b16 %v799
  %v3761 = vunpack.c.l.b16 %v800
  %v3762 = vunpack.c.h.b16 %v800
  %v3763 = vunpack.c.l.b16 %v801
  %v3764 = vunpack.c.h.b16 %v801
  %v3765 = vunpack.c.l.b16 %v802
  %v3766 = vunpack.c.h.b16 %v802
  %v3767 = vunpack.c.l.b16 %v803
  %v3768 = vunpack.c.h.b16 %v803
  %v3769 = vunpack.c.l.b16 %v804
  %v3770 = vunpack.c.h.b16 %v804
  %v3771 = vunpack.c.l.b16 %v805
  %v3772 = vunpack.c.h.b16 %v805
  %v3773 = vunpack.c.l.b16 %v806
  %v3774 = vunpack.c.h.b16 %v806
  %v3775 = vunpack.c.l.b16 %v807
  %v3776 = vunpack.c.h.b16 %v807
  %v3777 = vunpack.c.l.b16 %v808
  %v3778 = vunpack.c.h.b16 %v808
  %v3779 = vunpack.c.l.b16 %v809
  %v3780 = vunpack.c.h.b16 %v809
  %v3781 = vunpack.c.l.b16 %v810
  %v3782 = vunpack.c.h.b16 %v810
  %v3783 = vunpack.c.l.b16 %v811
  %v3784 = vunpack.c.h.b16 %v811
  %v3785 = vunpack.c.l.b16 %v812
  %v3786 = vunpack.c.h.b16 %v812
  %v3787 = vunpack.c.l.b16 %v813
  %v3788 = vunpack.c.h.b16 %v813
  %v3789 = vunpack.c.l.b16 %v814
  %v3790 = vunpack.c.h.b16 %v814
  %v3791 = vunpack.c.l.b16 %v815
  %v3792 = vunpack.c.h.b16 %v815
  %v3793 = vunpack.c.l.b16 %v816
  %v3794 = vunpack.c.h.b16 %v816
  %v3795 = vunpack.c.l.b16 %v817
  %v3796 = vunpack.c.h.b16 %v817
  %v3797 = vunpack.c.l.b16 %v818
  %v3798 = vunpack.c.h.b16 %v818
  %v3799 = vunpack.c.l.b16 %v819
  %v3800 = vunpack.c.h.b16 %v819
  %v3801 = vunpack.c.l.b16 %v820
  %v3802 = vunpack.c.h.b16 %v820
  %v3803 = vunpack.c.l.b16 %v821
  %v3804 = vunpack.c.h.b16 %v821
  %v3805 = vunpack.c.l.b16 %v822
  %v3806 = vunpack.c.h.b16 %v822
  %v3807 = vunpack.c.l.b16 %v823
  %v3808 = vunpack.c.h.b16 %v823
  %v3809 = vunpack.c.l.b16 %v824
  %v3810 = vunpack.c.h.b16 %v824
  %v3811 = vunpack.c.l.b16 %v825
  %v3812 = vunpack.c.h.b16 %v825
  %v3813 = vunpack.c.l.b16 %v826
  %v3814 = vunpack.c.h.b16 %v826
  %v3815 = vunpack.c.l.b16 %v827
  %v3816 = vunpack.c.h.b16 %v827
  %v3817 = vunpack.c.l.b16 %v828
  %v3818 = vunpack.c.h.b16 %v828
  %v3819 = vunpack.c.l.b16 %v829
  %v3820 = vunpack.c.h.b16 %v829
  %v3821 = vunpack.c.l.b16 %v830
  %v3822 = vunpack.c.h.b16 %v830
  %v3823 = vunpack.c.l.b16 %v831
  %v3824 = vunpack.c.h.b16 %v831
  %v3825 = vunpack.c.l.b16 %v832
  %v3826 = vunpack.c.h.b16 %v832
  %v3827 = vunpack.c.l.b16 %v833
  %v3828 = vunpack.c.h.b16 %v833
  %v3829 = vunpack.c.l.b16 %v834
  %v3830 = vunpack.c.h.b16 %v834
  %v3831 = vunpack.c.l.b16 %v835
  %v3832 = vunpack.c.h.b16 %v835
  %v3833 = vunpack.c.l.b16 %v836
  %v3834 = vunpack.c.h.b16 %v836
  %v3835 = vunpack.c.l.b16 %v837
  %v3836 = vunpack.c.h.b16 %v837
  %v3837 = vunpack.c.l.b16 %v838
  %v3838 = vunpack.c.h.b16 %v838
  %v3839 = vunpack.c.l.b16 %v839
  %v3840 = vunpack.c.h.b16 %v839
  %v3841 = vunpack.c.l.b16 %v840
  %v3842 = vunpack.c.h.b16 %v840
  %v3843 = vunpack.c.l.b16 %v841
  %v3844 = vunpack.c.h.b16 %v841
  %v3845 = vunpack.c.l.b16 %v842
  %v3846 = vunpack.c.h.b16 %v842
  %v3847 = vunpack.c.l.b16 %v843
  %v3848 = vunpack.c.h.b16 %v843
  %v3849 = vunpack.c.l.b16 %v844
  %v3850 = vunpack.c.h.b16 %v844
  %v3851 = vunpack.c.l.b16 %v845
  %v3852 = vunpack.c.h.b16 %v845
  %v3853 = vunpack.c.l.b16 %v846
  %v3854 = vunpack.c.h.b16 %v846
  %v3855 = vunpack.c.l.b16 %v847
  %v3856 = vunpack.c.h.b16 %v847
  %v3857 = vunpack.c.l.b16 %v848
  %v3858 = vunpack.c.h.b16 %v848
  %v3859 = vunpack.c.l.b16 %v849
  %v3860 = vunpack.c.h.b16 %v849
  %v3861 = vunpack.c.l.b16 %v850
  %v3862 = vunpack.c.h.b16 %v850
  %v3863 = vunpack.c.l.b16 %v851
  %v3864 = vunpack.c.h.b16 %v851
  %v3865 = vunpack.c.l.b16 %v852
  %v3866 = vunpack.c.h.b16 %v852
  %v3867 = vunpack.c.l.b16 %v853
  %v3868 = vunpack.c.h.b16 %v853
  %v3869 = vunpack.c.l.b16 %v854
  %v3870 = vunpack.c.h.b16 %v854
  %v3871 = vunpack.c.l.b16 %v855
  %v3872 = vunpack.c.h.b16 %v855
  %v3873 = vunpack.c.l.b16 %v856
  %v3874 = vunpack.c.h.b16 %v856
  %v3875 = vunpack.c.l.b16 %v857
  %v3876 = vunpack.c.h.b16 %v857
  %v3877 = vunpack.c.l.b16 %v858
  %v3878 = vunpack.c.h.b16 %v858
  %v3879 = vunpack.c.l.b16 %v859
  %v3880 = vunpack.c.h.b16 %v859
  %v3881 = vunpack.c.l.b16 %v860
  %v3882 = vunpack.c.h.b16 %v860
  %v3883 = vunpack.c.l.b16 %v861
  %v3884 = vunpack.c.h.b16 %v861
  %v3885 = vunpack.c.l.b16 %v862
  %v3886 = vunpack.c.h.b16 %v862
  %v3887 = vunpack.c.l.b16 %v863
  %v3888 = vunpack.c.h.b16 %v863
  %v3889 = vunpack.c.l.b16 %v864
  %v3890 = vunpack.c.h.b16 %v864
  %v3891 = vunpack.c.l.b16 %v865
  %v3892 = vunpack.c.h.b16 %v865
  %v3893 = vunpack.c.l.b16 %v866
  %v3894 = vunpack.c.h.b16 %v866
  %v3895 = vunpack.c.l.b16 %v867
  %v3896 = vunpack.c.h.b16 %v867
  %v3897 = vunpack.c.l.b16 %v868
  %v3898 = vunpack.c.h.b16 %v868
  %v3899 = vunpack.c.l.b16 %v869
  %v3900 = vunpack.c.h.b16 %v869
  %v3901 = vunpack.c.l.b16 %v870
  %v3902 = vunpack.c.h.b16 %v870
  %v3903 = vunpack.c.l.b16 %v871
  %v3904 = vunpack.c.h.b16 %v871
  %v3905 = vunpack.c.l.b16 %v872
  %v3906 = vunpack.c.h.b16 %v872
  %v3907 = vunpack.c.l.b16 %v873
  %v3908 = vunpack.c.h.b16 %v873
  %v3909 = vunpack.c.l.b16 %v874
  %v3910 = vunpack.c.h.b16 %v874
  %v3911 = vunpack.c.l.b16 %v875
  %v3912 = vunpack.c.h.b16 %v875
  %v3913 = vunpack.c.l.b16 %v876
  %v3914 = vunpack.c.h.b16 %v876
  %v3915 = vunpack.c.l.b16 %v877
  %v3916 = vunpack.c.h.b16 %v877
  %v3917 = vunpack.c.l.b16 %v878
  %v3918 = vunpack.c.h.b16 %v878
  %v3919 = vunpack.c.l.b16 %v879
  %v3920 = vunpack.c.h.b16 %v879
  %v3921 = vunpack.c.l.b16 %v880
  %v3922 = vunpack.c.h.b16 %v880
  %v3923 = vunpack.c.l.b16 %v881
  %v3924 = vunpack.c.h.b16 %v881
  %v3925 = vunpack.c.l.b16 %v882
  %v3926 = vunpack.c.h.b16 %v882
  %v3927 = vunpack.c.l.b16 %v883
  %v3928 = vunpack.c.h.b16 %v883
  %v3929 = vunpack.c.l.b16 %v884
  %v3930 = vunpack.c.h.b16 %v884
  %v3931 = vunpack.c.l.b16 %v885
  %v3932 = vunpack.c.h.b16 %v885
  %v3933 = vunpack.c.l.b16 %v886
  %v3934 = vunpack.c.h.b16 %v886
  %v3935 = vunpack.c.l.b16 %v887
  %v3936 = vunpack.c.h.b16 %v887
  %v3937 = vunpack.c.l.b16 %v888
  %v3938 = vunpack.c.h.b16 %v888
  %v3939 = vunpack.c.l.b16 %v889
  %v3940 = vunpack.c.h.b16 %v889
  %v3941 = vunpack.c.l.b16 %v890
  %v3942 = vunpack.c.h.b16 %v890
  %v3943 = vunpack.c.l.b16 %v891
  %v3944 = vunpack.c.h.b16 %v891
  %v3945 = vunpack.c.l.b16 %v892
  %v3946 = vunpack.c.h.b16 %v892
  %v3947 = vunpack.c.l.b16 %v893
  %v3948 = vunpack.c.h.b16 %v893
  %v3949 = vunpack.c.l.b16 %v894
  %v3950 = vunpack.c.h.b16 %v894
  %v3951 = vunpack.c.l.b16 %v895
  %v3952 = vunpack.c.h.b16 %v895
  %v3953 = vunpack.c.l.b16 %v896
  %v3954 = vunpack.c.h.b16 %v896
  %v3955 = vunpack.c.l.b16 %v897
  %v3956 = vunpack.c.h.b16 %v897
  %v3957 = vunpack.c.l.b16 %v898
  %v3958 = vunpack.c.h.b16 %v898
  %v3959 = vunpack.c.l.b16 %v899
  %v3960 = vunpack.c.h.b16 %v899
  %v3961 = vunpack.c.l.b16 %v900
  %v3962 = vunpack.c.h.b16 %v900
  %v3963 = vunpack.c.l.b16 %v901
  %v3964 = vunpack.c.h.b16 %v901
  %v3965 = vunpack.c.l.b16 %v902
  %v3966 = vunpack.c.h.b16 %v902
  %v3967 = vunpack.c.l.b16 %v903
  %v3968 = vunpack.c.h.b16 %v903
  %v3969 = vunpack.c.l.b16 %v904
  %v3970 = vunpack.c.h.b16 %v904
  %v3971 = vunpack.c.l.b16 %v905
  %v3972 = vunpack.c.h.b16 %v905
  %v3973 = vunpack.c.l.b16 %v906
  %v3974 = vunpack.c.h.b16 %v906
  %v3975 = vunpack.c.l.b16 %v907
  %v3976 = vunpack.c.h.b16 %v907
  %v3977 = vunpack.c.l.b16 %v908
  %v3978 = vunpack.c.h.b16 %v908
  %v3979 = vunpack.c.l.b16 %v909
  %v3980 = vunpack.c.h.b16 %v909
  %v3981 = vunpack.c.l.b16 %v910
  %v3982 = vunpack.c.h.b16 %v910
  %v3983 = vunpack.c.l.b16 %v911
  %v3984 = vunpack.c.h.b16 %v911
  %v3985 = vunpack.c.l.b16 %v912
  %v3986 = vunpack.c.h.b16 %v912
  %v3987 = vunpack.c.l.b16 %v913
  %v3988 = vunpack.c.h.b16 %v913
  %v3989 = vunpack.c.l.b16 %v914
  %v3990 = vunpack.c.h.b16 %v914
  %v3991 = vunpack.c.l.b16 %v915
  %v3992 = vunpack.c.h.b16 %v915
  %v3993 = vunpack.c.l.b16 %v916
  %v3994 = vunpack.c.h.b16 %v916
  %v3995 = vunpack.c.l.b16 %v917
  %v3996 = vunpack.c.h.b16 %v917
  %v3997 = vunpack.c.l.b16 %v918
  %v3998 = vunpack.c.h.b16 %v918
  %v3999 = vunpack.c.l.b16 %v919
  %v4000 = vunpack.c.h.b16 %v919
  %v4001 = vunpack.c.l.b16 %v920
  %v4002 = vunpack.c.h.b16 %v920
  %v4003 = vunpack.c.l.b16 %v921
  %v4004 = vunpack.c.h.b16 %v921
  %v4005 = vunpack.c.l.b16 %v922
  %v4006 = vunpack.c.h.b16 %v922
  %v4007 = vunpack.c.l.b16 %v923
  %v4008 = vunpack.c.h.b16 %v923
  %v4009 = vunpack.c.l.b16 %v924
  %v4010 = vunpack.c.h.b16 %v924
  %v4011 = vunpack.c.l.b16 %v925
  %v4012 = vunpack.c.h.b16 %v925
  %v4013 = vunpack.c.l.b16 %v926
  %v4014 = vunpack.c.h.b16 %v926
  %v4015 = vunpack.c.l.b16 %v927
  %v4016 = vunpack.c.h.b16 %v927
  %v4017 = vunpack.c.l.b16 %v928
  %v4018 = vunpack.c.h.b16 %v928
  %v4019 = vunpack.c.l.b16 %v929
  %v4020 = vunpack.c.h.b16 %v929
  %v4021 = vunpack.c.l.b16 %v930
  %v4022 = vunpack.c.h.b16 %v930
  %v4023 = vunpack.c.l.b16 %v931
  %v4024 = vunpack.c.h.b16 %v931
  %v4025 = vunpack.c.l.b16 %v932
  %v4026 = vunpack.c.h.b16 %v932
  %v4027 = vunpack.c.l.b16 %v933
  %v4028 = vunpack.c.h.b16 %v933
  %v4029 = vunpack.c.l.b16 %v934
  %v4030 = vunpack.c.h.b16 %v934
  %v4031 = vunpack.c.l.b16 %v935
  %v4032 = vunpack.c.h.b16 %v935
  %v4033 = vunpack.c.l.b16 %v936
  %v4034 = vunpack.c.h.b16 %v936
  %v4035 = vunpack.c.l.b16 %v937
  %v4036 = vunpack.c.h.b16 %v937
  %v4037 = vunpack.c.l.b16 %v938
  %v4038 = vunpack.c.h.b16 %v938
  %v4039 = vunpack.c.l.b16 %v939
  %v4040 = vunpack.c.h.b16 %v939
  %v4041 = vunpack.c.l.b16 %v940
  %v4042 = vunpack.c.h.b16 %v940
  %v4043 = vunpack.c.l.b16 %v941
  %v4044 = vunpack.c.h.b16 %v941
  %v4045 = vunpack.c.l.b16 %v942
  %v4046 = vunpack.c.h.b16 %v942
  %v4047 = vunpack.c.l.b16 %v943
  %v4048 = vunpack.c.h.b16 %v943
  %v4049 = vunpack.c.l.b16 %v944
  %v4050 = vunpack.c.h.b16 %v944
  %v4051 = vunpack.c.l.b16 %v945
  %v4052 = vunpack.c.h.b16 %v945
  %v4053 = vunpack.c.l.b16 %v946
  %v4054 = vunpack.c.h.b16 %v946
  %v4055 = vunpack.c.l.b16 %v947
  %v4056 = vunpack.c.h.b16 %v947
  %v4057 = vunpack.c.l.b16 %v948
  %v4058 = vunpack.c.h.b16 %v948
  %v4059 = vunpack.c.l.b16 %v949
  %v4060 = vunpack.c.h.b16 %v949
  %v4061 = vunpack.c.l.b16 %v950
  %v4062 = vunpack.c.h.b16 %v950
  %v4063 = vunpack.c.l.b16 %v951
  %v4064 = vunpack.c.h.b16 %v951
  %v4065 = vunpack.c.l.b16 %v952
  %v4066 = vunpack.c.h.b16 %v952
  %v4067 = vunpack.c.l.b16 %v953
  %v4068 = vunpack.c.h.b16 %v953
  %v4069 = vunpack.c.l.b16 %v954
  %v4070 = vunpack.c.h.b16 %v954
  %v4071 = vunpack.c.l.b16 %v955
  %v4072 = vunpack.c.h.b16 %v955
  %v4073 = vunpack.c.l.b16 %v956
  %v4074 = vunpack.c.h.b16 %v956
  %v4075 = vunpack.c.l.b16 %v957
  %v4076 = vunpack.c.h.b16 %v957
  %v4077 = vunpack.c.l.b16 %v958
  %v4078 = vunpack.c.h.b16 %v958
  %v4079 = vunpack.c.l.b16 %v959
  %v4080 = vunpack.c.h.b16 %v959
  %v4081 = vunpack.c.l.b16 %v960
  %v4082 = vunpack.c.h.b16 %v960
  %v4083 = vunpack.c.l.b16 %v961
  %v4084 = vunpack.c.h.b16 %v961
  %v4085 = vunpack.c.l.b16 %v962
  %v4086 = vunpack.c.h.b16 %v962
  %v4087 = vunpack.c.l.b16 %v963
  %v4088 = vunpack.c.h.b16 %v963
  %v4089 = vunpack.c.l.b16 %v964
  %v4090 = vunpack.c.h.b16 %v964
  %v4091 = vunpack.c.l.b16 %v965
  %v4092 = vunpack.c.h.b16 %v965
  %v4093 = vunpack.c.l.b16 %v966
  %v4094 = vunpack.c.h.b16 %v966
  %v4095 = vunpack.c.l.b16 %v967
  %v4096 = vunpack.c.h.b16 %v967
  %v4097 = vunpack.c.l.b16 %v968
  %v4098 = vunpack.c.h.b16 %v968
  %v4099 = vunpack.c.l.b16 %v969
  %v4100 = vunpack.c.h.b16 %v969
  %v4101 = vunpack.c.l.b16 %v970
  %v4102 = vunpack.c.h.b16 %v970
  %v4103 = vunpack.c.l.b16 %v971
  %v4104 = vunpack.c.h.b16 %v971
  %v4105 = vunpack.c.l.b16 %v972
  %v4106 = vunpack.c.h.b16 %v972
  %v4107 = vunpack.c.l.b16 %v973
  %v4108 = vunpack.c.h.b16 %v973
  %v4109 = vunpack.c.l.b16 %v974
  %v4110 = vunpack.c.h.b16 %v974
  %v4111 = vunpack.c.l.b16 %v975
  %v4112 = vunpack.c.h.b16 %v975
  %v4113 = vunpack.c.l.b16 %v976
  %v4114 = vunpack.c.h.b16 %v976
  %v4115 = vunpack.c.l.b16 %v977
  %v4116 = vunpack.c.h.b16 %v977
  %v4117 = vunpack.c.l.b16 %v978
  %v4118 = vunpack.c.h.b16 %v978
  %v4119 = vunpack.c.l.b16 %v979
  %v4120 = vunpack.c.h.b16 %v979
  %v4121 = vunpack.c.l.b16 %v980
  %v4122 = vunpack.c.h.b16 %v980
  %v4123 = vunpack.c.l.b16 %v981
  %v4124 = vunpack.c.h.b16 %v981
  %v4125 = vunpack.c.l.b16 %v982
  %v4126 = vunpack.c.h.b16 %v982
  %v4127 = vunpack.c.l.b16 %v983
  %v4128 = vunpack.c.h.b16 %v983
  %v4129 = vunpack.c.l.b16 %v984
  %v4130 = vunpack.c.h.b16 %v984
  %v4131 = vunpack.c.l.b16 %v985
  %v4132 = vunpack.c.h.b16 %v985
  %v4133 = vunpack.c.l.b16 %v986
  %v4134 = vunpack.c.h.b16 %v986
  %v4135 = vunpack.c.l.b16 %v987
  %v4136 = vunpack.c.h.b16 %v987
  %v4137 = vunpack.c.l.b16 %v988
  %v4138 = vunpack.c.h.b16 %v988
  %v4139 = vunpack.c.l.b16 %v989
  %v4140 = vunpack.c.h.b16 %v989
  %v4141 = vunpack.c.l.b16 %v990
  %v4142 = vunpack.c.h.b16 %v990
  %v4143 = vunpack.c.l.b16 %v991
  %v4144 = vunpack.c.h.b16 %v991
  %v4145 = vunpack.c.l.b16 %v992
  %v4146 = vunpack.c.h.b16 %v992
  %v4147 = vunpack.c.l.b16 %v993
  %v4148 = vunpack.c.h.b16 %v993
  %v4149 = vunpack.c.l.b16 %v994
  %v4150 = vunpack.c.h.b16 %v994
  %v4151 = vunpack.c.l.b16 %v995
  %v4152 = vunpack.c.h.b16 %v995
  %v4153 = vunpack.c.l.b16 %v996
  %v4154 = vunpack.c.h.b16 %v996
  %v4155 = vunpack.c.l.b16 %v997
  %v4156 = vunpack.c.h.b16 %v997
  %v4157 = vunpack.c.l.b16 %v998
  %v4158 = vunpack.c.h.b16 %v998
  %v4159 = vunpack.c.l.b16 %v999
  %v4160 = vunpack.c.h.b16 %v999
  %v4161 = vunpack.c.l.b16 %v1000
  %v4162 = vunpack.c.h.b16 %v1000
  %v4163 = vunpack.c.l.b16 %v1001
  %v4164 = vunpack.c.h.b16 %v1001
  %v4165 = vunpack.c.l.b16 %v1002
  %v4166 = vunpack.c.h.b16 %v1002
  %v4167 = vunpack.c.l.b16 %v1003
  %v4168 = vunpack.c.h.b16 %v1003
  %v4169 = vunpack.c.l.b16 %v1004
  %v4170 = vunpack.c.h.b16 %v1004
  %v4171 = vunpack.c.l.b16 %v1005
  %v4172 = vunpack.c.h.b16 %v1005
  %v4173 = vunpack.c.l.b16 %v1006
  %v4174 = vunpack.c.h.b16 %v1006
  %v4175 = vunpack.c.l.b16 %v1007
  %v4176 = vunpack.c.h.b16 %v1007
  %v4177 = vunpack.c.l.b16 %v1008
  %v4178 = vunpack.c.h.b16 %v1008
  %v4179 = vunpack.c.l.b16 %v1009
  %v4180 = vunpack.c.h.b16 %v1009
  %v4181 = vunpack.c.l.b16 %v1010
  %v4182 = vunpack.c.h.b16 %v1010
  %v4183 = vunpack.c.l.b16 %v1011
  %v4184 = vunpack.c.h.b16 %v1011
  %v4185 = vunpack.c.l.b16 %v1012
  %v4186 = vunpack.c.h.b16 %v1012
  %v4187 = vunpack.c.l.b16 %v1013
  %v4188 = vunpack.c.h.b16 %v1013
  %v4189 = vunpack.c.l.b16 %v1014
  %v4190 = vunpack.c.h.b16 %v1014
  %v4191 = vunpack.c.l.b16 %v1015
  %v4192 = vunpack.c.h.b16 %v1015
  %v4193 = vunpack.c.l.b16 %v1016
  %v4194 = vunpack.c.h.b16 %v1016
  %v4195 = vunpack.c.l.b16 %v1017
  %v4196 = vunpack.c.h.b16 %v1017
  %v4197 = vunpack.c.l.b16 %v1018
  %v4198 = vunpack.c.h.b16 %v1018
  %v4199 = vunpack.c.l.b16 %v1019
  %v4200 = vunpack.c.h.b16 %v1019
  %v4201 = vunpack.c.l.b16 %v1020
  %v4202 = vunpack.c.h.b16 %v1020
  %v4203 = vunpack.c.l.b16 %v1021
  %v4204 = vunpack.c.h.b16 %v1021
  %v4205 = vunpack.c.l.b16 %v1022
  %v4206 = vunpack.c.h.b16 %v1022
  %v4207 = vunpack.c.l.b16 %v1023
  %v4208 = vunpack.c.h.b16 %v1023
  %v4209 = vunpack.c.l.b16 %v1024
  %v4210 = vunpack.c.h.b16 %v1024
  %v4211 = vunpack.c.l.b16 %v1025
  %v4212 = vunpack.c.h.b16 %v1025
  %v4213 = vunpack.c.l.b16 %v1026
  %v4214 = vunpack.c.h.b16 %v1026
  %v4215 = vunpack.c.l.b16 %v1027
  %v4216 = vunpack.c.h.b16 %v1027
  %v4217 = vunpack.c.l.b16 %v1028
  %v4218 = vunpack.c.h.b16 %v1028
  %v4219 = vunpack.c.l.b16 %v1029
  %v4220 = vunpack.c.h.b16 %v1029
  %v4221 = vunpack.c.l.b16 %v1030
  %v4222 = vunpack.c.h.b16 %v1030
  %v4223 = vunpack.c.l.b16 %v1031
  %v4224 = vunpack.c.h.b16 %v1031
  %v4225 = vunpack.c.l.b16 %v1032
  %v4226 = vunpack.c.h.b16 %v1032
  %v4227 = vunpack.c.l.b16 %v1033
  %v4228 = vunpack.c.h.b16 %v1033
  %v4229 = vunpack.c.l.b16 %v1034
  %v4230 = vunpack.c.h.b16 %v1034
  %v4231 = vunpack.c.l.b16 %v1035
  %v4232 = vunpack.c.h.b16 %v1035
  %v4233 = vunpack.c.l.b16 %v1036
  %v4234 = vunpack.c.h.b16 %v1036
  %v4235 = vunpack.c.l.b16 %v1037
  %v4236 = vunpack.c.h.b16 %v1037
  %v4237 = vunpack.c.l.b16 %v1038
  %v4238 = vunpack.c.h.b16 %v1038
  %v4239 = vunpack.c.l.b16 %v1039
  %v4240 = vunpack.c.h.b16 %v1039
  %v4241 = vunpack.c.l.b16 %v1040
  %v4242 = vunpack.c.h.b16 %v1040
  %v4243 = vunpack.c.l.b16 %v1041
  %v4244 = vunpack.c.h.b16 %v1041
  %v4245 = vunpack.c.l.b16 %v1042
  %v4246 = vunpack.c.h.b16 %v1042
  %v4247 = vunpack.c.l.b16 %v1043
  %v4248 = vunpack.c.h.b16 %v1043
  %v4249 = vunpack.c.l.b16 %v1044
  %v4250 = vunpack.c.h.b16 %v1044
  %v4251 = vunpack.c.l.b16 %v1045
  %v4252 = vunpack.c.h.b16 %v1045
  %v4253 = vunpack.c.l.b16 %v1046
  %v4254 = vunpack.c.h.b16 %v1046
  %v4255 = vunpack.c.l.b16 %v1047
  %v4256 = vunpack.c.h.b16 %v1047
  %v4257 = vunpack.c.l.b16 %v1048
  %v4258 = vunpack.c.h.b16 %v1048
  %v4259 = vunpack.c.l.b16 %v1049
  %v4260 = vunpack.c.h.b16 %v1049
  %v4261 = vunpack.c.l.b16 %v1050
  %v4262 = vunpack.c.h.b16 %v1050
  %v4263 = vunpack.c.l.b16 %v1051
  %v4264 = vunpack.c.h.b16 %v1051
  %v4265 = vunpack.c.l.b16 %v1052
  %v4266 = vunpack.c.h.b16 %v1052
  %v4267 = vunpack.c.l.b16 %v1053
  %v4268 = vunpack.c.h.b16 %v1053
  %v4269 = vunpack.c.l.b16 %v1054
  %v4270 = vunpack.c.h.b16 %v1054
  %v4271 = vunpack.c.l.b16 %v1055
  %v4272 = vunpack.c.h.b16 %v1055
  %v4273 = vunpack.c.l.b16 %v1056
  %v4274 = vunpack.c.h.b16 %v1056
  %v4275 = vunpack.c.l.b16 %v1057
  %v4276 = vunpack.c.h.b16 %v1057
  %v4277 = vunpack.c.l.b16 %v1058
  %v4278 = vunpack.c.h.b16 %v1058
  %v4279 = vunpack.c.l.b16 %v1059
  %v4280 = vunpack.c.h.b16 %v1059
  %v4281 = vunpack.c.l.b16 %v1060
  %v4282 = vunpack.c.h.b16 %v1060
  %v4283 = vunpack.c.l.b16 %v1061
  %v4284 = vunpack.c.h.b16 %v1061
  %v4285 = vunpack.c.l.b16 %v1062
  %v4286 = vunpack.c.h.b16 %v1062
  %v4287 = vunpack.c.l.b16 %v1063
  %v4288 = vunpack.c.h.b16 %v1063
  %v4289 = vunpack.c.l.b16 %v1064
  %v4290 = vunpack.c.h.b16 %v1064
  %v4291 = vunpack.c.l.b16 %v1065
  %v4292 = vunpack.c.h.b16 %v1065
  %v4293 = vunpack.c.l.b16 %v1066
  %v4294 = vunpack.c.h.b16 %v1066
  %v4295 = vunpack.c.l.b16 %v1067
  %v4296 = vunpack.c.h.b16 %v1067
  %v4297 = vunpack.c.l.b16 %v1068
  %v4298 = vunpack.c.h.b16 %v1068
  %v4299 = vunpack.c.l.b16 %v1069
  %v4300 = vunpack.c.h.b16 %v1069
  %v4301 = vunpack.c.l.b16 %v1070
  %v4302 = vunpack.c.h.b16 %v1070
  %v4303 = vpack.c.b16 %v2305, %v2303
  %v4304 = vpack.c.b16 %v2306, %v2304
  %v4305 = vpack.c.b16 %v2309, %v2307
  %v4306 = vpack.c.b16 %v2310, %v2308
  %v4307 = vpack.c.b16 %v2313, %v2311
  %v4308 = vpack.c.b16 %v2314, %v2312
  %v4309 = vpack.c.b16 %v2317, %v2315
  %v4310 = vpack.c.b16 %v2318, %v2316
  %v4311 = vpack.c.b16 %v2321, %v2319
  %v4312 = vpack.c.b16 %v2322, %v2320
  %v4313 = vpack.c.b16 %v2325, %v2323
  %v4314 = vpack.c.b16 %v2326, %v2324
  %v4315 = vpack.c.b16 %v2329, %v2327
  %v4316 = vpack.c.b16 %v2330, %v2328
  %v4317 = vpack.c.b16 %v2333, %v2331
  %v4318 = vpack.c.b16 %v2334, %v2332
  %v4319 = vpack.c.b16 %v2337, %v2335
  %v4320 = vpack.c.b16 %v2338, %v2336
  %v4321 = vpack.c.b16 %v2341, %v2339
  %v4322 = vpack.c.b16 %v2342, %v2340
  %v4323 = vpack.c.b16 %v2345, %v2343
  %v4324 = vpack.c.b16 %v2346, %v2344
  %v4325 = vpack.c.b16 %v2349, %v2347
  %v4326 = vpack.c.b16 %v2350, %v2348
  %v4327 = vpack.c.b16 %v2353, %v2351
  %v4328 = vpack.c.b16 %v2354, %v2352
  %v4329 = vpack.c.b16 %v2357, %v2355
  %v4330 = vpack.c.b16 %v2358, %v2356
  %v4331 = vpack.c.b16 %v2361, %v2359
  %v4332 = vpack.c.b16 %v2362, %v2360
  %v4333 = vpack.c.b16 %v2365, %v2363
  %v4334 = vpack.c.b16 %v2366, %v2364
  %v4335 = vpack.c.b16 %v2369, %v2367
  %v4336 = vpack.c.b16 %v2370, %v2368
  %v4337 = vpack.c.b16 %v2373, %v2371
  %v4338 = vpack.c.b16 %v2374, %v2372
  %v4339 = vpack.c.b16 %v2377, %v2375
  %v4340 = vpack.c.b16 %v2378, %v2376
  %v4341 = vpack.c.b16 %v2381, %v2379
  %v4342 = vpack.c.b16 %v2382, %v2380
  %v4343 = vpack.c.b16 %v2385, %v2383
  %v4344 = vpack.c.b16 %v2386, %v2384
  %v4345 = vpack.c.b16 %v2389, %v2387
  %v4346 = vpack.c.b16 %v2390, %v2388
  %v4347 = vpack.c.b16 %v2393, %v2391
  %v4348 = vpack.c.b16 %v2394, %v2392
  %v4349 = vpack.c.b16 %v2397, %v2395
  %v4350 = vpack.c.b16 %v2398, %v2396
  %v4351 = vpack.c.b16 %v2401, %v2399
  %v4352 = vpack.c.b16 %v2402, %v2400
  %v4353 = vpack.c.b16 %v2405, %v2403
  %v4354 = vpack.c.b16 %v2406, %v2404
  %v4355 = vpack.c.b16 %v2409, %v2407
  %v4356 = vpack.c.b16 %v2410, %v2408
  %v4357 = vpack.c.b16 %v2413, %v2411
  %v4358 = vpack.c.b16 %v2414, %v2412
  %v4359 = vpack.c.b16 %v2417, %v2415
  %v4360 = vpack.c.b16 %v2418, %v2416
  %v4361 = vpack.c.b16 %v2421, %v2419
  %v4362 = vpack.c.b16 %v2422, %v2420
  %v4363 = vpack.c.b16 %v2425, %v2423
  %v4364 = vpack.c.b16 %v2426, %v2424
  %v4365 = vpack.c.b16 %v2429, %v2427
  %v4366 = vpack.c.b16 %v2430, %v2428
  %v4367 = vpack.c.b16 %v2433, %v2431
  %v4368 = vpack.c.b16 %v2434, %v2432
  %v4369 = vpack.c.b16 %v2437, %v2435
  %v4370 = vpack.c.b16 %v2438, %v2436
  %v4371 = vpack.c.b16 %v2441, %v2439
  %v4372 = vpack.c.b16 %v2442, %v2440
  %v4373 = vpack.c.b16 %v2445, %v2443
  %v4374 = vpack.c.b16 %v2446, %v2444
  %v4375 = vpack.c.b16 %v2449, %v2447
  %v4376 = vpack.c.b16 %v2450, %v2448
  %v4377 = vpack.c.b16 %v2453, %v2451
  %v4378 = vpack.c.b16 %v2454, %v2452
  %v4379 = vpack.c.b16 %v2457, %v2455
  %v4380 = vpack.c.b16 %v2458, %v2456
  %v4381 = vpack.c.b16 %v2461, %v2459
  %v4382 = vpack.c.b16 %v2462, %v2460
  %v4383 = vpack.c.b16 %v2465, %v2463
  %v4384 = vpack.c.b16 %v2466, %v2464
  %v4385 = vpack.c.b16 %v2469, %v2467
  %v4386 = vpack.c.b16 %v2470, %v2468
  %v4387 = vpack.c.b16 %v2473, %v2471
  %v4388 = vpack.c.b16 %v2474, %v2472
  %v4389 = vpack.c.b16 %v2477, %v2475
  %v4390 = vpack.c.b16 %v2478, %v2476
  %v4391 = vpack.c.b16 %v2481, %v2479
  %v4392 = vpack.c.b16 %v2482, %v2480
  %v4393 = vpack.c.b16 %v2485, %v2483
  %v4394 = vpack.c.b16 %v2486, %v2484
  %v4395 = vpack.c.b16 %v2489, %v2487
  %v4396 = vpack.c.b16 %v2490, %v2488
  %v4397 = vpack.c.b16 %v2493, %v2491
  %v4398 = vpack.c.b16 %v2494, %v2492
  %v4399 = vpack.c.b16 %v2497, %v2495
  %v4400 = vpack.c.b16 %v2498, %v2496
  %v4401 = vpack.c.b16 %v2501, %v2499
  %v4402 = vpack.c.b16 %v2502, %v2500
  %v4403 = vpack.c.b16 %v2505, %v2503
  %v4404 = vpack.c.b16 %v2506, %v2504
  %v4405 = vpack.c.b16 %v2509, %v2507
  %v4406 = vpack.c.b16 %v2510, %v2508
  %v4407 = vpack.c.b16 %v2513, %v2511
  %v4408 = vpack.c.b16 %v2514, %v2512
  %v4409 = vpack.c.b16 %v2517, %v2515
  %v4410 = vpack.c.b16 %v2518, %v2516
  %v4411 = vpack.c.b16 %v2521, %v2519
  %v4412 = vpack.c.b16 %v2522, %v2520
  %v4413 = vpack.c.b16 %v2525, %v2523
  %v4414 = vpack.c.b16 %v2526, %v2524
  %v4415 = vpack.c.b16 %v2529, %v2527
  %v4416 = vpack.c.b16 %v2530, %v2528
  %v4417 = vpack.c.b16 %v2533, %v2531
  %v4418 = vpack.c.b16 %v2534, %v2532
  %v4419 = vpack.c.b16 %v2537, %v2535
  %v4420 = vpack.c.b16 %v2538, %v2536
  %v4421 = vpack.c.b16 %v2541, %v2539
  %v4422 = vpack.c.b16 %v2542, %v2540
  %v4423 = vpack.c.b16 %v2545, %v2543
  %v4424 = vpack.c.b16 %v2546, %v2544
  %v4425 = vpack.c.b16 %v2549, %v2547
  %v4426 = vpack.c.b16 %v2550, %v2548
  %v4427 = vpack.c.b16 %v2553, %v2551
  %v4428 = vpack.c.b16 %v2554, %v2552
  %v4429 = vpack.c.b16 %v2557, %v2555
  %v4430 = vpack.c.b16 %v2558, %v2556
  %v4431 = vpack.c.b16 %v2561, %v2559
  %v4432 = vpack.c.b16 %v2562, %v2560
  %v4433 = vpack.c.b16 %v2565, %v2563
  %v4434 = vpack.c.b16 %v2566, %v2564
  %v4435 = vpack.c.b16 %v2569, %v2567
  %v4436 = vpack.c.b16 %v2570, %v2568
  %v4437 = vpack.c.b16 %v2573, %v2571
  %v4438 = vpack.c.b16 %v2574, %v2572
  %v4439 = vpack.c.b16 %v2577, %v2575
  %v4440 = vpack.c.b16 %v2578, %v2576
  %v4441 = vpack.c.b16 %v2581, %v2579
  %v4442 = vpack.c.b16 %v2582, %v2580
  %v4443 = vpack.c.b16 %v2585, %v2583
  %v4444 = vpack.c.b16 %v2586, %v2584
  %v4445 = vpack.c.b16 %v2589, %v2587
  %v4446 = vpack.c.b16 %v2590, %v2588
  %v4447 = vpack.c.b16 %v2593, %v2591
  %v4448 = vpack.c.b16 %v2594, %v2592
  %v4449 = vpack.c.b16 %v2597, %v2595
  %v4450 = vpack.c.b16 %v2598, %v2596
  %v4451 = vpack.c.b16 %v2601, %v2599
  %v4452 = vpack.c.b16 %v2602, %v2600
  %v4453 = vpack.c.b16 %v2605, %v2603
  %v4454 = vpack.c.b16 %v2606, %v2604
  %v4455 = vpack.c.b16 %v2609, %v2607
  %v4456 = vpack.c.b16 %v2610, %v2608
  %v4457 = vpack.c.b16 %v2613, %v2611
  %v4458 = vpack.c.b16 %v2614, %v2612
  %v4459 = vpack.c.b16 %v2617, %v2615
  %v4460 = vpack.c.b16 %v2618, %v2616
  %v4461 = vpack.c.b16 %v2621, %v2619
  %v4462 = vpack.c.b16 %v2622, %v2620
  %v4463 = vpack.c.b16 %v2625, %v2623
  %v4464 = vpack.c.b16 %v2626, %v2624
  %v4465 = vpack.c.b16 %v2629, %v2627
  %v4466 = vpack.c.b16 %v2630, %v2628
  %v4467 = vpack.c.b16 %v2633, %v2631
  %v4468 = vpack.c.b16 %v2634, %v2632
  %v4469 = vpack.c.b16 %v2637, %v2635
  %v4470 = vpack.c.b16 %v2638, %v2636
  %v4471 = vpack.c.b16 %v2641, %v2639
  %v4472 = vpack.c.b16 %v2642, %v2640
  %v4473 = vpack.c.b16 %v2645, %v2643
  %v4474 = vpack.c.b16 %v2646, %v2644
  %v4475 = vpack.c.b16 %v2649, %v2647
  %v4476 = vpack.c.b16 %v2650, %v2648
  %v4477 = vpack.c.b16 %v2653, %v2651
  %v4478 = vpack.c.b16 %v2654, %v2652
  %v4479 = vpack.c.b16 %v2657, %v2655
  %v4480 = vpack.c.b16 %v2658, %v2656
  %v4481 = vpack.c.b16 %v2661, %v2659
  %v4482 = vpack.c.b16 %v2662, %v2660
  %v4483 = vpack.c.b16 %v2665, %v2663
  %v4484 = vpack.c.b16 %v2666, %v2664
  %v4485 = vpack.c.b16 %v2669, %v2667
  %v4486 = vpack.c.b16 %v2670, %v2668
  %v4487 = vpack.c.b16 %v2673, %v2671
  %v4488 = vpack.c.b16 %v2674, %v2672
  %v4489 = vpack.c.b16 %v2677, %v2675
  %v4490 = vpack.c.b16 %v2678, %v2676
  %v4491 = vpack.c.b16 %v2681, %v2679
  %v4492 = vpack.c.b16 %v2682, %v2680
  %v4493 = vpack.c.b16 %v2685, %v2683
  %v4494 = vpack.c.b16 %v2686, %v2684
  %v4495 = vpack.c.b16 %v2689, %v2687
  %v4496 = vpack.c.b16 %v2690, %v2688
  %v4497 = vpack.c.b16 %v2693, %v2691
  %v4498 = vpack.c.b16 %v2694, %v2692
  %v4499 = vpack.c.b16 %v2697, %v2695
  %v4500 = vpack.c.b16 %v2698, %v2696
  %v4501 = vpack.c.b16 %v2701, %v2699
  %v4502 = vpack.c.b16 %v2702, %v2700
  %v4503 = vpack.c.b16 %v2705, %v2703
  %v4504 = vpack.c.b16 %v2706, %v2704
  %v4505 = vpack.c.b16 %v2709, %v2707
  %v4506 = vpack.c.b16 %v2710, %v2708
  %v4507 = vpack.c.b16 %v2713, %v2711
  %v4508 = vpack.c.b16 %v2714, %v2712
  %v4509 = vpack.c.b16 %v2717, %v2715
  %v4510 = vpack.c.b16 %v2718, %v2716
  %v4511 = vpack.c.b16 %v2721, %v2719
  %v4512 = vpack.c.b16 %v2722, %v2720
  %v4513 = vpack.c.b16 %v2725, %v2723
  %v4514 = vpack.c.b16 %v2726, %v2724
  %v4515 = vpack.c.b16 %v2729, %v2727
  %v4516 = vpack.c.b16 %v2730, %v2728
  %v4517 = vpack.c.b16 %v2733, %v2731
  %v4518 = vpack.c.b16 %v2734, %v2732
  %v4519 = vpack.c.b16 %v2737, %v2735
  %v4520 = vpack.c.b16 %v2738, %v2736
  %v4521 = vpack.c.b16 %v2741, %v2739
  %v4522 = vpack.c.b16 %v2742, %v2740
  %v4523 = vpack.c.b16 %v2745, %v2743
  %v4524 = vpack.c.b16 %v2746, %v2744
  %v4525 = vpack.c.b16 %v2749, %v2747
  %v4526 = vpack.c.b16 %v2750, %v2748
  %v4527 = vpack.c.b16 %v2753, %v2751
  %v4528 = vpack.c.b16 %v2754, %v2752
  %v4529 = vpack.c.b16 %v2757, %v2755
  %v4530 = vpack.c.b16 %v2758, %v2756
  %v4531 = vpack.c.b16 %v2761, %v2759
  %v4532 = vpack.c.b16 %v2762, %v2760
  %v4533 = vpack.c.b16 %v2765, %v2763
  %v4534 = vpack.c.b16 %v2766, %v2764
  %v4535 = vpack.c.b16 %v2769, %v2767
  %v4536 = vpack.c.b16 %v2770, %v2768
  %v4537 = vpack.c.b16 %v2773, %v2771
  %v4538 = vpack.c.b16 %v2774, %v2772
  %v4539 = vpack.c.b16 %v2777, %v2775
  %v4540 = vpack.c.b16 %v2778, %v2776
  %v4541 = vpack.c.b16 %v2781, %v2779
  %v4542 = vpack.c.b16 %v2782, %v2780
  %v4543 = vpack.c.b16 %v2785, %v2783
  %v4544 = vpack.c.b16 %v2786, %v2784
  %v4545 = vpack.c.b16 %v2789, %v2787
  %v4546 = vpack.c.b16 %v2790, %v2788
  %v4547 = vpack.c.b16 %v2793, %v2791
  %v4548 = vpack.c.b16 %v2794, %v2792
  %v4549 = vpack.c.b16 %v2797, %v2795
  %v4550 = vpack.c.b16 %v2798, %v2796
  %v4551 = vpack.c.b16 %v2801, %v2799
  %v4552 = vpack.c.b16 %v2802, %v2800
  %v4553 = vpack.c.b16 %v2805, %v2803
  %v4554 = vpack.c.b16 %v2806, %v2804
  %v4555 = vpack.c.b16 %v2809, %v2807
  %v4556 = vpack.c.b16 %v2810, %v2808
  %v4557 = vpack.c.b16 %v2813, %v2811
  %v4558 = vpack.c.b16 %v2814, %v2812
  %v4559 = vpack.c.b16 %v2817, %v2815
  %v4560 = vpack.c.b16 %v2818, %v2816
  %v4561 = vpack.c.b16 %v2821, %v2819
  %v4562 = vpack.c.b16 %v2822, %v2820
  %v4563 = vpack.c.b16 %v2825, %v2823
  %v4564 = vpack.c.b16 %v2826, %v2824
  %v4565 = vpack.c.b16 %v2829, %v2827
  %v4566 = vpack.c.b16 %v2830, %v2828
  %v4567 = vpack.c.b16 %v2833, %v2831
  %v4568 = vpack.c.b16 %v2834, %v2832
  %v4569 = vpack.c.b16 %v2837, %v2835
  %v4570 = vpack.c.b16 %v2838, %v2836
  %v4571 = vpack.c.b16 %v2841, %v2839
  %v4572 = vpack.c.b16 %v2842, %v2840
  %v4573 = vpack.c.b16 %v2845, %v2843
  %v4574 = vpack.c.b16 %v2846, %v2844
  %v4575 = vpack.c.b16 %v2849, %v2847
  %v4576 = vpack.c.b16 %v2850, %v2848
  %v4577 = vpack.c.b16 %v2853, %v2851
  %v4578 = vpack.c.b16 %v2854, %v2852
  %v4579 = vpack.c.b16 %v2857, %v2855
  %v4580 = vpack.c.b16 %v2858, %v2856
  %v4581 = vpack.c.b16 %v2861, %v2859
  %v4582 = vpack.c.b16 %v2862, %v2860
  %v4583 = vpack.c.b16 %v2865, %v2863
  %v4584 = vpack.c.b16 %v2866, %v2864
  %v4585 = vpack.c.b16 %v2869, %v2867
  %v4586 = vpack.c.b16 %v2870, %v2868
  %v4587 = vpack.c.b16 %v2873, %v2871
  %v4588 = vpack.c.b16 %v2874, %v2872
  %v4589 = vpack.c.b16 %v2877, %v2875
  %v4590 = vpack.c.b16 %v2878, %v2876
  %v4591 = vpack.c.b16 %v2881, %v2879
  %v4592 = vpack.c.b16 %v2882, %v2880
  %v4593 = vpack.c.b16 %v2885, %v2883
  %v4594 = vpack.c.b16 %v2886, %v2884
  %v4595 = vpack.c.b16 %v2889, %v2887
  %v4596 = vpack.c.b16 %v2890, %v2888
  %v4597 = vpack.c.b16 %v2893, %v2891
  %v4598 = vpack.c.b16 %v2894, %v2892
  %v4599 = vpack.c.b16 %v2897, %v2895
  %v4600 = vpack.c.b16 %v2898, %v2896
  %v4601 = vpack.c.b16 %v2901, %v2899
  %v4602 = vpack.c.b16 %v2902, %v2900
  %v4603 = vpack.c.b16 %v2905, %v2903
  %v4604 = vpack.c.b16 %v2906, %v2904
  %v4605 = vpack.c.b16 %v2909, %v2907
  %v4606 = vpack.c.b16 %v2910, %v2908
  %v4607 = vpack.c.b16 %v2913, %v2911
  %v4608 = vpack.c.b16 %v2914, %v2912
  %v4609 = vpack.c.b16 %v2917, %v2915
  %v4610 = vpack.c.b16 %v2918, %v2916
  %v4611 = vpack.c.b16 %v2921, %v2919
  %v4612 = vpack.c.b16 %v2922, %v2920
  %v4613 = vpack.c.b16 %v2925, %v2923
  %v4614 = vpack.c.b16 %v2926, %v2924
  %v4615 = vpack.c.b16 %v2929, %v2927
  %v4616 = vpack.c.b16 %v2930, %v2928
  %v4617 = vpack.c.b16 %v2933, %v2931
  %v4618 = vpack.c.b16 %v2934, %v2932
  %v4619 = vpack.c.b16 %v2937, %v2935
  %v4620 = vpack.c.b16 %v2938, %v2936
  %v4621 = vpack.c.b16 %v2941, %v2939
  %v4622 = vpack.c.b16 %v2942, %v2940
  %v4623 = vpack.c.b16 %v2945, %v2943
  %v4624 = vpack.c.b16 %v2946, %v2944
  %v4625 = vpack.c.b16 %v2949, %v2947
  %v4626 = vpack.c.b16 %v2950, %v2948
  %v4627 = vpack.c.b16 %v2953, %v2951
  %v4628 = vpack.c.b16 %v2954, %v2952
  %v4629 = vpack.c.b16 %v2957, %v2955
  %v4630 = vpack.c.b16 %v2958, %v2956
  %v4631 = vpack.c.b16 %v2961, %v2959
  %v4632 = vpack.c.b16 %v2962, %v2960
  %v4633 = vpack.c.b16 %v2965, %v2963
  %v4634 = vpack.c.b16 %v2966, %v2964
  %v4635 = vpack.c.b16 %v2969, %v2967
  %v4636 = vpack.c.b16 %v2970, %v2968
  %v4637 = vpack.c.b16 %v2973, %v2971
  %v4638 = vpack.c.b16 %v2974, %v2972
  %v4639 = vpack.c.b16 %v2977, %v2975
  %v4640 = vpack.c.b16 %v2978, %v2976
  %v4641 = vpack.c.b16 %v2981, %v2979
  %v4642 = vpack.c.b16 %v2982, %v2980
  %v4643 = vpack.c.b16 %v2985, %v2983
  %v4644 = vpack.c.b16 %v2986, %v2984
  %v4645 = vpack.c.b16 %v2989, %v2987
  %v4646 = vpack.c.b16 %v2990, %v2988
  %v4647 = vpack.c.b16 %v2993, %v2991
  %v4648 = vpack.c.b16 %v2994, %v2992
  %v4649 = vpack.c.b16 %v2997, %v2995
  %v4650 = vpack.c.b16 %v2998, %v2996
  %v4651 = vpack.c.b16 %v3001, %v2999
  %v4652 = vpack.c.b16 %v3002, %v3000
  %v4653 = vpack.c.b16 %v3005, %v3003
  %v4654 = vpack.c.b16 %v3006, %v3004
  %v4655 = vpack.c.b16 %v3009, %v3007
  %v4656 = vpack.c.b16 %v3010, %v3008
  %v4657 = vpack.c.b16 %v3013, %v3011
  %v4658 = vpack.c.b16 %v3014, %v3012
  %v4659 = vpack.c.b16 %v3017, %v3015
  %v4660 = vpack.c.b16 %v3018, %v3016
  %v4661 = vpack.c.b16 %v3021, %v3019
  %v4662 = vpack.c.b16 %v3022, %v3020
  %v4663 = vpack.c.b16 %v3025, %v3023
  %v4664 = vpack.c.b16 %v3026, %v3024
  %v4665 = vpack.c.b16 %v3029, %v3027
  %v4666 = vpack.c.b16 %v3030, %v3028
  %v4667 = vpack.c.b16 %v3033, %v3031
  %v4668 = vpack.c.b16 %v3034, %v3032
  %v4669 = vpack.c.b16 %v3037, %v3035
  %v4670 = vpack.c.b16 %v3038, %v3036
  %v4671 = vpack.c.b16 %v3041, %v3039
  %v4672 = vpack.c.b16 %v3042, %v3040
  %v4673 = vpack.c.b16 %v3045, %v3043
  %v4674 = vpack.c.b16 %v3046, %v3044
  %v4675 = vpack.c.b16 %v3049, %v3047
  %v4676 = vpack.c.b16 %v3050, %v3048
  %v4677 = vpack.c.b16 %v3053, %v3051
  %v4678 = vpack.c.b16 %v3054, %v3052
  %v4679 = vpack.c.b16 %v3057, %v3055
  %v4680 = vpack.c.b16 %v3058, %v3056
  %v4681 = vpack.c.b16 %v3061, %v3059
  %v4682 = vpack.c.b16 %v3062, %v3060
  %v4683 = vpack.c.b16 %v3065, %v3063
  %v4684 = vpack.c.b16 %v3066, %v3064
  %v4685 = vpack.c.b16 %v3069, %v3067
  %v4686 = vpack.c.b16 %v3070, %v3068
  %v4687 = vpack.c.b16 %v3073, %v3071
  %v4688 = vpack.c.b16 %v3074, %v3072
  %v4689 = vpack.c.b16 %v3077, %v3075
  %v4690 = vpack.c.b16 %v3078, %v3076
  %v4691 = vpack.c.b16 %v3081, %v3079
  %v4692 = vpack.c.b16 %v3082, %v3080
  %v4693 = vpack.c.b16 %v3085, %v3083
  %v4694 = vpack.c.b16 %v3086, %v3084
  %v4695 = vpack.c.b16 %v3089, %v3087
  %v4696 = vpack.c.b16 %v3090, %v3088
  %v4697 = vpack.c.b16 %v3093, %v3091
  %v4698 = vpack.c.b16 %v3094, %v3092
  %v4699 = vpack.c.b16 %v3097, %v3095
  %v4700 = vpack.c.b16 %v3098, %v3096
  %v4701 = vpack.c.b16 %v3101, %v3099
  %v4702 = vpack.c.b16 %v3102, %v3100
  %v4703 = vpack.c.b16 %v3105, %v3103
  %v4704 = vpack.c.b16 %v3106, %v3104
  %v4705 = vpack.c.b16 %v3109, %v3107
  %v4706 = vpack.c.b16 %v3110, %v3108
  %v4707 = vpack.c.b16 %v3113, %v3111
  %v4708 = vpack.c.b16 %v3114, %v3112
  %v4709 = vpack.c.b16 %v3117, %v3115
  %v4710 = vpack.c.b16 %v3118, %v3116
  %v4711 = vpack.c.b16 %v3121, %v3119
  %v4712 = vpack.c.b16 %v3122, %v3120
  %v4713 = vpack.c.b16 %v3125, %v3123
  %v4714 = vpack.c.b16 %v3126, %v3124
  %v4715 = vpack.c.b16 %v3129, %v3127
  %v4716 = vpack.c.b16 %v3130, %v3128
  %v4717 = vpack.c.b16 %v3133, %v3131
  %v4718 = vpack.c.b16 %v3134, %v3132
  %v4719 = vpack.c.b16 %v3137, %v3135
  %v4720 = vpack.c.b16 %v3138, %v3136
  %v4721 = vpack.c.b16 %v3141, %v3139
  %v4722 = vpack.c.b16 %v3142, %v3140
  %v4723 = vpack.c.b16 %v3145, %v3143
  %v4724 = vpack.c.b16 %v3146, %v3144
  %v4725 = vpack.c.b16 %v3149, %v3147
  %v4726 = vpack.c.b16 %v3150, %v3148
  %v4727 = vpack.c.b16 %v3153, %v3151
  %v4728 = vpack.c.b16 %v3154, %v3152
  %v4729 = vpack.c.b16 %v3157, %v3155
  %v4730 = vpack.c.b16 %v3158, %v3156
  %v4731 = vpack.c.b16 %v3161, %v3159
  %v4732 = vpack.c.b16 %v3162, %v3160
  %v4733 = vpack.c.b16 %v3165, %v3163
  %v4734 = vpack.c.b16 %v3166, %v3164
  %v4735 = vpack.c.b16 %v3169, %v3167
  %v4736 = vpack.c.b16 %v3170, %v3168
  %v4737 = vpack.c.b16 %v3173, %v3171
  %v4738 = vpack.c.b16 %v3174, %v3172
  %v4739 = vpack.c.b16 %v3177, %v3175
  %v4740 = vpack.c.b16 %v3178, %v3176
  %v4741 = vpack.c.b16 %v3181, %v3179
  %v4742 = vpack.c.b16 %v3182, %v3180
  %v4743 = vpack.c.b16 %v3185, %v3183
  %v4744 = vpack.c.b16 %v3186, %v3184
  %v4745 = vpack.c.b16 %v3189, %v3187
  %v4746 = vpack.c.b16 %v3190, %v3188
  %v4747 = vpack.c.b16 %v3193, %v3191
  %v4748 = vpack.c.b16 %v3194, %v3192
  %v4749 = vpack.c.b16 %v3197, %v3195
  %v4750 = vpack.c.b16 %v3198, %v3196
  %v4751 = vpack.c.b16 %v3201, %v3199
  %v4752 = vpack.c.b16 %v3202, %v3200
  %v4753 = vpack.c.b16 %v3205, %v3203
  %v4754 = vpack.c.b16 %v3206, %v3204
  %v4755 = vpack.c.b16 %v3209, %v3207
  %v4756 = vpack.c.b16 %v3210, %v3208
  %v4757 = vpack.c.b16 %v3213, %v3211
  %v4758 = vpack.c.b16 %v3214, %v3212
  %v4759 = vpack.c.b16 %v3217, %v3215
  %v4760 = vpack.c.b16 %v3218, %v3216
  %v4761 = vpack.c.b16 %v3221, %v3219
  %v4762 = vpack.c.b16 %v3222, %v3220
  %v4763 = vpack.c.b16 %v3225, %v3223
  %v4764 = vpack.c.b16 %v3226, %v3224
  %v4765 = vpack.c.b16 %v3229, %v3227
  %v4766 = vpack.c.b16 %v3230, %v3228
  %v4767 = vpack.c.b16 %v3233, %v3231
  %v4768 = vpack.c.b16 %v3234, %v3232
  %v4769 = vpack.c.b16 %v3237, %v3235
  %v4770 = vpack.c.b16 %v3238, %v3236
  %v4771 = vpack.c.b16 %v3241, %v3239
  %v4772 = vpack.c.b16 %v3242, %v3240
  %v4773 = vpack.c.b16 %v3245, %v3243
  %v4774 = vpack.c.b16 %v3246, %v3244
  %v4775 = vpack.c.b16 %v3249, %v3247
  %v4776 = vpack.c.b16 %v3250, %v3248
  %v4777 = vpack.c.b16 %v3253, %v3251
  %v4778 = vpack.c.b16 %v3254, %v3252
  %v4779 = vpack.c.b16 %v3257, %v3255
  %v4780 = vpack.c.b16 %v3258, %v3256
  %v4781 = vpack.c.b16 %v3261, %v3259
  %v4782 = vpack.c.b16 %v3262, %v3260
  %v4783 = vpack.c.b16 %v3265, %v3263
  %v4784 = vpack.c.b16 %v3266, %v3264
  %v4785 = vpack.c.b16 %v3269, %v3267
  %v4786 = vpack.c.b16 %v3270, %v3268
  %v4787 = vpack.c.b16 %v3273, %v3271
  %v4788 = vpack.c.b16 %v3274, %v3272
  %v4789 = vpack.c.b16 %v3277, %v3275
  %v4790 = vpack.c.b16 %v3278, %v3276
  %v4791 = vpack.c.b16 %v3281, %v3279
  %v4792 = vpack.c.b16 %v3282, %v3280
  %v4793 = vpack.c.b16 %v3285, %v3283
  %v4794 = vpack.c.b16 %v3286, %v3284
  %v4795 = vpack.c.b16 %v3289, %v3287
  %v4796 = vpack.c.b16 %v3290, %v3288
  %v4797 = vpack.c.b16 %v3293, %v3291
  %v4798 = vpack.c.b16 %v3294, %v3292
  %v4799 = vpack.c.b16 %v3297, %v3295
  %v4800 = vpack.c.b16 %v3298, %v3296
  %v4801 = vpack.c.b16 %v3301, %v3299
  %v4802 = vpack.c.b16 %v3302, %v3300
  %v4803 = vpack.c.b16 %v3305, %v3303
  %v4804 = vpack.c.b16 %v3306, %v3304
  %v4805 = vpack.c.b16 %v3309, %v3307
  %v4806 = vpack.c.b16 %v3310, %v3308
  %v4807 = vpack.c.b16 %v3313, %v3311
  %v4808 = vpack.c.b16 %v3314, %v3312
  %v4809 = vpack.c.b16 %v3317, %v3315
  %v4810 = vpack.c.b16 %v3318, %v3316
  %v4811 = vpack.c.b16 %v3321, %v3319
  %v4812 = vpack.c.b16 %v3322, %v3320
  %v4813 = vpack.c.b16 %v3325, %v3323
  %v4814 = vpack.c.b16 %v3326, %v3324
  %v4815 = vpack.c.b16 %v3329, %v3327
  %v4816 = vpack.c.b16 %v3330, %v3328
  %v4817 = vpack.c.b16 %v3333, %v3331
  %v4818 = vpack.c.b16 %v3334, %v3332
  %v4819 = vpack.c.b16 %v3337, %v3335
  %v4820 = vpack.c.b16 %v3338, %v3336
  %v4821 = vpack.c.b16 %v3341, %v3339
  %v4822 = vpack.c.b16 %v3342, %v3340
  %v4823 = vpack.c.b16 %v3345, %v3343
  %v4824 = vpack.c.b16 %v3346, %v3344
  %v4825 = vpack.c.b16 %v3349, %v3347
  %v4826 = vpack.c.b16 %v3350, %v3348
  %v4827 = vpack.c.b16 %v3353, %v3351
  %v4828 = vpack.c.b16 %v3354, %v3352
  %v4829 = vpack.c.b16 %v3357, %v3355
  %v4830 = vpack.c.b16 %v3358, %v3356
  %v4831 = vpack.c.b16 %v3361, %v3359
  %v4832 = vpack.c.b16 %v3362, %v3360
  %v4833 = vpack.c.b16 %v3365, %v3363
  %v4834 = vpack.c.b16 %v3366, %v3364
  %v4835 = vpack.c.b16 %v3369, %v3367
  %v4836 = vpack.c.b16 %v3370, %v3368
  %v4837 = vpack.c.b16 %v3373, %v3371
  %v4838 = vpack.c.b16 %v3374, %v3372
  %v4839 = vpack.c.b16 %v3377, %v3375
  %v4840 = vpack.c.b16 %v3378, %v3376
  %v4841 = vpack.c.b16 %v3381, %v3379
  %v4842 = vpack.c.b16 %v3382, %v3380
  %v4843 = vpack.c.b16 %v3385, %v3383
  %v4844 = vpack.c.b16 %v3386, %v3384
  %v4845 = vpack.c.b16 %v3389, %v3387
  %v4846 = vpack.c.b16 %v3390, %v3388
  %v4847 = vpack.c.b16 %v3393, %v3391
  %v4848 = vpack.c.b16 %v3394, %v3392
  %v4849 = vpack.c.b16 %v3397, %v3395
  %v4850 = vpack.c.b16 %v3398, %v3396
  %v4851 = vpack.c.b16 %v3401, %v3399
  %v4852 = vpack.c.b16 %v3402, %v3400
  %v4853 = vpack.c.b16 %v3405, %v3403
  %v4854 = vpack.c.b16 %v3406, %v3404
  %v4855 = vpack.c.b16 %v3409, %v3407
  %v4856 = vpack.c.b16 %v3410, %v3408
  %v4857 = vpack.c.b16 %v3413, %v3411
  %v4858 = vpack.c.b16 %v3414, %v3412
  %v4859 = vpack.c.b16 %v3417, %v3415
  %v4860 = vpack.c.b16 %v3418, %v3416
  %v4861 = vpack.c.b16 %v3421, %v3419
  %v4862 = vpack.c.b16 %v3422, %v3420
  %v4863 = vpack.c.b16 %v3425, %v3423
  %v4864 = vpack.c.b16 %v3426, %v3424
  %v4865 = vpack.c.b16 %v3429, %v3427
  %v4866 = vpack.c.b16 %v3430, %v3428
  %v4867 = vpack.c.b16 %v3433, %v3431
  %v4868 = vpack.c.b16 %v3434, %v3432
  %v4869 = vpack.c.b16 %v3437, %v3435
  %v4870 = vpack.c.b16 %v3438, %v3436
  %v4871 = vpack.c.b16 %v3441, %v3439
  %v4872 = vpack.c.b16 %v3442, %v3440
  %v4873 = vpack.c.b16 %v3445, %v3443
  %v4874 = vpack.c.b16 %v3446, %v3444
  %v4875 = vpack.c.b16 %v3449, %v3447
  %v4876 = vpack.c.b16 %v3450, %v3448
  %v4877 = vpack.c.b16 %v3453, %v3451
  %v4878 = vpack.c.b16 %v3454, %v3452
  %v4879 = vpack.c.b16 %v3457, %v3455
  %v4880 = vpack.c.b16 %v3458, %v3456
  %v4881 = vpack.c.b16 %v3461, %v3459
  %v4882 = vpack.c.b16 %v3462, %v3460
  %v4883 = vpack.c.b16 %v3465, %v3463
  %v4884 = vpack.c.b16 %v3466, %v3464
  %v4885 = vpack.c.b16 %v3469, %v3467
  %v4886 = vpack.c.b16 %v3470, %v3468
  %v4887 = vpack.c.b16 %v3473, %v3471
  %v4888 = vpack.c.b16 %v3474, %v3472
  %v4889 = vpack.c.b16 %v3477, %v3475
  %v4890 = vpack.c.b16 %v3478, %v3476
  %v4891 = vpack.c.b16 %v3481, %v3479
  %v4892 = vpack.c.b16 %v3482, %v3480
  %v4893 = vpack.c.b16 %v3485, %v3483
  %v4894 = vpack.c.b16 %v3486, %v3484
  %v4895 = vpack.c.b16 %v3489, %v3487
  %v4896 = vpack.c.b16 %v3490, %v3488
  %v4897 = vpack.c.b16 %v3493, %v3491
  %v4898 = vpack.c.b16 %v3494, %v3492
  %v4899 = vpack.c.b16 %v3497, %v3495
  %v4900 = vpack.c.b16 %v3498, %v3496
  %v4901 = vpack.c.b16 %v3501, %v3499
  %v4902 = vpack.c.b16 %v3502, %v3500
  %v4903 = vpack.c.b16 %v3505, %v3503
  %v4904 = vpack.c.b16 %v3506, %v3504
  %v4905 = vpack.c.b16 %v3509, %v3507
  %v4906 = vpack.c.b16 %v3510, %v3508
  %v4907 = vpack.c.b16 %v3513, %v3511
  %v4908 = vpack.c.b16 %v3514, %v3512
  %v4909 = vpack.c.b16 %v3517, %v3515
  %v4910 = vpack.c.b16 %v3518, %v3516
  %v4911 = vpack.c.b16 %v3521, %v3519
  %v4912 = vpack.c.b16 %v3522, %v3520
  %v4913 = vpack.c.b16 %v3525, %v3523
  %v4914 = vpack.c.b16 %v3526, %v3524
  %v4915 = vpack.c.b16 %v3529, %v3527
  %v4916 = vpack.c.b16 %v3530, %v3528
  %v4917 = vpack.c.b16 %v3533, %v3531
  %v4918 = vpack.c.b16 %v3534, %v3532
  %v4919 = vpack.c.b16 %v3537, %v3535
  %v4920 = vpack.c.b16 %v3538, %v3536
  %v4921 = vpack.c.b16 %v3541, %v3539
  %v4922 = vpack.c.b16 %v3542, %v3540
  %v4923 = vpack.c.b16 %v3545, %v3543
  %v4924 = vpack.c.b16 %v3546, %v3544
  %v4925 = vpack.c.b16 %v3549, %v3547
  %v4926 = vpack.c.b16 %v3550, %v3548
  %v4927 = vpack.c.b16 %v3553, %v3551
  %v4928 = vpack.c.b16 %v3554, %v3552
  %v4929 = vpack.c.b16 %v3557, %v3555
  %v4930 = vpack.c.b16 %v3558, %v3556
  %v4931 = vpack.c.b16 %v3561, %v3559
  %v4932 = vpack.c.b16 %v3562, %v3560
  %v4933 = vpack.c.b16 %v3565, %v3563
  %v4934 = vpack.c.b16 %v3566, %v3564
  %v4935 = vpack.c.b16 %v3569, %v3567
  %v4936 = vpack.c.b16 %v3570, %v3568
  %v4937 = vpack.c.b16 %v3573, %v3571
  %v4938 = vpack.c.b16 %v3574, %v3572
  %v4939 = vpack.c.b16 %v3577, %v3575
  %v4940 = vpack.c.b16 %v3578, %v3576
  %v4941 = vpack.c.b16 %v3581, %v3579
  %v4942 = vpack.c.b16 %v3582, %v3580
  %v4943 = vpack.c.b16 %v3585, %v3583
  %v4944 = vpack.c.b16 %v3586, %v3584
  %v4945 = vpack.c.b16 %v3589, %v3587
  %v4946 = vpack.c.b16 %v3590, %v3588
  %v4947 = vpack.c.b16 %v3593, %v3591
  %v4948 = vpack.c.b16 %v3594, %v3592
  %v4949 = vpack.c.b16 %v3597, %v3595
  %v4950 = vpack.c.b16 %v3598, %v3596
  %v4951 = vpack.c.b16 %v3601, %v3599
  %v4952 = vpack.c.b16 %v3602, %v3600
  %v4953 = vpack.c.b16 %v3605, %v3603
  %v4954 = vpack.c.b16 %v3606, %v3604
  %v4955 = vpack.c.b16 %v3609, %v3607
  %v4956 = vpack.c.b16 %v3610, %v3608
  %v4957 = vpack.c.b16 %v3613, %v3611
  %v4958 = vpack.c.b16 %v3614, %v3612
  %v4959 = vpack.c.b16 %v3617, %v3615
  %v4960 = vpack.c.b16 %v3618, %v3616
  %v4961 = vpack.c.b16 %v3621, %v3619
  %v4962 = vpack.c.b16 %v3622, %v3620
  %v4963 = vpack.c.b16 %v3625, %v3623
  %v4964 = vpack.c.b16 %v3626, %v3624
  %v4965 = vpack.c.b16 %v3629, %v3627
  %v4966 = vpack.c.b16 %v3630, %v3628
  %v4967 = vpack.c.b16 %v3633, %v3631
  %v4968 = vpack.c.b16 %v3634, %v3632
  %v4969 = vpack.c.b16 %v3637, %v3635
  %v4970 = vpack.c.b16 %v3638, %v3636
  %v4971 = vpack.c.b16 %v3641, %v3639
  %v4972 = vpack.c.b16 %v3642, %v3640
  %v4973 = vpack.c.b16 %v3645, %v3643
  %v4974 = vpack.c.b16 %v3646, %v3644
  %v4975 = vpack.c.b16 %v3649, %v3647
  %v4976 = vpack.c.b16 %v3650, %v3648
  %v4977 = vpack.c.b16 %v3653, %v3651
  %v4978 = vpack.c.b16 %v3654, %v3652
  %v4979 = vpack.c.b16 %v3657, %v3655
  %v4980 = vpack.c.b16 %v3658, %v3656
  %v4981 = vpack.c.b16 %v3661, %v3659
  %v4982 = vpack.c.b16 %v3662, %v3660
  %v4983 = vpack.c.b16 %v3665, %v3663
  %v4984 = vpack.c.b16 %v3666, %v3664
  %v4985 = vpack.c.b16 %v3669, %v3667
  %v4986 = vpack.c.b16 %v3670, %v3668
  %v4987 = vpack.c.b16 %v3673, %v3671
  %v4988 = vpack.c.b16 %v3674, %v3672
  %v4989 = vpack.c.b16 %v3677, %v3675
  %v4990 = vpack.c.b16 %v3678, %v3676
  %v4991 = vpack.c.b16 %v3681, %v3679
  %v4992 = vpack.c.b16 %v3682, %v3680
  %v4993 = vpack.c.b16 %v3685, %v3683
  %v4994 = vpack.c.b16 %v3686, %v3684
  %v4995 = vpack.c.b16 %v3689, %v3687
  %v4996 = vpack.c.b16 %v3690, %v3688
  %v4997 = vpack.c.b16 %v3693, %v3691
  %v4998 = vpack.c.b16 %v3694, %v3692
  %v4999 = vpack.c.b16 %v3697, %v3695
  %v5000 = vpack.c.b16 %v3698, %v3696
  %v5001 = vpack.c.b16 %v3701, %v3699
  %v5002 = vpack.c.b16 %v3702, %v3700
  %v5003 = vpack.c.b16 %v3705, %v3703
  %v5004 = vpack.c.b16 %v3706, %v3704
  %v5005 = vpack.c.b16 %v3709, %v3707
  %v5006 = vpack.c.b16 %v3710, %v3708
  %v5007 = vpack.c.b16 %v3713, %v3711
  %v5008 = vpack.c.b16 %v3714, %v3712
  %v5009 = vpack.c.b16 %v3717, %v3715
  %v5010 = vpack.c.b16 %v3718, %v3716
  %v5011 = vpack.c.b16 %v3721, %v3719
  %v5012 = vpack.c.b16 %v3722, %v3720
  %v5013 = vpack.c.b16 %v3725, %v3723
  %v5014 = vpack.c.b16 %v3726, %v3724
  %v5015 = vpack.c.b16 %v3729, %v3727
  %v5016 = vpack.c.b16 %v3730, %v3728
  %v5017 = vpack.c.b16 %v3733, %v3731
  %v5018 = vpack.c.b16 %v3734, %v3732
  %v5019 = vpack.c.b16 %v3737, %v3735
  %v5020 = vpack.c.b16 %v3738, %v3736
  %v5021 = vpack.c.b16 %v3741, %v3739
  %v5022 = vpack.c.b16 %v3742, %v3740
  %v5023 = vpack.c.b16 %v3745, %v3743
  %v5024 = vpack.c.b16 %v3746, %v3744
  %v5025 = vpack.c.b16 %v3749, %v3747
  %v5026 = vpack.c.b16 %v3750, %v3748
  %v5027 = vpack.c.b16 %v3753, %v3751
  %v5028 = vpack.c.b16 %v3754, %v3752
  %v5029 = vpack.c.b16 %v3757, %v3755
  %v5030 = vpack.c.b16 %v3758, %v3756
  %v5031 = vpack.c.b16 %v3761, %v3759
  %v5032 = vpack.c.b16 %v3762, %v3760
  %v5033 = vpack.c.b16 %v3765, %v3763
  %v5034 = vpack.c.b16 %v3766, %v3764
  %v5035 = vpack.c.b16 %v3769, %v3767
  %v5036 = vpack.c.b16 %v3770, %v3768
  %v5037 = vpack.c.b16 %v3773, %v3771
  %v5038 = vpack.c.b16 %v3774, %v3772
  %v5039 = vpack.c.b16 %v3777, %v3775
  %v5040 = vpack.c.b16 %v3778, %v3776
  %v5041 = vpack.c.b16 %v3781, %v3779
  %v5042 = vpack.c.b16 %v3782, %v3780
  %v5043 = vpack.c.b16 %v3785, %v3783
  %v5044 = vpack.c.b16 %v3786, %v3784
  %v5045 = vpack.c.b16 %v3789, %v3787
  %v5046 = vpack.c.b16 %v3790, %v3788
  %v5047 = vpack.c.b16 %v3793, %v3791
  %v5048 = vpack.c.b16 %v3794, %v3792
  %v5049 = vpack.c.b16 %v3797, %v3795
  %v5050 = vpack.c.b16 %v3798, %v3796
  %v5051 = vpack.c.b16 %v3801, %v3799
  %v5052 = vpack.c.b16 %v3802, %v3800
  %v5053 = vpack.c.b16 %v3805, %v3803
  %v5054 = vpack.c.b16 %v3806, %v3804
  %v5055 = vpack.c.b16 %v3809, %v3807
  %v5056 = vpack.c.b16 %v3810, %v3808
  %v5057 = vpack.c.b16 %v3813, %v3811
  %v5058 = vpack.c.b16 %v3814, %v3812
  %v5059 = vpack.c.b16 %v3817, %v3815
  %v5060 = vpack.c.b16 %v3818, %v3816
  %v5061 = vpack.c.b16 %v3821, %v3819
  %v5062 = vpack.c.b16 %v3822, %v3820
  %v5063 = vpack.c.b16 %v3825, %v3823
  %v5064 = vpack.c.b16 %v3826, %v3824
  %v5065 = vpack.c.b16 %v3829, %v3827
  %v5066 = vpack.c.b16 %v3830, %v3828
  %v5067 = vpack.c.b16 %v3833, %v3831
  %v5068 = vpack.c.b16 %v3834, %v3832
  %v5069 = vpack.c.b16 %v3837, %v3835
  %v5070 = vpack.c.b16 %v3838, %v3836
  %v5071 = vpack.c.b16 %v3841, %v3839
  %v5072 = vpack.c.b16 %v3842, %v3840
  %v5073 = vpack.c.b16 %v3845, %v3843
  %v5074 = vpack.c.b16 %v3846, %v3844
  %v5075 = vpack.c.b16 %v3849, %v3847
  %v5076 = vpack.c.b16 %v3850, %v3848
  %v5077 = vpack.c.b16 %v3853, %v3851
  %v5078 = vpack.c.b16 %v3854, %v3852
  %v5079 = vpack.c.b16 %v3857, %v3855
  %v5080 = vpack.c.b16 %v3858, %v3856
  %v5081 = vpack.c.b16 %v3861, %v3859
  %v5082 = vpack.c.b16 %v3862, %v3860
  %v5083 = vpack.c.b16 %v3865, %v3863
  %v5084 = vpack.c.b16 %v3866, %v3864
  %v5085 = vpack.c.b16 %v3869, %v3867
  %v5086 = vpack.c.b16 %v3870, %v3868
  %v5087 = vpack.c.b16 %v3873, %v3871
  %v5088 = vpack.c.b16 %v3874, %v3872
  %v5089 = vpack.c.b16 %v3877, %v3875
  %v5090 = vpack.c.b16 %v3878, %v3876
  %v5091 = vpack.c.b16 %v3881, %v3879
  %v5092 = vpack.c.b16 %v3882, %v3880
  %v5093 = vpack.c.b16 %v3885, %v3883
  %v5094 = vpack.c.b16 %v3886, %v3884
  %v5095 = vpack.c.b16 %v3889, %v3887
  %v5096 = vpack.c.b16 %v3890, %v3888
  %v5097 = vpack.c.b16 %v3893, %v3891
  %v5098 = vpack.c.b16 %v3894, %v3892
  %v5099 = vpack.c.b16 %v3897, %v3895
  %v5100 = vpack.c.b16 %v3898, %v3896
  %v5101 = vpack.c.b16 %v3901, %v3899
  %v5102 = vpack.c.b16 %v3902, %v3900
  %v5103 = vpack.c.b16 %v3905, %v3903
  %v5104 = vpack.c.b16 %v3906, %v3904
  %v5105 = vpack.c.b16 %v3909, %v3907
  %v5106 = vpack.c.b16 %v3910, %v3908
  %v5107 = vpack.c.b16 %v3913, %v3911
  %v5108 = vpack.c.b16 %v3914, %v3912
  %v5109 = vpack.c.b16 %v3917, %v3915
  %v5110 = vpack.c.b16 %v3918, %v3916
  %v5111 = vpack.c.b16 %v3921, %v3919
  %v5112 = vpack.c.b16 %v3922, %v3920
  %v5113 = vpack.c.b16 %v3925, %v3923
  %v5114 = vpack.c.b16 %v3926, %v3924
  %v5115 = vpack.c.b16 %v3929, %v3927
  %v5116 = vpack.c.b16 %v3930, %v3928
  %v5117 = vpack.c.b16 %v3933, %v3931
  %v5118 = vpack.c.b16 %v3934, %v3932
  %v5119 = vpack.c.b16 %v3937, %v3935
  %v5120 = vpack.c.b16 %v3938, %v3936
  %v5121 = vpack.c.b16 %v3941, %v3939
  %v5122 = vpack.c.b16 %v3942, %v3940
  %v5123 = vpack.c.b16 %v3945, %v3943
  %v5124 = vpack.c.b16 %v3946, %v3944
  %v5125 = vpack.c.b16 %v3949, %v3947
  %v5126 = vpack.c.b16 %v3950, %v3948
  %v5127 = vpack.c.b16 %v3953, %v3951
  %v5128 = vpack.c.b16 %v3954, %v3952
  %v5129 = vpack.c.b16 %v3957, %v3955
  %v5130 = vpack.c.b16 %v3958, %v3956
  %v5131 = vpack.c.b16 %v3961, %v3959
  %v5132 = vpack.c.b16 %v3962, %v3960
  %v5133 = vpack.c.b16 %v3965, %v3963
  %v5134 = vpack.c.b16 %v3966, %v3964
  %v5135 = vpack.c.b16 %v3969, %v3967
  %v5136 = vpack.c.b16 %v3970, %v3968
  %v5137 = vpack.c.b16 %v3973, %v3971
  %v5138 = vpack.c.b16 %v3974, %v3972
  %v5139 = vpack.c.b16 %v3977, %v3975
  %v5140 = vpack.c.b16 %v3978, %v3976
  %v5141 = vpack.c.b16 %v3981, %v3979
  %v5142 = vpack.c.b16 %v3982, %v3980
  %v5143 = vpack.c.b16 %v3985, %v3983
  %v5144 = vpack.c.b16 %v3986, %v3984
  %v5145 = vpack.c.b16 %v3989, %v3987
  %v5146 = vpack.c.b16 %v3990, %v3988
  %v5147 = vpack.c.b16 %v3993, %v3991
  %v5148 = vpack.c.b16 %v3994, %v3992
  %v5149 = vpack.c.b16 %v3997, %v3995
  %v5150 = vpack.c.b16 %v3998, %v3996
  %v5151 = vpack.c.b16 %v4001, %v3999
  %v5152 = vpack.c.b16 %v4002, %v4000
  %v5153 = vpack.c.b16 %v4005, %v4003
  %v5154 = vpack.c.b16 %v4006, %v4004
  %v5155 = vpack.c.b16 %v4009, %v4007
  %v5156 = vpack.c.b16 %v4010, %v4008
  %v5157 = vpack.c.b16 %v4013, %v4011
  %v5158 = vpack.c.b16 %v4014, %v4012
  %v5159 = vpack.c.b16 %v4017, %v4015
  %v5160 = vpack.c.b16 %v4018, %v4016
  %v5161 = vpack.c.b16 %v4021, %v4019
  %v5162 = vpack.c.b16 %v4022, %v4020
  %v5163 = vpack.c.b16 %v4025, %v4023
  %v5164 = vpack.c.b16 %v4026, %v4024
  %v5165 = vpack.c.b16 %v4029, %v4027
  %v5166 = vpack.c.b16 %v4030, %v4028
  %v5167 = vpack.c.b16 %v4033, %v4031
  %v5168 = vpack.c.b16 %v4034, %v4032
  %v5169 = vpack.c.b16 %v4037, %v4035
  %v5170 = vpack.c.b16 %v4038, %v4036
  %v5171 = vpack.c.b16 %v4041, %v4039
  %v5172 = vpack.c.b16 %v4042, %v4040
  %v5173 = vpack.c.b16 %v4045, %v4043
  %v5174 = vpack.c.b16 %v4046, %v4044
  %v5175 = vpack.c.b16 %v4049, %v4047
  %v5176 = vpack.c.b16 %v4050, %v4048
  %v5177 = vpack.c.b16 %v4053, %v4051
  %v5178 = vpack.c.b16 %v4054, %v4052
  %v5179 = vpack.c.b16 %v4057, %v4055
  %v5180 = vpack.c.b16 %v4058, %v4056
  %v5181 = vpack.c.b16 %v4061, %v4059
  %v5182 = vpack.c.b16 %v4062, %v4060
  %v5183 = vpack.c.b16 %v4065, %v4063
  %v5184 = vpack.c.b16 %v4066, %v4064
  %v5185 = vpack.c.b16 %v4069, %v4067
  %v5186 = vpack.c.b16 %v4070, %v4068
  %v5187 = vpack.c.b16 %v4073, %v4071
  %v5188 = vpack.c.b16 %v4074, %v4072
  %v5189 = vpack.c.b16 %v4077, %v4075
  %v5190 = vpack.c.b16 %v4078, %v4076
  %v5191 = vpack.c.b16 %v4081, %v4079
  %v5192 = vpack.c.b16 %v4082, %v4080
  %v5193 = vpack.c.b16 %v4085, %v4083
  %v5194 = vpack.c.b16 %v4086, %v4084
  %v5195 = vpack.c.b16 %v4089, %v4087
  %v5196 = vpack.c.b16 %v4090, %v4088
  %v5197 = vpack.c.b16 %v4093, %v4091
  %v5198 = vpack.c.b16 %v4094, %v4092
  %v5199 = vpack.c.b16 %v4097, %v4095
  %v5200 = vpack.c.b16 %v4098, %v4096
  %v5201 = vpack.c.b16 %v4101, %v4099
  %v5202 = vpack.c.b16 %v4102, %v4100
  %v5203 = vpack.c.b16 %v4105, %v4103
  %v5204 = vpack.c.b16 %v4106, %v4104
  %v5205 = vpack.c.b16 %v4109, %v4107
  %v5206 = vpack.c.b16 %v4110, %v4108
  %v5207 = vpack.c.b16 %v4113, %v4111
  %v5208 = vpack.c.b16 %v4114, %v4112
  %v5209 = vpack.c.b16 %v4117, %v4115
  %v5210 = vpack.c.b16 %v4118, %v4116
  %v5211 = vpack.c.b16 %v4121, %v4119
  %v5212 = vpack.c.b16 %v4122, %v4120
  %v5213 = vpack.c.b16 %v4125, %v4123
  %v5214 = vpack.c.b16 %v4126, %v4124
  %v5215 = vpack.c.b16 %v4129, %v4127
  %v5216 = vpack.c.b16 %v4130, %v4128
  %v5217 = vpack.c.b16 %v4133, %v4131
  %v5218 = vpack.c.b16 %v4134, %v4132
  %v5219 = vpack.c.b16 %v4137, %v4135
  %v5220 = vpack.c.b16 %v4138, %v4136
  %v5221 = vpack.c.b16 %v4141, %v4139
  %v5222 = vpack.c.b16 %v4142, %v4140
  %v5223 = vpack.c.b16 %v4145, %v4143
  %v5224 = vpack.c.b16 %v4146, %v4144
  %v5225 = vpack.c.b16 %v4149, %v4147
  %v5226 = vpack.c.b16 %v4150, %v4148
  %v5227 = vpack.c.b16 %v4153, %v4151
  %v5228 = vpack.c.b16 %v4154, %v4152
  %v5229 = vpack.c.b16 %v4157, %v4155
  %v5230 = vpack.c.b16 %v4158, %v4156
  %v5231 = vpack.c.b16 %v4161, %v4159
  %v5232 = vpack.c.b16 %v4162, %v4160
  %v5233 = vpack.c.b16 %v4165, %v4163
  %v5234 = vpack.c.b16 %v4166, %v4164
  %v5235 = vpack.c.b16 %v4169, %v4167
  %v5236 = vpack.c.b16 %v4170, %v4168
  %v5237 = vpack.c.b16 %v4173, %v4171
  %v5238 = vpack.c.b16 %v4174, %v4172
  %v5239 = vpack.c.b16 %v4177, %v4175
  %v5240 = vpack.c.b16 %v4178, %v4176
  %v5241 = vpack.c.b16 %v4181, %v4179
  %v5242 = vpack.c.b16 %v4182, %v4180
  %v5243 = vpack.c.b16 %v4185, %v4183
  %v5244 = vpack.c.b16 %v4186, %v4184
  %v5245 = vpack.c.b16 %v4189, %v4187
  %v5246 = vpack.c.b16 %v4190, %v4188
  %v5247 = vpack.c.b16 %v4193, %v4191
  %v5248 = vpack.c.b16 %v4194, %v4192
  %v5249 = vpack.c.b16 %v4197, %v4195
  %v5250 = vpack.c.b16 %v4198, %v4196
  %v5251 = vpack.c.b16 %v4201, %v4199
  %v5252 = vpack.c.b16 %v4202, %v4200
  %v5253 = vpack.c.b16 %v4205, %v4203
  %v5254 = vpack.c.b16 %v4206, %v4204
  %v5255 = vpack.c.b16 %v4209, %v4207
  %v5256 = vpack.c.b16 %v4210, %v4208
  %v5257 = vpack.c.b16 %v4213, %v4211
  %v5258 = vpack.c.b16 %v4214, %v4212
  %v5259 = vpack.c.b16 %v4217, %v4215
  %v5260 = vpack.c.b16 %v4218, %v4216
  %v5261 = vpack.c.b16 %v4221, %v4219
  %v5262 = vpack.c.b16 %v4222, %v4220
  %v5263 = vpack.c.b16 %v4225, %v4223
  %v5264 = vpack.c.b16 %v4226, %v4224
  %v5265 = vpack.c.b16 %v4229, %v4227
  %v5266 = vpack.c.b16 %v4230, %v4228
  %v5267 = vpack.c.b16 %v4233, %v4231
  %v5268 = vpack.c.b16 %v4234, %v4232
  %v5269 = vpack.c.b16 %v4237, %v4235
  %v5270 = vpack.c.b16 %v4238, %v4236
  %v5271 = vpack.c.b16 %v4241, %v4239
  %v5272 = vpack.c.b16 %v4242, %v4240
  %v5273 = vpack.c.b16 %v4245, %v4243
  %v5274 = vpack.c.b16 %v4246, %v4244
  %v5275 = vpack.c.b16 %v4249, %v4247
  %v5276 = vpack.c.b16 %v4250, %v4248
  %v5277 = vpack.c.b16 %v4253, %v4251
  %v5278 = vpack.c.b16 %v4254, %v4252
  %v5279 = vpack.c.b16 %v4257, %v4255
  %v5280 = vpack.c.b16 %v4258, %v4256
  %v5281 = vpack.c.b16 %v4261, %v4259
  %v5282 = vpack.c.b16 %v4262, %v4260
  %v5283 = vpack.c.b16 %v4265, %v4263
  %v5284 = vpack.c.b16 %v4266, %v4264
  %v5285 = vpack.c.b16 %v4269, %v4267
  %v5286 = vpack.c.b16 %v4270, %v4268
  %v5287 = vpack.c.b16 %v4273, %v4271
  %v5288 = vpack.c.b16 %v4274, %v4272
  %v5289 = vpack.c.b16 %v4277, %v4275
  %v5290 = vpack.c.b16 %v4278, %v4276
  %v5291 = vpack.c.b16 %v4281, %v4279
  %v5292 = vpack.c.b16 %v4282, %v4280
  %v5293 = vpack.c.b16 %v4285, %v4283
  %v5294 = vpack.c.b16 %v4286, %v4284
  %v5295 = vpack.c.b16 %v4289, %v4287
  %v5296 = vpack.c.b16 %v4290, %v4288
  %v5297 = vpack.c.b16 %v4293, %v4291
  %v5298 = vpack.c.b16 %v4294, %v4292
  %v5299 = vpack.c.b16 %v4297, %v4295
  %v5300 = vpack.c.b16 %v4298, %v4296
  %v5301 = vpack.c.b16 %v4301, %v4299
  %v5302 = vpack.c.b16 %v4302, %v4300
  %vm6303 = vcmask 523264
  %v6305 = vsel %vm6303, %v1240, 0
  %6307 = vmatprep.subr.bf16.mxu0 %v4304
  %6308 = vmatpush1.bf16.msra.mxu0 %v4303
  %6309 = vmatprep.subr.bf16.mxu0 %v4306
  %6310 = vmatpush1.bf16.msra.mxu0 %v4305
  %6311 = vmatprep.subr.bf16.mxu0 %v4308
  %6312 = vmatpush1.bf16.msra.mxu0 %v4307
  %6313 = vmatprep.subr.bf16.mxu0 %v4310
  %6314 = vmatpush1.bf16.msra.mxu0 %v4309
  %6315 = vmatprep.subr.bf16.mxu0 %v4312
  %6316 = vmatpush1.bf16.msra.mxu0 %v4311
  %6317 = vmatprep.subr.bf16.mxu0 %v4314
  %6318 = vmatpush1.bf16.msra.mxu0 %v4313
  %6319 = vmatprep.subr.bf16.mxu0 %v4316
  %6320 = vmatpush1.bf16.msra.mxu0 %v4315
  %6321 = vmatprep.subr.bf16.mxu0 %v4318
  %6322 = vmatpush1.bf16.msra.mxu0 %v4317
  %6323 = vmatprep.subr.bf16.mxu0 %v4320
  %6324 = vmatpush1.bf16.msra.mxu0 %v4319
  %6325 = vmatprep.subr.bf16.mxu0 %v4322
  %6326 = vmatpush1.bf16.msra.mxu0 %v4321
  %6327 = vmatprep.subr.bf16.mxu0 %v4324
  %6328 = vmatpush1.bf16.msra.mxu0 %v4323
  %6329 = vmatprep.subr.bf16.mxu0 %v4326
  %6330 = vmatpush1.bf16.msra.mxu0 %v4325
  %6331 = vmatprep.subr.bf16.mxu0 %v4328
  %6332 = vmatpush1.bf16.msra.mxu0 %v4327
  %6333 = vmatprep.subr.bf16.mxu0 %v4330
  %6334 = vmatpush1.bf16.msra.mxu0 %v4329
  %6335 = vmatprep.subr.bf16.mxu0 %v4332
  %6336 = vmatpush1.bf16.msra.mxu0 %v4331
  %6337 = vmatprep.subr.bf16.mxu0 %v4334
  %6338 = vmatpush1.bf16.msra.mxu0 %v4333
  %6339 = vmatprep.mubr.bf16.mxu0 %v1179
  %6340 = vmatmul.mubr.bf16.gmra.mrb[0].mxu0 %v1178
  %v6341 = vpop.f32.mrb[0].mxu0
  %v6342 = vadd.f32 %v1076, %v6341
  %v6343 = vpop.f32.mrb[0].mxu0
  %v6344 = vadd.f32 %v1080, %v6343
  %v6345 = vpop.f32.mrb[0].mxu0
  %v6346 = vpop.f32.mrb[0].mxu0
  %6347 = vdwg.mxu0
  %6348 = vmatprep.subr.bf16.mxu0 %v4336
  %6349 = vmatpush1.bf16.msra.mxu0 %v4335
  %6350 = vmatprep.subr.bf16.mxu0 %v4338
  %6351 = vmatpush1.bf16.msra.mxu0 %v4337
  %6352 = vmatprep.subr.bf16.mxu0 %v4340
  %6353 = vmatpush1.bf16.msra.mxu0 %v4339
  %6354 = vmatprep.subr.bf16.mxu0 %v4342
  %6355 = vmatpush1.bf16.msra.mxu0 %v4341
  %6356 = vmatprep.subr.bf16.mxu0 %v4344
  %6357 = vmatpush1.bf16.msra.mxu0 %v4343
  %6358 = vmatprep.subr.bf16.mxu0 %v4346
  %6359 = vmatpush1.bf16.msra.mxu0 %v4345
  %6360 = vmatprep.subr.bf16.mxu0 %v4348
  %6361 = vmatpush1.bf16.msra.mxu0 %v4347
  %6362 = vmatprep.subr.bf16.mxu0 %v4350
  %6363 = vmatpush1.bf16.msra.mxu0 %v4349
  %6364 = vmatprep.subr.bf16.mxu0 %v4352
  %6365 = vmatpush1.bf16.msra.mxu0 %v4351
  %6366 = vmatprep.subr.bf16.mxu0 %v4354
  %6367 = vmatpush1.bf16.msra.mxu0 %v4353
  %6368 = vmatprep.subr.bf16.mxu0 %v4356
  %6369 = vmatpush1.bf16.msra.mxu0 %v4355
  %6370 = vmatprep.subr.bf16.mxu0 %v4358
  %6371 = vmatpush1.bf16.msra.mxu0 %v4357
  %6372 = vmatprep.subr.bf16.mxu0 %v4360
  %6373 = vmatpush1.bf16.msra.mxu0 %v4359
  %6374 = vmatprep.subr.bf16.mxu0 %v4362
  %6375 = vmatpush1.bf16.msra.mxu0 %v4361
  %6376 = vmatprep.subr.bf16.mxu0 %v4364
  %6377 = vmatpush1.bf16.msra.mxu0 %v4363
  %6378 = vmatprep.subr.bf16.mxu0 %v4366
  %6379 = vmatpush1.bf16.msra.mxu0 %v4365
  %6380 = vmatprep.mubr.bf16.mxu0 %v1181
  %6381 = vmatmul.mubr.bf16.gmra.mrb[0].mxu0 %v1180
  %v6382 = vpop.f32.mrb[0].mxu0
  %v6383 = vadd.f32 %v6342, %v6382
  %v6384 = vpop.f32.mrb[0].mxu0
  %v6385 = vadd.f32 %v6344, %v6384
  %v6386 = vpop.f32.mrb[0].mxu0
  %v6387 = vpop.f32.mrb[0].mxu0
  %6388 = vdwg.mxu0
  %6389 = vmatprep.subr.bf16.mxu0 %v4368
  %6390 = vmatpush1.bf16.msra.mxu0 %v4367
  %6391 = vmatprep.subr.bf16.mxu0 %v4370
  %6392 = vmatpush1.bf16.msra.mxu0 %v4369
  %6393 = vmatprep.subr.bf16.mxu0 %v4372
  %6394 = vmatpush1.bf16.msra.mxu0 %v4371
  %6395 = vmatprep.subr.bf16.mxu0 %v4374
  %6396 = vmatpush1.bf16.msra.mxu0 %v4373
  %6397 = vmatprep.subr.bf16.mxu0 %v4376
  %6398 = vmatpush1.bf16.msra.mxu0 %v4375
  %6399 = vmatprep.subr.bf16.mxu0 %v4378
  %6400 = vmatpush1.bf16.msra.mxu0 %v4377
  %6401 = vmatprep.subr.bf16.mxu0 %v4380
  %6402 = vmatpush1.bf16.msra.mxu0 %v4379
  %6403 = vmatprep.subr.bf16.mxu0 %v4382
  %6404 = vmatpush1.bf16.msra.mxu0 %v4381
  %6405 = vmatprep.subr.bf16.mxu0 %v4384
  %6406 = vmatpush1.bf16.msra.mxu0 %v4383
  %6407 = vmatprep.subr.bf16.mxu0 %v4386
  %6408 = vmatpush1.bf16.msra.mxu0 %v4385
  %6409 = vmatprep.subr.bf16.mxu0 %v4388
  %6410 = vmatpush1.bf16.msra.mxu0 %v4387
  %6411 = vmatprep.subr.bf16.mxu0 %v4390
  %6412 = vmatpush1.bf16.msra.mxu0 %v4389
  %6413 = vmatprep.subr.bf16.mxu0 %v4392
  %6414 = vmatpush1.bf16.msra.mxu0 %v4391
  %6415 = vmatprep.subr.bf16.mxu0 %v4394
  %6416 = vmatpush1.bf16.msra.mxu0 %v4393
  %6417 = vmatprep.subr.bf16.mxu0 %v4396
  %6418 = vmatpush1.bf16.msra.mxu0 %v4395
  %6419 = vmatprep.subr.bf16.mxu0 %v4398
  %6420 = vmatpush1.bf16.msra.mxu0 %v4397
  %6421 = vmatprep.mubr.bf16.mxu0 %v1183
  %6422 = vmatmul.mubr.bf16.gmra.mrb[0].mxu0 %v1182
  %v6423 = vpop.f32.mrb[0].mxu0
  %v6424 = vadd.f32 %v6383, %v6423
  %v6425 = vpop.f32.mrb[0].mxu0
  %v6426 = vadd.f32 %v6385, %v6425
  %v6427 = vpop.f32.mrb[0].mxu0
  %v6428 = vpop.f32.mrb[0].mxu0
  %6429 = vdwg.mxu0
  %6430 = vmatprep.subr.bf16.mxu0 %v4400
  %6431 = vmatpush1.bf16.msra.mxu0 %v4399
  %6432 = vmatprep.subr.bf16.mxu0 %v4402
  %6433 = vmatpush1.bf16.msra.mxu0 %v4401
  %6434 = vmatprep.subr.bf16.mxu0 %v4404
  %6435 = vmatpush1.bf16.msra.mxu0 %v4403
  %6436 = vmatprep.subr.bf16.mxu0 %v4406
  %6437 = vmatpush1.bf16.msra.mxu0 %v4405
  %6438 = vmatprep.subr.bf16.mxu0 %v4408
  %6439 = vmatpush1.bf16.msra.mxu0 %v4407
  %6440 = vmatprep.subr.bf16.mxu0 %v4410
  %6441 = vmatpush1.bf16.msra.mxu0 %v4409
  %6442 = vmatprep.subr.bf16.mxu0 %v4412
  %6443 = vmatpush1.bf16.msra.mxu0 %v4411
  %6444 = vmatprep.subr.bf16.mxu0 %v4414
  %6445 = vmatpush1.bf16.msra.mxu0 %v4413
  %6446 = vmatprep.subr.bf16.mxu0 %v4416
  %6447 = vmatpush1.bf16.msra.mxu0 %v4415
  %6448 = vmatprep.subr.bf16.mxu0 %v4418
  %6449 = vmatpush1.bf16.msra.mxu0 %v4417
  %6450 = vmatprep.subr.bf16.mxu0 %v4420
  %6451 = vmatpush1.bf16.msra.mxu0 %v4419
  %6452 = vmatprep.subr.bf16.mxu0 %v4422
  %6453 = vmatpush1.bf16.msra.mxu0 %v4421
  %6454 = vmatprep.subr.bf16.mxu0 %v4424
  %6455 = vmatpush1.bf16.msra.mxu0 %v4423
  %6456 = vmatprep.subr.bf16.mxu0 %v4426
  %6457 = vmatpush1.bf16.msra.mxu0 %v4425
  %6458 = vmatprep.subr.bf16.mxu0 %v4428
  %6459 = vmatpush1.bf16.msra.mxu0 %v4427
  %6460 = vmatprep.subr.bf16.mxu0 %v4430
  %6461 = vmatpush1.bf16.msra.mxu0 %v4429
  %6462 = vmatprep.mubr.bf16.mxu0 %v1185
  %6463 = vmatmul.mubr.bf16.gmra.mrb[0].mxu0 %v1184
  %v6464 = vpop.f32.mrb[0].mxu0
  %v6465 = vadd.f32 %v6424, %v6464
  %v6466 = vpop.f32.mrb[0].mxu0
  %v6467 = vadd.f32 %v6426, %v6466
  %v6468 = vpop.f32.mrb[0].mxu0
  %v6469 = vpop.f32.mrb[0].mxu0
  %6470 = vdwg.mxu0
  %6471 = vmatprep.subr.bf16.mxu0 %v4432
  %6472 = vmatpush1.bf16.msra.mxu0 %v4431
  %6473 = vmatprep.subr.bf16.mxu0 %v4434
  %6474 = vmatpush1.bf16.msra.mxu0 %v4433
  %6475 = vmatprep.subr.bf16.mxu0 %v4436
  %6476 = vmatpush1.bf16.msra.mxu0 %v4435
  %6477 = vmatprep.subr.bf16.mxu0 %v4438
  %6478 = vmatpush1.bf16.msra.mxu0 %v4437
  %6479 = vmatprep.subr.bf16.mxu0 %v4440
  %6480 = vmatpush1.bf16.msra.mxu0 %v4439
  %6481 = vmatprep.subr.bf16.mxu0 %v4442
  %6482 = vmatpush1.bf16.msra.mxu0 %v4441
  %6483 = vmatprep.subr.bf16.mxu0 %v4444
  %6484 = vmatpush1.bf16.msra.mxu0 %v4443
  %6485 = vmatprep.subr.bf16.mxu0 %v4446
  %6486 = vmatpush1.bf16.msra.mxu0 %v4445
  %6487 = vmatprep.subr.bf16.mxu0 %v4448
  %6488 = vmatpush1.bf16.msra.mxu0 %v4447
  %6489 = vmatprep.subr.bf16.mxu0 %v4450
  %6490 = vmatpush1.bf16.msra.mxu0 %v4449
  %6491 = vmatprep.subr.bf16.mxu0 %v4452
  %6492 = vmatpush1.bf16.msra.mxu0 %v4451
  %6493 = vmatprep.subr.bf16.mxu0 %v4454
  %6494 = vmatpush1.bf16.msra.mxu0 %v4453
  %6495 = vmatprep.subr.bf16.mxu0 %v4456
  %6496 = vmatpush1.bf16.msra.mxu0 %v4455
  %6497 = vmatprep.subr.bf16.mxu0 %v4458
  %6498 = vmatpush1.bf16.msra.mxu0 %v4457
  %6499 = vmatprep.subr.bf16.mxu0 %v4460
  %6500 = vmatpush1.bf16.msra.mxu0 %v4459
  %6501 = vmatprep.subr.bf16.mxu0 %v4462
  %6502 = vmatpush1.bf16.msra.mxu0 %v4461
  %6503 = vmatprep.mubr.bf16.mxu0 %v1187
  %6504 = vmatmul.mubr.bf16.gmra.mrb[0].mxu0 %v1186
  %v6505 = vpop.f32.mrb[0].mxu0
  %v6506 = vadd.f32 %v6465, %v6505
  %v6507 = vpop.f32.mrb[0].mxu0
  %v6508 = vadd.f32 %v6467, %v6507
  %v6509 = vpop.f32.mrb[0].mxu0
  %v6510 = vpop.f32.mrb[0].mxu0
  %6511 = vdwg.mxu0
  %6512 = vmatprep.subr.bf16.mxu0 %v4464
  %6513 = vmatpush1.bf16.msra.mxu0 %v4463
  %6514 = vmatprep.subr.bf16.mxu0 %v4466
  %6515 = vmatpush1.bf16.msra.mxu0 %v4465
  %6516 = vmatprep.subr.bf16.mxu0 %v4468
  %6517 = vmatpush1.bf16.msra.mxu0 %v4467
  %6518 = vmatprep.subr.bf16.mxu0 %v4470
  %6519 = vmatpush1.bf16.msra.mxu0 %v4469
  %6520 = vmatprep.subr.bf16.mxu0 %v4472
  %6521 = vmatpush1.bf16.msra.mxu0 %v4471
  %6522 = vmatprep.subr.bf16.mxu0 %v4474
  %6523 = vmatpush1.bf16.msra.mxu0 %v4473
  %6524 = vmatprep.subr.bf16.mxu0 %v4476
  %6525 = vmatpush1.bf16.msra.mxu0 %v4475
  %6526 = vmatprep.subr.bf16.mxu0 %v4478
  %6527 = vmatpush1.bf16.msra.mxu0 %v4477
  %6528 = vmatprep.subr.bf16.mxu0 %v4480
  %6529 = vmatpush1.bf16.msra.mxu0 %v4479
  %6530 = vmatprep.subr.bf16.mxu0 %v4482
  %6531 = vmatpush1.bf16.msra.mxu0 %v4481
  %6532 = vmatprep.subr.bf16.mxu0 %v4484
  %6533 = vmatpush1.bf16.msra.mxu0 %v4483
  %6534 = vmatprep.subr.bf16.mxu0 %v4486
  %6535 = vmatpush1.bf16.msra.mxu0 %v4485
  %6536 = vmatprep.subr.bf16.mxu0 %v4488
  %6537 = vmatpush1.bf16.msra.mxu0 %v4487
  %6538 = vmatprep.subr.bf16.mxu0 %v4490
  %6539 = vmatpush1.bf16.msra.mxu0 %v4489
  %6540 = vmatprep.subr.bf16.mxu0 %v4492
  %6541 = vmatpush1.bf16.msra.mxu0 %v4491
  %6542 = vmatprep.subr.bf16.mxu0 %v4494
  %6543 = vmatpush1.bf16.msra.mxu0 %v4493
  %6544 = vmatprep.mubr.bf16.mxu0 %v1189
  %6545 = vmatmul.mubr.bf16.gmra.mrb[0].mxu0 %v1188
  %v6546 = vpop.f32.mrb[0].mxu0
  %v6547 = vadd.f32 %v6506, %v6546
  %v6548 = vpop.f32.mrb[0].mxu0
  %v6549 = vadd.f32 %v6508, %v6548
  %v6550 = vpop.f32.mrb[0].mxu0
  %v6551 = vpop.f32.mrb[0].mxu0
  %6552 = vdwg.mxu0
  %6553 = vmatprep.subr.bf16.mxu0 %v4496
  %6554 = vmatpush1.bf16.msra.mxu0 %v4495
  %6555 = vmatprep.subr.bf16.mxu0 %v4498
  %6556 = vmatpush1.bf16.msra.mxu0 %v4497
  %6557 = vmatprep.subr.bf16.mxu0 %v4500
  %6558 = vmatpush1.bf16.msra.mxu0 %v4499
  %6559 = vmatprep.subr.bf16.mxu0 %v4502
  %6560 = vmatpush1.bf16.msra.mxu0 %v4501
  %6561 = vmatprep.subr.bf16.mxu0 %v4504
  %6562 = vmatpush1.bf16.msra.mxu0 %v4503
  %6563 = vmatprep.subr.bf16.mxu0 %v4506
  %6564 = vmatpush1.bf16.msra.mxu0 %v4505
  %6565 = vmatprep.subr.bf16.mxu0 %v4508
  %6566 = vmatpush1.bf16.msra.mxu0 %v4507
  %6567 = vmatprep.subr.bf16.mxu0 %v4510
  %6568 = vmatpush1.bf16.msra.mxu0 %v4509
  %6569 = vmatprep.subr.bf16.mxu0 %v4512
  %6570 = vmatpush1.bf16.msra.mxu0 %v4511
  %6571 = vmatprep.subr.bf16.mxu0 %v4514
  %6572 = vmatpush1.bf16.msra.mxu0 %v4513
  %6573 = vmatprep.subr.bf16.mxu0 %v4516
  %6574 = vmatpush1.bf16.msra.mxu0 %v4515
  %6575 = vmatprep.subr.bf16.mxu0 %v4518
  %6576 = vmatpush1.bf16.msra.mxu0 %v4517
  %6577 = vmatprep.subr.bf16.mxu0 %v4520
  %6578 = vmatpush1.bf16.msra.mxu0 %v4519
  %6579 = vmatprep.subr.bf16.mxu0 %v4522
  %6580 = vmatpush1.bf16.msra.mxu0 %v4521
  %6581 = vmatprep.subr.bf16.mxu0 %v4524
  %6582 = vmatpush1.bf16.msra.mxu0 %v4523
  %6583 = vmatprep.subr.bf16.mxu0 %v4526
  %6584 = vmatpush1.bf16.msra.mxu0 %v4525
  %6585 = vmatprep.mubr.bf16.mxu0 %v1191
  %6586 = vmatmul.mubr.bf16.gmra.mrb[0].mxu0 %v1190
  %v6587 = vpop.f32.mrb[0].mxu0
  %v6588 = vadd.f32 %v6547, %v6587
  %v6589 = vpop.f32.mrb[0].mxu0
  %v6590 = vadd.f32 %v6549, %v6589
  %v6591 = vpop.f32.mrb[0].mxu0
  %v6592 = vpop.f32.mrb[0].mxu0
  %6593 = vdwg.mxu0
  %6594 = vmatprep.subr.bf16.mxu0 %v4528
  %6595 = vmatpush1.bf16.msra.mxu0 %v4527
  %6596 = vmatprep.subr.bf16.mxu0 %v4530
  %6597 = vmatpush1.bf16.msra.mxu0 %v4529
  %6598 = vmatprep.subr.bf16.mxu0 %v4532
  %6599 = vmatpush1.bf16.msra.mxu0 %v4531
  %6600 = vmatprep.subr.bf16.mxu0 %v4534
  %6601 = vmatpush1.bf16.msra.mxu0 %v4533
  %6602 = vmatprep.subr.bf16.mxu0 %v4536
  %6603 = vmatpush1.bf16.msra.mxu0 %v4535
  %6604 = vmatprep.subr.bf16.mxu0 %v4538
  %6605 = vmatpush1.bf16.msra.mxu0 %v4537
  %6606 = vmatprep.subr.bf16.mxu0 %v4540
  %6607 = vmatpush1.bf16.msra.mxu0 %v4539
  %6608 = vmatprep.subr.bf16.mxu0 %v4542
  %6609 = vmatpush1.bf16.msra.mxu0 %v4541
  %6610 = vmatprep.subr.bf16.mxu0 %v4544
  %6611 = vmatpush1.bf16.msra.mxu0 %v4543
  %6612 = vmatprep.subr.bf16.mxu0 %v4546
  %6613 = vmatpush1.bf16.msra.mxu0 %v4545
  %6614 = vmatprep.subr.bf16.mxu0 %v4548
  %6615 = vmatpush1.bf16.msra.mxu0 %v4547
  %6616 = vmatprep.subr.bf16.mxu0 %v4550
  %6617 = vmatpush1.bf16.msra.mxu0 %v4549
  %6618 = vmatprep.subr.bf16.mxu0 %v4552
  %6619 = vmatpush1.bf16.msra.mxu0 %v4551
  %6620 = vmatprep.subr.bf16.mxu0 %v4554
  %6621 = vmatpush1.bf16.msra.mxu0 %v4553
  %6622 = vmatprep.subr.bf16.mxu0 %v4556
  %6623 = vmatpush1.bf16.msra.mxu0 %v4555
  %6624 = vmatprep.subr.bf16.mxu0 %v4558
  %6625 = vmatpush1.bf16.msra.mxu0 %v4557
  %6626 = vmatprep.mubr.bf16.mxu0 %v1193
  %6627 = vmatmul.mubr.bf16.gmra.mrb[0].mxu0 %v1192
  %v6628 = vpop.f32.mrb[0].mxu0
  %v6629 = vadd.f32 %v6588, %v6628
  %v6630 = vpop.f32.mrb[0].mxu0
  %v6631 = vadd.f32 %v6590, %v6630
  %v6632 = vpop.f32.mrb[0].mxu0
  %v6633 = vpop.f32.mrb[0].mxu0
  %6634 = vdwg.mxu0
  %6635 = vmatprep.subr.bf16.mxu0 %v4560
  %6636 = vmatpush1.bf16.msra.mxu0 %v4559
  %6637 = vmatprep.subr.bf16.mxu0 %v4562
  %6638 = vmatpush1.bf16.msra.mxu0 %v4561
  %6639 = vmatprep.subr.bf16.mxu0 %v4564
  %6640 = vmatpush1.bf16.msra.mxu0 %v4563
  %6641 = vmatprep.subr.bf16.mxu0 %v4566
  %6642 = vmatpush1.bf16.msra.mxu0 %v4565
  %6643 = vmatprep.subr.bf16.mxu0 %v4568
  %6644 = vmatpush1.bf16.msra.mxu0 %v4567
  %6645 = vmatprep.subr.bf16.mxu0 %v4570
  %6646 = vmatpush1.bf16.msra.mxu0 %v4569
  %6647 = vmatprep.subr.bf16.mxu0 %v4572
  %6648 = vmatpush1.bf16.msra.mxu0 %v4571
  %6649 = vmatprep.subr.bf16.mxu0 %v4574
  %6650 = vmatpush1.bf16.msra.mxu0 %v4573
  %6651 = vmatprep.subr.bf16.mxu0 %v4576
  %6652 = vmatpush1.bf16.msra.mxu0 %v4575
  %6653 = vmatprep.subr.bf16.mxu0 %v4578
  %6654 = vmatpush1.bf16.msra.mxu0 %v4577
  %6655 = vmatprep.subr.bf16.mxu0 %v4580
  %6656 = vmatpush1.bf16.msra.mxu0 %v4579
  %6657 = vmatprep.subr.bf16.mxu0 %v4582
  %6658 = vmatpush1.bf16.msra.mxu0 %v4581
  %6659 = vmatprep.subr.bf16.mxu0 %v4584
  %6660 = vmatpush1.bf16.msra.mxu0 %v4583
  %6661 = vmatprep.subr.bf16.mxu0 %v4586
  %6662 = vmatpush1.bf16.msra.mxu0 %v4585
  %6663 = vmatprep.subr.bf16.mxu0 %v4588
  %6664 = vmatpush1.bf16.msra.mxu0 %v4587
  %6665 = vmatprep.subr.bf16.mxu0 %v4590
  %6666 = vmatpush1.bf16.msra.mxu0 %v4589
  %6667 = vmatprep.mubr.bf16.mxu0 %v1195
  %6668 = vmatmul.mubr.bf16.gmra.mrb[0].mxu0 %v1194
  %v6669 = vpop.f32.mrb[0].mxu0
  %v6670 = vadd.f32 %v6629, %v6669
  %v6671 = vpop.f32.mrb[0].mxu0
  %v6672 = vadd.f32 %v6631, %v6671
  %v6673 = vpop.f32.mrb[0].mxu0
  %v6674 = vpop.f32.mrb[0].mxu0
  %6675 = vdwg.mxu0
  %6676 = vmatprep.subr.bf16.mxu0 %v4592
  %6677 = vmatpush1.bf16.msra.mxu0 %v4591
  %6678 = vmatprep.subr.bf16.mxu0 %v4594
  %6679 = vmatpush1.bf16.msra.mxu0 %v4593
  %6680 = vmatprep.subr.bf16.mxu0 %v4596
  %6681 = vmatpush1.bf16.msra.mxu0 %v4595
  %6682 = vmatprep.subr.bf16.mxu0 %v4598
  %6683 = vmatpush1.bf16.msra.mxu0 %v4597
  %6684 = vmatprep.subr.bf16.mxu0 %v4600
  %6685 = vmatpush1.bf16.msra.mxu0 %v4599
  %6686 = vmatprep.subr.bf16.mxu0 %v4602
  %6687 = vmatpush1.bf16.msra.mxu0 %v4601
  %6688 = vmatprep.subr.bf16.mxu0 %v4604
  %6689 = vmatpush1.bf16.msra.mxu0 %v4603
  %6690 = vmatprep.subr.bf16.mxu0 %v4606
  %6691 = vmatpush1.bf16.msra.mxu0 %v4605
  %6692 = vmatprep.subr.bf16.mxu0 %v4608
  %6693 = vmatpush1.bf16.msra.mxu0 %v4607
  %6694 = vmatprep.subr.bf16.mxu0 %v4610
  %6695 = vmatpush1.bf16.msra.mxu0 %v4609
  %6696 = vmatprep.subr.bf16.mxu0 %v4612
  %6697 = vmatpush1.bf16.msra.mxu0 %v4611
  %6698 = vmatprep.subr.bf16.mxu0 %v4614
  %6699 = vmatpush1.bf16.msra.mxu0 %v4613
  %6700 = vmatprep.subr.bf16.mxu0 %v4616
  %6701 = vmatpush1.bf16.msra.mxu0 %v4615
  %6702 = vmatprep.subr.bf16.mxu0 %v4618
  %6703 = vmatpush1.bf16.msra.mxu0 %v4617
  %6704 = vmatprep.subr.bf16.mxu0 %v4620
  %6705 = vmatpush1.bf16.msra.mxu0 %v4619
  %6706 = vmatprep.subr.bf16.mxu0 %v4622
  %6707 = vmatpush1.bf16.msra.mxu0 %v4621
  %6708 = vmatprep.mubr.bf16.mxu0 %v1197
  %6709 = vmatmul.mubr.bf16.gmra.mrb[0].mxu0 %v1196
  %v6710 = vpop.f32.mrb[0].mxu0
  %v6711 = vadd.f32 %v6670, %v6710
  %v6712 = vpop.f32.mrb[0].mxu0
  %v6713 = vadd.f32 %v6672, %v6712
  %v6714 = vpop.f32.mrb[0].mxu0
  %v6715 = vpop.f32.mrb[0].mxu0
  %6716 = vdwg.mxu0
  %6717 = vmatprep.subr.bf16.mxu0 %v4624
  %6718 = vmatpush1.bf16.msra.mxu0 %v4623
  %6719 = vmatprep.subr.bf16.mxu0 %v4626
  %6720 = vmatpush1.bf16.msra.mxu0 %v4625
  %6721 = vmatprep.subr.bf16.mxu0 %v4628
  %6722 = vmatpush1.bf16.msra.mxu0 %v4627
  %6723 = vmatprep.subr.bf16.mxu0 %v4630
  %6724 = vmatpush1.bf16.msra.mxu0 %v4629
  %6725 = vmatprep.subr.bf16.mxu0 %v4632
  %6726 = vmatpush1.bf16.msra.mxu0 %v4631
  %6727 = vmatprep.subr.bf16.mxu0 %v4634
  %6728 = vmatpush1.bf16.msra.mxu0 %v4633
  %6729 = vmatprep.subr.bf16.mxu0 %v4636
  %6730 = vmatpush1.bf16.msra.mxu0 %v4635
  %6731 = vmatprep.subr.bf16.mxu0 %v4638
  %6732 = vmatpush1.bf16.msra.mxu0 %v4637
  %6733 = vmatprep.subr.bf16.mxu0 %v4640
  %6734 = vmatpush1.bf16.msra.mxu0 %v4639
  %6735 = vmatprep.subr.bf16.mxu0 %v4642
  %6736 = vmatpush1.bf16.msra.mxu0 %v4641
  %6737 = vmatprep.subr.bf16.mxu0 %v4644
  %6738 = vmatpush1.bf16.msra.mxu0 %v4643
  %6739 = vmatprep.subr.bf16.mxu0 %v4646
  %6740 = vmatpush1.bf16.msra.mxu0 %v4645
  %6741 = vmatprep.subr.bf16.mxu0 %v4648
  %6742 = vmatpush1.bf16.msra.mxu0 %v4647
  %6743 = vmatprep.subr.bf16.mxu0 %v4650
  %6744 = vmatpush1.bf16.msra.mxu0 %v4649
  %6745 = vmatprep.subr.bf16.mxu0 %v4652
  %6746 = vmatpush1.bf16.msra.mxu0 %v4651
  %6747 = vmatprep.subr.bf16.mxu0 %v4654
  %6748 = vmatpush1.bf16.msra.mxu0 %v4653
  %6749 = vmatprep.mubr.bf16.mxu0 %v1199
  %6750 = vmatmul.mubr.bf16.gmra.mrb[0].mxu0 %v1198
  %v6751 = vpop.f32.mrb[0].mxu0
  %v6752 = vadd.f32 %v6711, %v6751
  %v6753 = vpop.f32.mrb[0].mxu0
  %v6754 = vadd.f32 %v6713, %v6753
  %v6755 = vpop.f32.mrb[0].mxu0
  %v6756 = vpop.f32.mrb[0].mxu0
  %6757 = vdwg.mxu0
  %6758 = vmatprep.subr.bf16.mxu0 %v4656
  %6759 = vmatpush1.bf16.msra.mxu0 %v4655
  %6760 = vmatprep.subr.bf16.mxu0 %v4658
  %6761 = vmatpush1.bf16.msra.mxu0 %v4657
  %6762 = vmatprep.subr.bf16.mxu0 %v4660
  %6763 = vmatpush1.bf16.msra.mxu0 %v4659
  %6764 = vmatprep.subr.bf16.mxu0 %v4662
  %6765 = vmatpush1.bf16.msra.mxu0 %v4661
  %6766 = vmatprep.subr.bf16.mxu0 %v4664
  %6767 = vmatpush1.bf16.msra.mxu0 %v4663
  %6768 = vmatprep.subr.bf16.mxu0 %v4666
  %6769 = vmatpush1.bf16.msra.mxu0 %v4665
  %6770 = vmatprep.subr.bf16.mxu0 %v4668
  %6771 = vmatpush1.bf16.msra.mxu0 %v4667
  %6772 = vmatprep.subr.bf16.mxu0 %v4670
  %6773 = vmatpush1.bf16.msra.mxu0 %v4669
  %6774 = vmatprep.subr.bf16.mxu0 %v4672
  %6775 = vmatpush1.bf16.msra.mxu0 %v4671
  %6776 = vmatprep.subr.bf16.mxu0 %v4674
  %6777 = vmatpush1.bf16.msra.mxu0 %v4673
  %6778 = vmatprep.subr.bf16.mxu0 %v4676
  %6779 = vmatpush1.bf16.msra.mxu0 %v4675
  %6780 = vmatprep.subr.bf16.mxu0 %v4678
  %6781 = vmatpush1.bf16.msra.mxu0 %v4677
  %6782 = vmatprep.subr.bf16.mxu0 %v4680
  %6783 = vmatpush1.bf16.msra.mxu0 %v4679
  %6784 = vmatprep.subr.bf16.mxu0 %v4682
  %6785 = vmatpush1.bf16.msra.mxu0 %v4681
  %6786 = vmatprep.subr.bf16.mxu0 %v4684
  %6787 = vmatpush1.bf16.msra.mxu0 %v4683
  %6788 = vmatprep.subr.bf16.mxu0 %v4686
  %6789 = vmatpush1.bf16.msra.mxu0 %v4685
  %6790 = vmatprep.mubr.bf16.mxu0 %v1201
  %6791 = vmatmul.mubr.bf16.gmra.mrb[0].mxu0 %v1200
  %v6792 = vpop.f32.mrb[0].mxu0
  %v6793 = vadd.f32 %v6752, %v6792
  %v6794 = vpop.f32.mrb[0].mxu0
  %v6795 = vadd.f32 %v6754, %v6794
  %v6796 = vpop.f32.mrb[0].mxu0
  %v6797 = vpop.f32.mrb[0].mxu0
  %6798 = vdwg.mxu0
  %6799 = vmatprep.subr.bf16.mxu0 %v4688
  %6800 = vmatpush1.bf16.msra.mxu0 %v4687
  %6801 = vmatprep.subr.bf16.mxu0 %v4690
  %6802 = vmatpush1.bf16.msra.mxu0 %v4689
  %6803 = vmatprep.subr.bf16.mxu0 %v4692
  %6804 = vmatpush1.bf16.msra.mxu0 %v4691
  %6805 = vmatprep.subr.bf16.mxu0 %v4694
  %6806 = vmatpush1.bf16.msra.mxu0 %v4693
  %6807 = vmatprep.subr.bf16.mxu0 %v4696
  %6808 = vmatpush1.bf16.msra.mxu0 %v4695
  %6809 = vmatprep.subr.bf16.mxu0 %v4698
  %6810 = vmatpush1.bf16.msra.mxu0 %v4697
  %6811 = vmatprep.subr.bf16.mxu0 %v4700
  %6812 = vmatpush1.bf16.msra.mxu0 %v4699
  %6813 = vmatprep.subr.bf16.mxu0 %v4702
  %6814 = vmatpush1.bf16.msra.mxu0 %v4701
  %6815 = vmatprep.subr.bf16.mxu0 %v4704
  %6816 = vmatpush1.bf16.msra.mxu0 %v4703
  %6817 = vmatprep.subr.bf16.mxu0 %v4706
  %6818 = vmatpush1.bf16.msra.mxu0 %v4705
  %6819 = vmatprep.subr.bf16.mxu0 %v4708
  %6820 = vmatpush1.bf16.msra.mxu0 %v4707
  %6821 = vmatprep.subr.bf16.mxu0 %v4710
  %6822 = vmatpush1.bf16.msra.mxu0 %v4709
  %6823 = vmatprep.subr.bf16.mxu0 %v4712
  %6824 = vmatpush1.bf16.msra.mxu0 %v4711
  %6825 = vmatprep.subr.bf16.mxu0 %v4714
  %6826 = vmatpush1.bf16.msra.mxu0 %v4713
  %6827 = vmatprep.subr.bf16.mxu0 %v4716
  %6828 = vmatpush1.bf16.msra.mxu0 %v4715
  %6829 = vmatprep.subr.bf16.mxu0 %v4718
  %6830 = vmatpush1.bf16.msra.mxu0 %v4717
  %6831 = vmatprep.mubr.bf16.mxu0 %v1203
  %6832 = vmatmul.mubr.bf16.gmra.mrb[0].mxu0 %v1202
  %v6833 = vpop.f32.mrb[0].mxu0
  %v6834 = vadd.f32 %v6793, %v6833
  %v6835 = vpop.f32.mrb[0].mxu0
  %v6836 = vadd.f32 %v6795, %v6835
  %v6837 = vpop.f32.mrb[0].mxu0
  %v6838 = vpop.f32.mrb[0].mxu0
  %6839 = vdwg.mxu0
  %6840 = vmatprep.subr.bf16.mxu0 %v4720
  %6841 = vmatpush1.bf16.msra.mxu0 %v4719
  %6842 = vmatprep.subr.bf16.mxu0 %v4722
  %6843 = vmatpush1.bf16.msra.mxu0 %v4721
  %6844 = vmatprep.subr.bf16.mxu0 %v4724
  %6845 = vmatpush1.bf16.msra.mxu0 %v4723
  %6846 = vmatprep.subr.bf16.mxu0 %v4726
  %6847 = vmatpush1.bf16.msra.mxu0 %v4725
  %6848 = vmatprep.subr.bf16.mxu0 %v4728
  %6849 = vmatpush1.bf16.msra.mxu0 %v4727
  %6850 = vmatprep.subr.bf16.mxu0 %v4730
  %6851 = vmatpush1.bf16.msra.mxu0 %v4729
  %6852 = vmatprep.subr.bf16.mxu0 %v4732
  %6853 = vmatpush1.bf16.msra.mxu0 %v4731
  %6854 = vmatprep.subr.bf16.mxu0 %v4734
  %6855 = vmatpush1.bf16.msra.mxu0 %v4733
  %6856 = vmatprep.subr.bf16.mxu0 %v4736
  %6857 = vmatpush1.bf16.msra.mxu0 %v4735
  %6858 = vmatprep.subr.bf16.mxu0 %v4738
  %6859 = vmatpush1.bf16.msra.mxu0 %v4737
  %6860 = vmatprep.subr.bf16.mxu0 %v4740
  %6861 = vmatpush1.bf16.msra.mxu0 %v4739
  %6862 = vmatprep.subr.bf16.mxu0 %v4742
  %6863 = vmatpush1.bf16.msra.mxu0 %v4741
  %6864 = vmatprep.subr.bf16.mxu0 %v4744
  %6865 = vmatpush1.bf16.msra.mxu0 %v4743
  %6866 = vmatprep.subr.bf16.mxu0 %v4746
  %6867 = vmatpush1.bf16.msra.mxu0 %v4745
  %6868 = vmatprep.subr.bf16.mxu0 %v4748
  %6869 = vmatpush1.bf16.msra.mxu0 %v4747
  %6870 = vmatprep.subr.bf16.mxu0 %v4750
  %6871 = vmatpush1.bf16.msra.mxu0 %v4749
  %6872 = vmatprep.mubr.bf16.mxu0 %v1205
  %6873 = vmatmul.mubr.bf16.gmra.mrb[0].mxu0 %v1204
  %v6874 = vpop.f32.mrb[0].mxu0
  %v6875 = vadd.f32 %v6834, %v6874
  %v6876 = vpop.f32.mrb[0].mxu0
  %v6877 = vadd.f32 %v6836, %v6876
  %v6878 = vpop.f32.mrb[0].mxu0
  %v6879 = vpop.f32.mrb[0].mxu0
  %6880 = vdwg.mxu0
  %6881 = vmatprep.subr.bf16.mxu0 %v4752
  %6882 = vmatpush1.bf16.msra.mxu0 %v4751
  %6883 = vmatprep.subr.bf16.mxu0 %v4754
  %6884 = vmatpush1.bf16.msra.mxu0 %v4753
  %6885 = vmatprep.subr.bf16.mxu0 %v4756
  %6886 = vmatpush1.bf16.msra.mxu0 %v4755
  %6887 = vmatprep.subr.bf16.mxu0 %v4758
  %6888 = vmatpush1.bf16.msra.mxu0 %v4757
  %6889 = vmatprep.subr.bf16.mxu0 %v4760
  %6890 = vmatpush1.bf16.msra.mxu0 %v4759
  %6891 = vmatprep.subr.bf16.mxu0 %v4762
  %6892 = vmatpush1.bf16.msra.mxu0 %v4761
  %6893 = vmatprep.subr.bf16.mxu0 %v4764
  %6894 = vmatpush1.bf16.msra.mxu0 %v4763
  %6895 = vmatprep.subr.bf16.mxu0 %v4766
  %6896 = vmatpush1.bf16.msra.mxu0 %v4765
  %6897 = vmatprep.subr.bf16.mxu0 %v4768
  %6898 = vmatpush1.bf16.msra.mxu0 %v4767
  %6899 = vmatprep.subr.bf16.mxu0 %v4770
  %6900 = vmatpush1.bf16.msra.mxu0 %v4769
  %6901 = vmatprep.subr.bf16.mxu0 %v4772
  %6902 = vmatpush1.bf16.msra.mxu0 %v4771
  %6903 = vmatprep.subr.bf16.mxu0 %v4774
  %6904 = vmatpush1.bf16.msra.mxu0 %v4773
  %6905 = vmatprep.subr.bf16.mxu0 %v4776
  %6906 = vmatpush1.bf16.msra.mxu0 %v4775
  %6907 = vmatprep.subr.bf16.mxu0 %v4778
  %6908 = vmatpush1.bf16.msra.mxu0 %v4777
  %6909 = vmatprep.subr.bf16.mxu0 %v4780
  %6910 = vmatpush1.bf16.msra.mxu0 %v4779
  %6911 = vmatprep.subr.bf16.mxu0 %v4782
  %6912 = vmatpush1.bf16.msra.mxu0 %v4781
  %6913 = vmatprep.mubr.bf16.mxu0 %v1207
  %6914 = vmatmul.mubr.bf16.gmra.mrb[0].mxu0 %v1206
  %v6915 = vpop.f32.mrb[0].mxu0
  %v6916 = vadd.f32 %v6875, %v6915
  %v6917 = vpop.f32.mrb[0].mxu0
  %v6918 = vadd.f32 %v6877, %v6917
  %v6919 = vpop.f32.mrb[0].mxu0
  %v6920 = vpop.f32.mrb[0].mxu0
  %6921 = vdwg.mxu0
  %6922 = vmatprep.subr.bf16.mxu0 %v4784
  %6923 = vmatpush1.bf16.msra.mxu0 %v4783
  %6924 = vmatprep.subr.bf16.mxu0 %v4786
  %6925 = vmatpush1.bf16.msra.mxu0 %v4785
  %6926 = vmatprep.subr.bf16.mxu0 %v4788
  %6927 = vmatpush1.bf16.msra.mxu0 %v4787
  %6928 = vmatprep.subr.bf16.mxu0 %v4790
  %6929 = vmatpush1.bf16.msra.mxu0 %v4789
  %6930 = vmatprep.subr.bf16.mxu0 %v4792
  %6931 = vmatpush1.bf16.msra.mxu0 %v4791
  %6932 = vmatprep.subr.bf16.mxu0 %v4794
  %6933 = vmatpush1.bf16.msra.mxu0 %v4793
  %6934 = vmatprep.subr.bf16.mxu0 %v4796
  %6935 = vmatpush1.bf16.msra.mxu0 %v4795
  %6936 = vmatprep.subr.bf16.mxu0 %v4798
  %6937 = vmatpush1.bf16.msra.mxu0 %v4797
  %6938 = vmatprep.subr.bf16.mxu0 %v4800
  %6939 = vmatpush1.bf16.msra.mxu0 %v4799
  %6940 = vmatprep.subr.bf16.mxu0 %v4802
  %6941 = vmatpush1.bf16.msra.mxu0 %v4801
  %6942 = vmatprep.subr.bf16.mxu0 %v4804
  %6943 = vmatpush1.bf16.msra.mxu0 %v4803
  %6944 = vmatprep.subr.bf16.mxu0 %v4806
  %6945 = vmatpush1.bf16.msra.mxu0 %v4805
  %6946 = vmatprep.subr.bf16.mxu0 %v4808
  %6947 = vmatpush1.bf16.msra.mxu0 %v4807
  %6948 = vmatprep.subr.bf16.mxu0 %v4810
  %6949 = vmatpush1.bf16.msra.mxu0 %v4809
  %6950 = vmatprep.subr.bf16.mxu0 %v4812
  %6951 = vmatpush1.bf16.msra.mxu0 %v4811
  %6952 = vmatprep.subr.bf16.mxu0 %v4814
  %6953 = vmatpush1.bf16.msra.mxu0 %v4813
  %6954 = vmatprep.mubr.bf16.mxu0 %v1209
  %6955 = vmatmul.mubr.bf16.gmra.mrb[0].mxu0 %v1208
  %v6956 = vpop.f32.mrb[0].mxu0
  %v6957 = vadd.f32 %v6916, %v6956
  %v6958 = vpop.f32.mrb[0].mxu0
  %v6959 = vadd.f32 %v6918, %v6958
  %v6960 = vpop.f32.mrb[0].mxu0
  %v6961 = vpop.f32.mrb[0].mxu0
  %6962 = vdwg.mxu0
  %6963 = vmatprep.subr.bf16.mxu0 %v4816
  %6964 = vmatpush1.bf16.msra.mxu0 %v4815
  %6965 = vmatprep.subr.bf16.mxu0 %v4818
  %6966 = vmatpush1.bf16.msra.mxu0 %v4817
  %6967 = vmatprep.subr.bf16.mxu0 %v4820
  %6968 = vmatpush1.bf16.msra.mxu0 %v4819
  %6969 = vmatprep.subr.bf16.mxu0 %v4822
  %6970 = vmatpush1.bf16.msra.mxu0 %v4821
  %6971 = vmatprep.subr.bf16.mxu0 %v4824
  %6972 = vmatpush1.bf16.msra.mxu0 %v4823
  %6973 = vmatprep.subr.bf16.mxu0 %v4826
  %6974 = vmatpush1.bf16.msra.mxu0 %v4825
  %6975 = vmatprep.subr.bf16.mxu0 %v4828
  %6976 = vmatpush1.bf16.msra.mxu0 %v4827
  %6977 = vmatprep.subr.bf16.mxu0 %v4830
  %6978 = vmatpush1.bf16.msra.mxu0 %v4829
  %6979 = vmatprep.subr.bf16.mxu0 %v4832
  %6980 = vmatpush1.bf16.msra.mxu0 %v4831
  %6981 = vmatprep.subr.bf16.mxu0 %v4834
  %6982 = vmatpush1.bf16.msra.mxu0 %v4833
  %6983 = vmatprep.subr.bf16.mxu0 %v4836
  %6984 = vmatpush1.bf16.msra.mxu0 %v4835
  %6985 = vmatprep.subr.bf16.mxu0 %v4838
  %6986 = vmatpush1.bf16.msra.mxu0 %v4837
  %6987 = vmatprep.subr.bf16.mxu0 %v4840
  %6988 = vmatpush1.bf16.msra.mxu0 %v4839
  %6989 = vmatprep.subr.bf16.mxu0 %v4842
  %6990 = vmatpush1.bf16.msra.mxu0 %v4841
  %6991 = vmatprep.subr.bf16.mxu0 %v4844
  %6992 = vmatpush1.bf16.msra.mxu0 %v4843
  %6993 = vmatprep.subr.bf16.mxu0 %v4846
  %6994 = vmatpush1.bf16.msra.mxu0 %v4845
  %6995 = vmatprep.mubr.bf16.mxu0 %v1211
  %6996 = vmatmul.mubr.bf16.gmra.mrb[0].mxu0 %v1210
  %v6997 = vpop.f32.mrb[0].mxu0
  %v6998 = vadd.f32 %v6957, %v6997
  %v6999 = vpop.f32.mrb[0].mxu0
  %v7000 = vadd.f32 %v6959, %v6999
  %v7001 = vpop.f32.mrb[0].mxu0
  %v7002 = vpop.f32.mrb[0].mxu0
  %7003 = vdwg.mxu0
  %7004 = vmatprep.subr.bf16.mxu0 %v4848
  %7005 = vmatpush1.bf16.msra.mxu0 %v4847
  %7006 = vmatprep.subr.bf16.mxu0 %v4850
  %7007 = vmatpush1.bf16.msra.mxu0 %v4849
  %7008 = vmatprep.subr.bf16.mxu0 %v4852
  %7009 = vmatpush1.bf16.msra.mxu0 %v4851
  %7010 = vmatprep.subr.bf16.mxu0 %v4854
  %7011 = vmatpush1.bf16.msra.mxu0 %v4853
  %7012 = vmatprep.subr.bf16.mxu0 %v4856
  %7013 = vmatpush1.bf16.msra.mxu0 %v4855
  %7014 = vmatprep.subr.bf16.mxu0 %v4858
  %7015 = vmatpush1.bf16.msra.mxu0 %v4857
  %7016 = vmatprep.subr.bf16.mxu0 %v4860
  %7017 = vmatpush1.bf16.msra.mxu0 %v4859
  %7018 = vmatprep.subr.bf16.mxu0 %v4862
  %7019 = vmatpush1.bf16.msra.mxu0 %v4861
  %7020 = vmatprep.subr.bf16.mxu0 %v4864
  %7021 = vmatpush1.bf16.msra.mxu0 %v4863
  %7022 = vmatprep.subr.bf16.mxu0 %v4866
  %7023 = vmatpush1.bf16.msra.mxu0 %v4865
  %7024 = vmatprep.subr.bf16.mxu0 %v4868
  %7025 = vmatpush1.bf16.msra.mxu0 %v4867
  %7026 = vmatprep.subr.bf16.mxu0 %v4870
  %7027 = vmatpush1.bf16.msra.mxu0 %v4869
  %7028 = vmatprep.subr.bf16.mxu0 %v4872
  %7029 = vmatpush1.bf16.msra.mxu0 %v4871
  %7030 = vmatprep.subr.bf16.mxu0 %v4874
  %7031 = vmatpush1.bf16.msra.mxu0 %v4873
  %7032 = vmatprep.subr.bf16.mxu0 %v4876
  %7033 = vmatpush1.bf16.msra.mxu0 %v4875
  %7034 = vmatprep.subr.bf16.mxu0 %v4878
  %7035 = vmatpush1.bf16.msra.mxu0 %v4877
  %7036 = vmatprep.mubr.bf16.mxu0 %v1213
  %7037 = vmatmul.mubr.bf16.gmra.mrb[0].mxu0 %v1212
  %v7038 = vpop.f32.mrb[0].mxu0
  %v7039 = vadd.f32 %v6998, %v7038
  %v7040 = vpop.f32.mrb[0].mxu0
  %v7041 = vadd.f32 %v7000, %v7040
  %v7042 = vpop.f32.mrb[0].mxu0
  %v7043 = vpop.f32.mrb[0].mxu0
  %7044 = vdwg.mxu0
  %7045 = vmatprep.subr.bf16.mxu0 %v4880
  %7046 = vmatpush1.bf16.msra.mxu0 %v4879
  %7047 = vmatprep.subr.bf16.mxu0 %v4882
  %7048 = vmatpush1.bf16.msra.mxu0 %v4881
  %7049 = vmatprep.subr.bf16.mxu0 %v4884
  %7050 = vmatpush1.bf16.msra.mxu0 %v4883
  %7051 = vmatprep.subr.bf16.mxu0 %v4886
  %7052 = vmatpush1.bf16.msra.mxu0 %v4885
  %7053 = vmatprep.subr.bf16.mxu0 %v4888
  %7054 = vmatpush1.bf16.msra.mxu0 %v4887
  %7055 = vmatprep.subr.bf16.mxu0 %v4890
  %7056 = vmatpush1.bf16.msra.mxu0 %v4889
  %7057 = vmatprep.subr.bf16.mxu0 %v4892
  %7058 = vmatpush1.bf16.msra.mxu0 %v4891
  %7059 = vmatprep.subr.bf16.mxu0 %v4894
  %7060 = vmatpush1.bf16.msra.mxu0 %v4893
  %7061 = vmatprep.subr.bf16.mxu0 %v4896
  %7062 = vmatpush1.bf16.msra.mxu0 %v4895
  %7063 = vmatprep.subr.bf16.mxu0 %v4898
  %7064 = vmatpush1.bf16.msra.mxu0 %v4897
  %7065 = vmatprep.subr.bf16.mxu0 %v4900
  %7066 = vmatpush1.bf16.msra.mxu0 %v4899
  %7067 = vmatprep.subr.bf16.mxu0 %v4902
  %7068 = vmatpush1.bf16.msra.mxu0 %v4901
  %7069 = vmatprep.subr.bf16.mxu0 %v4904
  %7070 = vmatpush1.bf16.msra.mxu0 %v4903
  %7071 = vmatprep.subr.bf16.mxu0 %v4906
  %7072 = vmatpush1.bf16.msra.mxu0 %v4905
  %7073 = vmatprep.subr.bf16.mxu0 %v4908
  %7074 = vmatpush1.bf16.msra.mxu0 %v4907
  %7075 = vmatprep.subr.bf16.mxu0 %v4910
  %7076 = vmatpush1.bf16.msra.mxu0 %v4909
  %7077 = vmatprep.mubr.bf16.mxu0 %v1215
  %7078 = vmatmul.mubr.bf16.gmra.mrb[0].mxu0 %v1214
  %v7079 = vpop.f32.mrb[0].mxu0
  %v7080 = vadd.f32 %v7039, %v7079
  %v7081 = vpop.f32.mrb[0].mxu0
  %v7082 = vadd.f32 %v7041, %v7081
  %v7083 = vpop.f32.mrb[0].mxu0
  %v7084 = vpop.f32.mrb[0].mxu0
  %7085 = vdwg.mxu0
  %7086 = vmatprep.subr.bf16.mxu0 %v4912
  %7087 = vmatpush1.bf16.msra.mxu0 %v4911
  %7088 = vmatprep.subr.bf16.mxu0 %v4914
  %7089 = vmatpush1.bf16.msra.mxu0 %v4913
  %7090 = vmatprep.subr.bf16.mxu0 %v4916
  %7091 = vmatpush1.bf16.msra.mxu0 %v4915
  %7092 = vmatprep.subr.bf16.mxu0 %v4918
  %7093 = vmatpush1.bf16.msra.mxu0 %v4917
  %7094 = vmatprep.subr.bf16.mxu0 %v4920
  %7095 = vmatpush1.bf16.msra.mxu0 %v4919
  %7096 = vmatprep.subr.bf16.mxu0 %v4922
  %7097 = vmatpush1.bf16.msra.mxu0 %v4921
  %7098 = vmatprep.subr.bf16.mxu0 %v4924
  %7099 = vmatpush1.bf16.msra.mxu0 %v4923
  %7100 = vmatprep.subr.bf16.mxu0 %v4926
  %7101 = vmatpush1.bf16.msra.mxu0 %v4925
  %7102 = vmatprep.subr.bf16.mxu0 %v4928
  %7103 = vmatpush1.bf16.msra.mxu0 %v4927
  %7104 = vmatprep.subr.bf16.mxu0 %v4930
  %7105 = vmatpush1.bf16.msra.mxu0 %v4929
  %7106 = vmatprep.subr.bf16.mxu0 %v4932
  %7107 = vmatpush1.bf16.msra.mxu0 %v4931
  %7108 = vmatprep.subr.bf16.mxu0 %v4934
  %7109 = vmatpush1.bf16.msra.mxu0 %v4933
  %7110 = vmatprep.subr.bf16.mxu0 %v4936
  %7111 = vmatpush1.bf16.msra.mxu0 %v4935
  %7112 = vmatprep.subr.bf16.mxu0 %v4938
  %7113 = vmatpush1.bf16.msra.mxu0 %v4937
  %7114 = vmatprep.subr.bf16.mxu0 %v4940
  %7115 = vmatpush1.bf16.msra.mxu0 %v4939
  %7116 = vmatprep.subr.bf16.mxu0 %v4942
  %7117 = vmatpush1.bf16.msra.mxu0 %v4941
  %7118 = vmatprep.mubr.bf16.mxu0 %v1217
  %7119 = vmatmul.mubr.bf16.gmra.mrb[0].mxu0 %v1216
  %v7120 = vpop.f32.mrb[0].mxu0
  %v7121 = vadd.f32 %v7080, %v7120
  %v7122 = vpop.f32.mrb[0].mxu0
  %v7123 = vadd.f32 %v7082, %v7122
  %v7124 = vpop.f32.mrb[0].mxu0
  %v7125 = vpop.f32.mrb[0].mxu0
  %7126 = vdwg.mxu0
  %7127 = vmatprep.subr.bf16.mxu0 %v4944
  %7128 = vmatpush1.bf16.msra.mxu0 %v4943
  %7129 = vmatprep.subr.bf16.mxu0 %v4946
  %7130 = vmatpush1.bf16.msra.mxu0 %v4945
  %7131 = vmatprep.subr.bf16.mxu0 %v4948
  %7132 = vmatpush1.bf16.msra.mxu0 %v4947
  %7133 = vmatprep.subr.bf16.mxu0 %v4950
  %7134 = vmatpush1.bf16.msra.mxu0 %v4949
  %7135 = vmatprep.subr.bf16.mxu0 %v4952
  %7136 = vmatpush1.bf16.msra.mxu0 %v4951
  %7137 = vmatprep.subr.bf16.mxu0 %v4954
  %7138 = vmatpush1.bf16.msra.mxu0 %v4953
  %7139 = vmatprep.subr.bf16.mxu0 %v4956
  %7140 = vmatpush1.bf16.msra.mxu0 %v4955
  %7141 = vmatprep.subr.bf16.mxu0 %v4958
  %7142 = vmatpush1.bf16.msra.mxu0 %v4957
  %7143 = vmatprep.subr.bf16.mxu0 %v4960
  %7144 = vmatpush1.bf16.msra.mxu0 %v4959
  %7145 = vmatprep.subr.bf16.mxu0 %v4962
  %7146 = vmatpush1.bf16.msra.mxu0 %v4961
  %7147 = vmatprep.subr.bf16.mxu0 %v4964
  %7148 = vmatpush1.bf16.msra.mxu0 %v4963
  %7149 = vmatprep.subr.bf16.mxu0 %v4966
  %7150 = vmatpush1.bf16.msra.mxu0 %v4965
  %7151 = vmatprep.subr.bf16.mxu0 %v4968
  %7152 = vmatpush1.bf16.msra.mxu0 %v4967
  %7153 = vmatprep.subr.bf16.mxu0 %v4970
  %7154 = vmatpush1.bf16.msra.mxu0 %v4969
  %7155 = vmatprep.subr.bf16.mxu0 %v4972
  %7156 = vmatpush1.bf16.msra.mxu0 %v4971
  %7157 = vmatprep.subr.bf16.mxu0 %v4974
  %7158 = vmatpush1.bf16.msra.mxu0 %v4973
  %7159 = vmatprep.mubr.bf16.mxu0 %v1219
  %7160 = vmatmul.mubr.bf16.gmra.mrb[0].mxu0 %v1218
  %v7161 = vpop.f32.mrb[0].mxu0
  %v7162 = vadd.f32 %v7121, %v7161
  %v7163 = vpop.f32.mrb[0].mxu0
  %v7164 = vadd.f32 %v7123, %v7163
  %v7165 = vpop.f32.mrb[0].mxu0
  %v7166 = vpop.f32.mrb[0].mxu0
  %7167 = vdwg.mxu0
  %7168 = vmatprep.subr.bf16.mxu0 %v4976
  %7169 = vmatpush1.bf16.msra.mxu0 %v4975
  %7170 = vmatprep.subr.bf16.mxu0 %v4978
  %7171 = vmatpush1.bf16.msra.mxu0 %v4977
  %7172 = vmatprep.subr.bf16.mxu0 %v4980
  %7173 = vmatpush1.bf16.msra.mxu0 %v4979
  %7174 = vmatprep.subr.bf16.mxu0 %v4982
  %7175 = vmatpush1.bf16.msra.mxu0 %v4981
  %7176 = vmatprep.subr.bf16.mxu0 %v4984
  %7177 = vmatpush1.bf16.msra.mxu0 %v4983
  %7178 = vmatprep.subr.bf16.mxu0 %v4986
  %7179 = vmatpush1.bf16.msra.mxu0 %v4985
  %7180 = vmatprep.subr.bf16.mxu0 %v4988
  %7181 = vmatpush1.bf16.msra.mxu0 %v4987
  %7182 = vmatprep.subr.bf16.mxu0 %v4990
  %7183 = vmatpush1.bf16.msra.mxu0 %v4989
  %7184 = vmatprep.subr.bf16.mxu0 %v4992
  %7185 = vmatpush1.bf16.msra.mxu0 %v4991
  %7186 = vmatprep.subr.bf16.mxu0 %v4994
  %7187 = vmatpush1.bf16.msra.mxu0 %v4993
  %7188 = vmatprep.subr.bf16.mxu0 %v4996
  %7189 = vmatpush1.bf16.msra.mxu0 %v4995
  %7190 = vmatprep.subr.bf16.mxu0 %v4998
  %7191 = vmatpush1.bf16.msra.mxu0 %v4997
  %7192 = vmatprep.subr.bf16.mxu0 %v5000
  %7193 = vmatpush1.bf16.msra.mxu0 %v4999
  %7194 = vmatprep.subr.bf16.mxu0 %v5002
  %7195 = vmatpush1.bf16.msra.mxu0 %v5001
  %7196 = vmatprep.subr.bf16.mxu0 %v5004
  %7197 = vmatpush1.bf16.msra.mxu0 %v5003
  %7198 = vmatprep.subr.bf16.mxu0 %v5006
  %7199 = vmatpush1.bf16.msra.mxu0 %v5005
  %7200 = vmatprep.mubr.bf16.mxu0 %v1221
  %7201 = vmatmul.mubr.bf16.gmra.mrb[0].mxu0 %v1220
  %v7202 = vpop.f32.mrb[0].mxu0
  %v7203 = vadd.f32 %v7162, %v7202
  %v7204 = vpop.f32.mrb[0].mxu0
  %v7205 = vadd.f32 %v7164, %v7204
  %v7206 = vpop.f32.mrb[0].mxu0
  %v7207 = vpop.f32.mrb[0].mxu0
  %7208 = vdwg.mxu0
  %7209 = vmatprep.subr.bf16.mxu0 %v5008
  %7210 = vmatpush1.bf16.msra.mxu0 %v5007
  %7211 = vmatprep.subr.bf16.mxu0 %v5010
  %7212 = vmatpush1.bf16.msra.mxu0 %v5009
  %7213 = vmatprep.subr.bf16.mxu0 %v5012
  %7214 = vmatpush1.bf16.msra.mxu0 %v5011
  %7215 = vmatprep.subr.bf16.mxu0 %v5014
  %7216 = vmatpush1.bf16.msra.mxu0 %v5013
  %7217 = vmatprep.subr.bf16.mxu0 %v5016
  %7218 = vmatpush1.bf16.msra.mxu0 %v5015
  %7219 = vmatprep.subr.bf16.mxu0 %v5018
  %7220 = vmatpush1.bf16.msra.mxu0 %v5017
  %7221 = vmatprep.subr.bf16.mxu0 %v5020
  %7222 = vmatpush1.bf16.msra.mxu0 %v5019
  %7223 = vmatprep.subr.bf16.mxu0 %v5022
  %7224 = vmatpush1.bf16.msra.mxu0 %v5021
  %7225 = vmatprep.subr.bf16.mxu0 %v5024
  %7226 = vmatpush1.bf16.msra.mxu0 %v5023
  %7227 = vmatprep.subr.bf16.mxu0 %v5026
  %7228 = vmatpush1.bf16.msra.mxu0 %v5025
  %7229 = vmatprep.subr.bf16.mxu0 %v5028
  %7230 = vmatpush1.bf16.msra.mxu0 %v5027
  %7231 = vmatprep.subr.bf16.mxu0 %v5030
  %7232 = vmatpush1.bf16.msra.mxu0 %v5029
  %7233 = vmatprep.subr.bf16.mxu0 %v5032
  %7234 = vmatpush1.bf16.msra.mxu0 %v5031
  %7235 = vmatprep.subr.bf16.mxu0 %v5034
  %7236 = vmatpush1.bf16.msra.mxu0 %v5033
  %7237 = vmatprep.subr.bf16.mxu0 %v5036
  %7238 = vmatpush1.bf16.msra.mxu0 %v5035
  %7239 = vmatprep.subr.bf16.mxu0 %v5038
  %7240 = vmatpush1.bf16.msra.mxu0 %v5037
  %7241 = vmatprep.mubr.bf16.mxu0 %v1223
  %7242 = vmatmul.mubr.bf16.gmra.mrb[0].mxu0 %v1222
  %v7243 = vpop.f32.mrb[0].mxu0
  %v7244 = vadd.f32 %v7203, %v7243
  %v7245 = vpop.f32.mrb[0].mxu0
  %v7246 = vadd.f32 %v7205, %v7245
  %v7247 = vpop.f32.mrb[0].mxu0
  %v7248 = vpop.f32.mrb[0].mxu0
  %7249 = vdwg.mxu0
  %7250 = vmatprep.subr.bf16.mxu0 %v5040
  %7251 = vmatpush1.bf16.msra.mxu0 %v5039
  %7252 = vmatprep.subr.bf16.mxu0 %v5042
  %7253 = vmatpush1.bf16.msra.mxu0 %v5041
  %7254 = vmatprep.subr.bf16.mxu0 %v5044
  %7255 = vmatpush1.bf16.msra.mxu0 %v5043
  %7256 = vmatprep.subr.bf16.mxu0 %v5046
  %7257 = vmatpush1.bf16.msra.mxu0 %v5045
  %7258 = vmatprep.subr.bf16.mxu0 %v5048
  %7259 = vmatpush1.bf16.msra.mxu0 %v5047
  %7260 = vmatprep.subr.bf16.mxu0 %v5050
  %7261 = vmatpush1.bf16.msra.mxu0 %v5049
  %7262 = vmatprep.subr.bf16.mxu0 %v5052
  %7263 = vmatpush1.bf16.msra.mxu0 %v5051
  %7264 = vmatprep.subr.bf16.mxu0 %v5054
  %7265 = vmatpush1.bf16.msra.mxu0 %v5053
  %7266 = vmatprep.subr.bf16.mxu0 %v5056
  %7267 = vmatpush1.bf16.msra.mxu0 %v5055
  %7268 = vmatprep.subr.bf16.mxu0 %v5058
  %7269 = vmatpush1.bf16.msra.mxu0 %v5057
  %7270 = vmatprep.subr.bf16.mxu0 %v5060
  %7271 = vmatpush1.bf16.msra.mxu0 %v5059
  %7272 = vmatprep.subr.bf16.mxu0 %v5062
  %7273 = vmatpush1.bf16.msra.mxu0 %v5061
  %7274 = vmatprep.subr.bf16.mxu0 %v5064
  %7275 = vmatpush1.bf16.msra.mxu0 %v5063
  %7276 = vmatprep.subr.bf16.mxu0 %v5066
  %7277 = vmatpush1.bf16.msra.mxu0 %v5065
  %7278 = vmatprep.subr.bf16.mxu0 %v5068
  %7279 = vmatpush1.bf16.msra.mxu0 %v5067
  %7280 = vmatprep.subr.bf16.mxu0 %v5070
  %7281 = vmatpush1.bf16.msra.mxu0 %v5069
  %7282 = vmatprep.mubr.bf16.mxu0 %v1225
  %7283 = vmatmul.mubr.bf16.gmra.mrb[0].mxu0 %v1224
  %v7284 = vpop.f32.mrb[0].mxu0
  %v7285 = vadd.f32 %v7244, %v7284
  %v7286 = vpop.f32.mrb[0].mxu0
  %v7287 = vadd.f32 %v7246, %v7286
  %v7288 = vpop.f32.mrb[0].mxu0
  %v7289 = vpop.f32.mrb[0].mxu0
  %7290 = vdwg.mxu0
  %7291 = vmatprep.subr.bf16.mxu0 %v5072
  %7292 = vmatpush1.bf16.msra.mxu0 %v5071
  %7293 = vmatprep.subr.bf16.mxu0 %v5074
  %7294 = vmatpush1.bf16.msra.mxu0 %v5073
  %7295 = vmatprep.subr.bf16.mxu0 %v5076
  %7296 = vmatpush1.bf16.msra.mxu0 %v5075
  %7297 = vmatprep.subr.bf16.mxu0 %v5078
  %7298 = vmatpush1.bf16.msra.mxu0 %v5077
  %7299 = vmatprep.subr.bf16.mxu0 %v5080
  %7300 = vmatpush1.bf16.msra.mxu0 %v5079
  %7301 = vmatprep.subr.bf16.mxu0 %v5082
  %7302 = vmatpush1.bf16.msra.mxu0 %v5081
  %7303 = vmatprep.subr.bf16.mxu0 %v5084
  %7304 = vmatpush1.bf16.msra.mxu0 %v5083
  %7305 = vmatprep.subr.bf16.mxu0 %v5086
  %7306 = vmatpush1.bf16.msra.mxu0 %v5085
  %7307 = vmatprep.subr.bf16.mxu0 %v5088
  %7308 = vmatpush1.bf16.msra.mxu0 %v5087
  %7309 = vmatprep.subr.bf16.mxu0 %v5090
  %7310 = vmatpush1.bf16.msra.mxu0 %v5089
  %7311 = vmatprep.subr.bf16.mxu0 %v5092
  %7312 = vmatpush1.bf16.msra.mxu0 %v5091
  %7313 = vmatprep.subr.bf16.mxu0 %v5094
  %7314 = vmatpush1.bf16.msra.mxu0 %v5093
  %7315 = vmatprep.subr.bf16.mxu0 %v5096
  %7316 = vmatpush1.bf16.msra.mxu0 %v5095
  %7317 = vmatprep.subr.bf16.mxu0 %v5098
  %7318 = vmatpush1.bf16.msra.mxu0 %v5097
  %7319 = vmatprep.subr.bf16.mxu0 %v5100
  %7320 = vmatpush1.bf16.msra.mxu0 %v5099
  %7321 = vmatprep.subr.bf16.mxu0 %v5102
  %7322 = vmatpush1.bf16.msra.mxu0 %v5101
  %7323 = vmatprep.mubr.bf16.mxu0 %v1227
  %7324 = vmatmul.mubr.bf16.gmra.mrb[0].mxu0 %v1226
  %v7325 = vpop.f32.mrb[0].mxu0
  %v7326 = vadd.f32 %v7285, %v7325
  %v7327 = vpop.f32.mrb[0].mxu0
  %v7328 = vadd.f32 %v7287, %v7327
  %v7329 = vpop.f32.mrb[0].mxu0
  %v7330 = vpop.f32.mrb[0].mxu0
  %7331 = vdwg.mxu0
  %7332 = vmatprep.subr.bf16.mxu0 %v5104
  %7333 = vmatpush1.bf16.msra.mxu0 %v5103
  %7334 = vmatprep.subr.bf16.mxu0 %v5106
  %7335 = vmatpush1.bf16.msra.mxu0 %v5105
  %7336 = vmatprep.subr.bf16.mxu0 %v5108
  %7337 = vmatpush1.bf16.msra.mxu0 %v5107
  %7338 = vmatprep.subr.bf16.mxu0 %v5110
  %7339 = vmatpush1.bf16.msra.mxu0 %v5109
  %7340 = vmatprep.subr.bf16.mxu0 %v5112
  %7341 = vmatpush1.bf16.msra.mxu0 %v5111
  %7342 = vmatprep.subr.bf16.mxu0 %v5114
  %7343 = vmatpush1.bf16.msra.mxu0 %v5113
  %7344 = vmatprep.subr.bf16.mxu0 %v5116
  %7345 = vmatpush1.bf16.msra.mxu0 %v5115
  %7346 = vmatprep.subr.bf16.mxu0 %v5118
  %7347 = vmatpush1.bf16.msra.mxu0 %v5117
  %7348 = vmatprep.subr.bf16.mxu0 %v5120
  %7349 = vmatpush1.bf16.msra.mxu0 %v5119
  %7350 = vmatprep.subr.bf16.mxu0 %v5122
  %7351 = vmatpush1.bf16.msra.mxu0 %v5121
  %7352 = vmatprep.subr.bf16.mxu0 %v5124
  %7353 = vmatpush1.bf16.msra.mxu0 %v5123
  %7354 = vmatprep.subr.bf16.mxu0 %v5126
  %7355 = vmatpush1.bf16.msra.mxu0 %v5125
  %7356 = vmatprep.subr.bf16.mxu0 %v5128
  %7357 = vmatpush1.bf16.msra.mxu0 %v5127
  %7358 = vmatprep.subr.bf16.mxu0 %v5130
  %7359 = vmatpush1.bf16.msra.mxu0 %v5129
  %7360 = vmatprep.subr.bf16.mxu0 %v5132
  %7361 = vmatpush1.bf16.msra.mxu0 %v5131
  %7362 = vmatprep.subr.bf16.mxu0 %v5134
  %7363 = vmatpush1.bf16.msra.mxu0 %v5133
  %7364 = vmatprep.mubr.bf16.mxu0 %v1229
  %7365 = vmatmul.mubr.bf16.gmra.mrb[0].mxu0 %v1228
  %v7366 = vpop.f32.mrb[0].mxu0
  %v7367 = vadd.f32 %v7326, %v7366
  %v7368 = vpop.f32.mrb[0].mxu0
  %v7369 = vadd.f32 %v7328, %v7368
  %v7370 = vpop.f32.mrb[0].mxu0
  %v7371 = vpop.f32.mrb[0].mxu0
  %7372 = vdwg.mxu0
  %7373 = vmatprep.subr.bf16.mxu0 %v5136
  %7374 = vmatpush1.bf16.msra.mxu0 %v5135
  %7375 = vmatprep.subr.bf16.mxu0 %v5138
  %7376 = vmatpush1.bf16.msra.mxu0 %v5137
  %7377 = vmatprep.subr.bf16.mxu0 %v5140
  %7378 = vmatpush1.bf16.msra.mxu0 %v5139
  %7379 = vmatprep.subr.bf16.mxu0 %v5142
  %7380 = vmatpush1.bf16.msra.mxu0 %v5141
  %7381 = vmatprep.subr.bf16.mxu0 %v5144
  %7382 = vmatpush1.bf16.msra.mxu0 %v5143
  %7383 = vmatprep.subr.bf16.mxu0 %v5146
  %7384 = vmatpush1.bf16.msra.mxu0 %v5145
  %7385 = vmatprep.subr.bf16.mxu0 %v5148
  %7386 = vmatpush1.bf16.msra.mxu0 %v5147
  %7387 = vmatprep.subr.bf16.mxu0 %v5150
  %7388 = vmatpush1.bf16.msra.mxu0 %v5149
  %7389 = vmatprep.subr.bf16.mxu0 %v5152
  %7390 = vmatpush1.bf16.msra.mxu0 %v5151
  %7391 = vmatprep.subr.bf16.mxu0 %v5154
  %7392 = vmatpush1.bf16.msra.mxu0 %v5153
  %7393 = vmatprep.subr.bf16.mxu0 %v5156
  %7394 = vmatpush1.bf16.msra.mxu0 %v5155
  %7395 = vmatprep.subr.bf16.mxu0 %v5158
  %7396 = vmatpush1.bf16.msra.mxu0 %v5157
  %7397 = vmatprep.subr.bf16.mxu0 %v5160
  %7398 = vmatpush1.bf16.msra.mxu0 %v5159
  %7399 = vmatprep.subr.bf16.mxu0 %v5162
  %7400 = vmatpush1.bf16.msra.mxu0 %v5161
  %7401 = vmatprep.subr.bf16.mxu0 %v5164
  %7402 = vmatpush1.bf16.msra.mxu0 %v5163
  %7403 = vmatprep.subr.bf16.mxu0 %v5166
  %7404 = vmatpush1.bf16.msra.mxu0 %v5165
  %7405 = vmatprep.mubr.bf16.mxu0 %v1231
  %7406 = vmatmul.mubr.bf16.gmra.mrb[0].mxu0 %v1230
  %v7407 = vpop.f32.mrb[0].mxu0
  %v7408 = vadd.f32 %v7367, %v7407
  %v7409 = vpop.f32.mrb[0].mxu0
  %v7410 = vadd.f32 %v7369, %v7409
  %v7411 = vpop.f32.mrb[0].mxu0
  %v7412 = vpop.f32.mrb[0].mxu0
  %7413 = vdwg.mxu0
  %7414 = vmatprep.subr.bf16.mxu0 %v5168
  %7415 = vmatpush1.bf16.msra.mxu0 %v5167
  %7416 = vmatprep.subr.bf16.mxu0 %v5170
  %7417 = vmatpush1.bf16.msra.mxu0 %v5169
  %7418 = vmatprep.subr.bf16.mxu0 %v5172
  %7419 = vmatpush1.bf16.msra.mxu0 %v5171
  %7420 = vmatprep.subr.bf16.mxu0 %v5174
  %7421 = vmatpush1.bf16.msra.mxu0 %v5173
  %7422 = vmatprep.subr.bf16.mxu0 %v5176
  %7423 = vmatpush1.bf16.msra.mxu0 %v5175
  %7424 = vmatprep.subr.bf16.mxu0 %v5178
  %7425 = vmatpush1.bf16.msra.mxu0 %v5177
  %7426 = vmatprep.subr.bf16.mxu0 %v5180
  %7427 = vmatpush1.bf16.msra.mxu0 %v5179
  %7428 = vmatprep.subr.bf16.mxu0 %v5182
  %7429 = vmatpush1.bf16.msra.mxu0 %v5181
  %7430 = vmatprep.subr.bf16.mxu0 %v5184
  %7431 = vmatpush1.bf16.msra.mxu0 %v5183
  %7432 = vmatprep.subr.bf16.mxu0 %v5186
  %7433 = vmatpush1.bf16.msra.mxu0 %v5185
  %7434 = vmatprep.subr.bf16.mxu0 %v5188
  %7435 = vmatpush1.bf16.msra.mxu0 %v5187
  %7436 = vmatprep.subr.bf16.mxu0 %v5190
  %7437 = vmatpush1.bf16.msra.mxu0 %v5189
  %7438 = vmatprep.subr.bf16.mxu0 %v5192
  %7439 = vmatpush1.bf16.msra.mxu0 %v5191
  %7440 = vmatprep.subr.bf16.mxu0 %v5194
  %7441 = vmatpush1.bf16.msra.mxu0 %v5193
  %7442 = vmatprep.subr.bf16.mxu0 %v5196
  %7443 = vmatpush1.bf16.msra.mxu0 %v5195
  %7444 = vmatprep.subr.bf16.mxu0 %v5198
  %7445 = vmatpush1.bf16.msra.mxu0 %v5197
  %7446 = vmatprep.mubr.bf16.mxu0 %v1233
  %7447 = vmatmul.mubr.bf16.gmra.mrb[0].mxu0 %v1232
  %v7448 = vpop.f32.mrb[0].mxu0
  %v7449 = vadd.f32 %v7408, %v7448
  %v7450 = vpop.f32.mrb[0].mxu0
  %v7451 = vadd.f32 %v7410, %v7450
  %v7452 = vpop.f32.mrb[0].mxu0
  %v7453 = vpop.f32.mrb[0].mxu0
  %7454 = vdwg.mxu0
  %7455 = vmatprep.subr.bf16.mxu0 %v5200
  %7456 = vmatpush1.bf16.msra.mxu0 %v5199
  %7457 = vmatprep.subr.bf16.mxu0 %v5202
  %7458 = vmatpush1.bf16.msra.mxu0 %v5201
  %7459 = vmatprep.subr.bf16.mxu0 %v5204
  %7460 = vmatpush1.bf16.msra.mxu0 %v5203
  %7461 = vmatprep.subr.bf16.mxu0 %v5206
  %7462 = vmatpush1.bf16.msra.mxu0 %v5205
  %7463 = vmatprep.subr.bf16.mxu0 %v5208
  %7464 = vmatpush1.bf16.msra.mxu0 %v5207
  %7465 = vmatprep.subr.bf16.mxu0 %v5210
  %7466 = vmatpush1.bf16.msra.mxu0 %v5209
  %7467 = vmatprep.subr.bf16.mxu0 %v5212
  %7468 = vmatpush1.bf16.msra.mxu0 %v5211
  %7469 = vmatprep.subr.bf16.mxu0 %v5214
  %7470 = vmatpush1.bf16.msra.mxu0 %v5213
  %7471 = vmatprep.subr.bf16.mxu0 %v5216
  %7472 = vmatpush1.bf16.msra.mxu0 %v5215
  %7473 = vmatprep.subr.bf16.mxu0 %v5218
  %7474 = vmatpush1.bf16.msra.mxu0 %v5217
  %7475 = vmatprep.subr.bf16.mxu0 %v5220
  %7476 = vmatpush1.bf16.msra.mxu0 %v5219
  %7477 = vmatprep.subr.bf16.mxu0 %v5222
  %7478 = vmatpush1.bf16.msra.mxu0 %v5221
  %7479 = vmatprep.subr.bf16.mxu0 %v5224
  %7480 = vmatpush1.bf16.msra.mxu0 %v5223
  %7481 = vmatprep.subr.bf16.mxu0 %v5226
  %7482 = vmatpush1.bf16.msra.mxu0 %v5225
  %7483 = vmatprep.subr.bf16.mxu0 %v5228
  %7484 = vmatpush1.bf16.msra.mxu0 %v5227
  %7485 = vmatprep.subr.bf16.mxu0 %v5230
  %7486 = vmatpush1.bf16.msra.mxu0 %v5229
  %7487 = vmatprep.mubr.bf16.mxu0 %v1235
  %7488 = vmatmul.mubr.bf16.gmra.mrb[0].mxu0 %v1234
  %v7489 = vpop.f32.mrb[0].mxu0
  %v7490 = vadd.f32 %v7449, %v7489
  %v7491 = vpop.f32.mrb[0].mxu0
  %v7492 = vadd.f32 %v7451, %v7491
  %v7493 = vpop.f32.mrb[0].mxu0
  %v7494 = vpop.f32.mrb[0].mxu0
  %7495 = vdwg.mxu0
  %7496 = vmatprep.subr.bf16.mxu0 %v5232
  %7497 = vmatpush1.bf16.msra.mxu0 %v5231
  %7498 = vmatprep.subr.bf16.mxu0 %v5234
  %7499 = vmatpush1.bf16.msra.mxu0 %v5233
  %7500 = vmatprep.subr.bf16.mxu0 %v5236
  %7501 = vmatpush1.bf16.msra.mxu0 %v5235
  %7502 = vmatprep.subr.bf16.mxu0 %v5238
  %7503 = vmatpush1.bf16.msra.mxu0 %v5237
  %7504 = vmatprep.subr.bf16.mxu0 %v5240
  %7505 = vmatpush1.bf16.msra.mxu0 %v5239
  %7506 = vmatprep.subr.bf16.mxu0 %v5242
  %7507 = vmatpush1.bf16.msra.mxu0 %v5241
  %7508 = vmatprep.subr.bf16.mxu0 %v5244
  %7509 = vmatpush1.bf16.msra.mxu0 %v5243
  %7510 = vmatprep.subr.bf16.mxu0 %v5246
  %7511 = vmatpush1.bf16.msra.mxu0 %v5245
  %7512 = vmatprep.subr.bf16.mxu0 %v5248
  %7513 = vmatpush1.bf16.msra.mxu0 %v5247
  %7514 = vmatprep.subr.bf16.mxu0 %v5250
  %7515 = vmatpush1.bf16.msra.mxu0 %v5249
  %7516 = vmatprep.subr.bf16.mxu0 %v5252
  %7517 = vmatpush1.bf16.msra.mxu0 %v5251
  %7518 = vmatprep.subr.bf16.mxu0 %v5254
  %7519 = vmatpush1.bf16.msra.mxu0 %v5253
  %7520 = vmatprep.subr.bf16.mxu0 %v5256
  %7521 = vmatpush1.bf16.msra.mxu0 %v5255
  %7522 = vmatprep.subr.bf16.mxu0 %v5258
  %7523 = vmatpush1.bf16.msra.mxu0 %v5257
  %7524 = vmatprep.subr.bf16.mxu0 %v5260
  %7525 = vmatpush1.bf16.msra.mxu0 %v5259
  %7526 = vmatprep.subr.bf16.mxu0 %v5262
  %7527 = vmatpush1.bf16.msra.mxu0 %v5261
  %7528 = vmatprep.mubr.bf16.mxu0 %v1237
  %7529 = vmatmul.mubr.bf16.gmra.mrb[0].mxu0 %v1236
  %v7530 = vpop.f32.mrb[0].mxu0
  %v7531 = vadd.f32 %v7490, %v7530
  %v7532 = vpop.f32.mrb[0].mxu0
  %v7533 = vadd.f32 %v7492, %v7532
  %v7534 = vpop.f32.mrb[0].mxu0
  %v7535 = vpop.f32.mrb[0].mxu0
  %7536 = vdwg.mxu0
  %7537 = vmatprep.subr.bf16.mxu0 %v5264
  %7538 = vmatpush1.bf16.msra.mxu0 %v5263
  %7539 = vmatprep.subr.bf16.mxu0 %v5266
  %7540 = vmatpush1.bf16.msra.mxu0 %v5265
  %7541 = vmatprep.subr.bf16.mxu0 %v5268
  %7542 = vmatpush1.bf16.msra.mxu0 %v5267
  %7543 = vmatprep.subr.bf16.mxu0 %v5270
  %7544 = vmatpush1.bf16.msra.mxu0 %v5269
  %7545 = vmatprep.subr.bf16.mxu0 %v5272
  %7546 = vmatpush1.bf16.msra.mxu0 %v5271
  %7547 = vmatprep.subr.bf16.mxu0 %v5274
  %7548 = vmatpush1.bf16.msra.mxu0 %v5273
  %7549 = vmatprep.subr.bf16.mxu0 %v5276
  %7550 = vmatpush1.bf16.msra.mxu0 %v5275
  %7551 = vmatprep.subr.bf16.mxu0 %v5278
  %7552 = vmatpush1.bf16.msra.mxu0 %v5277
  %7553 = vmatprep.subr.bf16.mxu0 %v5280
  %7554 = vmatpush1.bf16.msra.mxu0 %v5279
  %7555 = vmatprep.subr.bf16.mxu0 %v5282
  %7556 = vmatpush1.bf16.msra.mxu0 %v5281
  %7557 = vmatprep.subr.bf16.mxu0 %v5284
  %7558 = vmatpush1.bf16.msra.mxu0 %v5283
  %7559 = vmatprep.subr.bf16.mxu0 %v5286
  %7560 = vmatpush1.bf16.msra.mxu0 %v5285
  %7561 = vmatprep.subr.bf16.mxu0 %v5288
  %7562 = vmatpush1.bf16.msra.mxu0 %v5287
  %7563 = vmatprep.subr.bf16.mxu0 %v5290
  %7564 = vmatpush1.bf16.msra.mxu0 %v5289
  %7565 = vmatprep.subr.bf16.mxu0 %v5292
  %7566 = vmatpush1.bf16.msra.mxu0 %v5291
  %7567 = vmatprep.subr.bf16.mxu0 %v5294
  %7568 = vmatpush1.bf16.msra.mxu0 %v5293
  %7569 = vmatprep.mubr.bf16.mxu0 %v1239
  %7570 = vmatmul.mubr.bf16.gmra.mrb[0].mxu0 %v1238
  %v7571 = vpop.f32.mrb[0].mxu0
  %v7572 = vadd.f32 %v7531, %v7571
  %v7573 = vpop.f32.mrb[0].mxu0
  %v7574 = vadd.f32 %v7533, %v7573
  %v7575 = vpop.f32.mrb[0].mxu0
  %v7576 = vpop.f32.mrb[0].mxu0
  %7577 = vdwg.mxu0
  %7578 = vmatprep.subr.bf16.mxu0 %v5296
  %7579 = vmatpush1.bf16.msra.mxu0 %v5295
  %7580 = vmatprep.subr.bf16.mxu0 %v5298
  %7581 = vmatpush1.bf16.msra.mxu0 %v5297
  %7582 = vmatprep.subr.bf16.mxu0 %v5300
  %7583 = vmatpush1.bf16.msra.mxu0 %v5299
  %7584 = vmatprep.subr.bf16.mxu0 %v5302
  %7585 = vmatpush1.bf16.msra.mxu0 %v5301
  %7586 = vmatprep.subr.bf16.mxu0 0
  %7587 = vmatpush1.bf16.msra.mxu0 0
  %7588 = vmatprep.subr.bf16.mxu0 0
  %7589 = vmatpush1.bf16.msra.mxu0 0
  %7590 = vmatprep.subr.bf16.mxu0 0
  %7591 = vmatpush1.bf16.msra.mxu0 0
  %7592 = vmatprep.subr.bf16.mxu0 0
  %7593 = vmatpush1.bf16.msra.mxu0 0
  %7594 = vmatprep.subr.bf16.mxu0 0
  %7595 = vmatpush1.bf16.msra.mxu0 0
  %7596 = vmatprep.subr.bf16.mxu0 0
  %7597 = vmatpush1.bf16.msra.mxu0 0
  %7598 = vmatprep.subr.bf16.mxu0 0
  %7599 = vmatpush1.bf16.msra.mxu0 0
  %7600 = vmatprep.subr.bf16.mxu0 0
  %7601 = vmatpush1.bf16.msra.mxu0 0
  %7602 = vmatprep.subr.bf16.mxu0 0
  %7603 = vmatpush1.bf16.msra.mxu0 0
  %7604 = vmatprep.subr.bf16.mxu0 0
  %7605 = vmatpush1.bf16.msra.mxu0 0
  %7606 = vmatprep.subr.bf16.mxu0 0
  %7607 = vmatpush1.bf16.msra.mxu0 0
  %7608 = vmatprep.subr.bf16.mxu0 0
  %7609 = vmatpush1.bf16.msra.mxu0 0
  %7610 = vmatprep.mubr.bf16.mxu0 0
  %7611 = vmatmul.mubr.bf16.gmra.mrb[0].mxu0 %v6305
  %v7612 = vpop.f32.mrb[0].mxu0
  %v7613 = vadd.f32 %v7572, %v7612
  %v7614 = vpop.f32.mrb[0].mxu0
  %v7615 = vadd.f32 %v7574, %v7614
  %v7616 = vpop.f32.mrb[0].mxu0
  %v7617 = vpop.f32.mrb[0].mxu0
  %7618 = vdwg.mxu0
  %v7619 = vmax.f32 %v7613, 0.0
  %v7620 = vmax.f32 %v7615, 0.0
  %v7621 = vpack.c.bf16 %v7619, %v7619
  %v7622 = vpack.c.bf16 %v7620, %v7620
  %v7623 = vld [vmem:[%s3] sm:$0xf]
  %v7624 = vld [vmem:[%s3 + $0x4] sm:$0xf]
  %v7625 = vld [vmem:[%s3 + $0x8] sm:$0xf]
  %v7626 = vld [vmem:[%s3 + $0xc] sm:$0xf]
  %v7627 = vld [vmem:[%s3 + $0x10] sm:$0xf]
  %v7628 = vld [vmem:[%s3 + $0x14] sm:$0xf]
  %v7629 = vld [vmem:[%s3 + $0x18] sm:$0xf]
  %v7630 = vld [vmem:[%s3 + $0x1c] sm:$0xf]
  %v7631 = vld [vmem:[%s3 + $0x20] sm:$0xf]
  %v7632 = vld [vmem:[%s3 + $0x24] sm:$0xf]
  %v7633 = vld [vmem:[%s3 + $0x28] sm:$0xf]
  %v7634 = vld [vmem:[%s3 + $0x2c] sm:$0xf]
  %v7635 = vld [vmem:[%s3 + $0x30] sm:$0xf]
  %v7636 = vld [vmem:[%s3 + $0x34] sm:$0xf]
  %v7637 = vld [vmem:[%s3 + $0x38] sm:$0xf]
  %v7638 = vld [vmem:[%s3 + $0x3c] sm:$0xf]
  %v7639 = vld [vmem:[%s3 + $0x40] sm:$0xf]
  %v7640 = vld [vmem:[%s3 + $0x44] sm:$0xf]
  %v7641 = vld [vmem:[%s3 + $0x48] sm:$0xf]
  %v7642 = vld [vmem:[%s3 + $0x4c] sm:$0xf]
  %v7643 = vld [vmem:[%s3 + $0x50] sm:$0xf]
  %v7644 = vld [vmem:[%s3 + $0x54] sm:$0xf]
  %v7645 = vld [vmem:[%s3 + $0x58] sm:$0xf]
  %v7646 = vld [vmem:[%s3 + $0x5c] sm:$0xf]
  %v7647 = vld [vmem:[%s3 + $0x60] sm:$0xf]
  %v7648 = vld [vmem:[%s3 + $0x64] sm:$0xf]
  %v7649 = vld [vmem:[%s3 + $0x68] sm:$0xf]
  %v7650 = vld [vmem:[%s3 + $0x6c] sm:$0xf]
  %v7651 = vld [vmem:[%s3 + $0x70] sm:$0xf]
  %v7652 = vld [vmem:[%s3 + $0x74] sm:$0xf]
  %v7653 = vld [vmem:[%s3 + $0x78] sm:$0xf]
  %v7654 = vld [vmem:[%s3 + $0x7c] sm:$0xf]
  %v7655 = vld [vmem:[%s4] sm:$0x1]
  %v7657 = vlaneseq
  %v7658 = vshrl.u32 %v7657, 7
  %v7659 = vsub.s32 0, %v7658
  %v7660 = vrot.slane %v7655, %v7659
  %v7694 = vunpack.c.l.b16 %v7623
  %v7695 = vunpack.c.l.b16 %v7624
  %v7696 = vunpack.c.l.b16 %v7625
  %v7697 = vunpack.c.l.b16 %v7626
  %v7698 = vunpack.c.l.b16 %v7627
  %v7699 = vunpack.c.l.b16 %v7628
  %v7700 = vunpack.c.l.b16 %v7629
  %v7701 = vunpack.c.l.b16 %v7630
  %v7702 = vunpack.c.l.b16 %v7631
  %v7703 = vunpack.c.l.b16 %v7632
  %v7704 = vunpack.c.l.b16 %v7633
  %v7705 = vunpack.c.l.b16 %v7634
  %v7706 = vunpack.c.l.b16 %v7635
  %v7707 = vunpack.c.l.b16 %v7636
  %v7708 = vunpack.c.l.b16 %v7637
  %v7709 = vunpack.c.l.b16 %v7638
  %v7710 = vunpack.c.l.b16 %v7639
  %v7711 = vunpack.c.l.b16 %v7640
  %v7712 = vunpack.c.l.b16 %v7641
  %v7713 = vunpack.c.l.b16 %v7642
  %v7714 = vunpack.c.l.b16 %v7643
  %v7715 = vunpack.c.l.b16 %v7644
  %v7716 = vunpack.c.l.b16 %v7645
  %v7717 = vunpack.c.l.b16 %v7646
  %v7718 = vunpack.c.l.b16 %v7647
  %v7719 = vunpack.c.l.b16 %v7648
  %v7720 = vunpack.c.l.b16 %v7649
  %v7721 = vunpack.c.l.b16 %v7650
  %v7722 = vunpack.c.l.b16 %v7651
  %v7723 = vunpack.c.l.b16 %v7652
  %v7724 = vunpack.c.l.b16 %v7653
  %v7725 = vunpack.c.l.b16 %v7654
  %v7726 = vpack.c.b16 %v7695, %v7694
  %v7727 = vpack.c.b16 %v7697, %v7696
  %v7728 = vpack.c.b16 %v7699, %v7698
  %v7729 = vpack.c.b16 %v7701, %v7700
  %v7730 = vpack.c.b16 %v7703, %v7702
  %v7731 = vpack.c.b16 %v7705, %v7704
  %v7732 = vpack.c.b16 %v7707, %v7706
  %v7733 = vpack.c.b16 %v7709, %v7708
  %v7734 = vpack.c.b16 %v7711, %v7710
  %v7735 = vpack.c.b16 %v7713, %v7712
  %v7736 = vpack.c.b16 %v7715, %v7714
  %v7737 = vpack.c.b16 %v7717, %v7716
  %v7738 = vpack.c.b16 %v7719, %v7718
  %v7739 = vpack.c.b16 %v7721, %v7720
  %v7740 = vpack.c.b16 %v7723, %v7722
  %v7741 = vpack.c.b16 %v7725, %v7724
  %7758 = vmatprep.subr.bf16.mxu0 0
  %7759 = vmatpush1.bf16.msra.mxu0 %v7726
  %7760 = vmatprep.subr.bf16.mxu0 0
  %7761 = vmatpush1.bf16.msra.mxu0 %v7727
  %7762 = vmatprep.subr.bf16.mxu0 0
  %7763 = vmatpush1.bf16.msra.mxu0 %v7728
  %7764 = vmatprep.subr.bf16.mxu0 0
  %7765 = vmatpush1.bf16.msra.mxu0 %v7729
  %7766 = vmatprep.subr.bf16.mxu0 0
  %7767 = vmatpush1.bf16.msra.mxu0 %v7730
  %7768 = vmatprep.subr.bf16.mxu0 0
  %7769 = vmatpush1.bf16.msra.mxu0 %v7731
  %7770 = vmatprep.subr.bf16.mxu0 0
  %7771 = vmatpush1.bf16.msra.mxu0 %v7732
  %7772 = vmatprep.subr.bf16.mxu0 0
  %7773 = vmatpush1.bf16.msra.mxu0 %v7733
  %7774 = vmatprep.subr.bf16.mxu0 0
  %7775 = vmatpush1.bf16.msra.mxu0 %v7734
  %7776 = vmatprep.subr.bf16.mxu0 0
  %7777 = vmatpush1.bf16.msra.mxu0 %v7735
  %7778 = vmatprep.subr.bf16.mxu0 0
  %7779 = vmatpush1.bf16.msra.mxu0 %v7736
  %7780 = vmatprep.subr.bf16.mxu0 0
  %7781 = vmatpush1.bf16.msra.mxu0 %v7737
  %7782 = vmatprep.subr.bf16.mxu0 0
  %7783 = vmatpush1.bf16.msra.mxu0 %v7738
  %7784 = vmatprep.subr.bf16.mxu0 0
  %7785 = vmatpush1.bf16.msra.mxu0 %v7739
  %7786 = vmatprep.subr.bf16.mxu0 0
  %7787 = vmatpush1.bf16.msra.mxu0 %v7740
  %7788 = vmatprep.subr.bf16.mxu0 0
  %7789 = vmatpush1.bf16.msra.mxu0 %v7741
  %7790 = vmatprep.mubr.bf16.mxu0 %v7622
  %7791 = vmatmul.mubr.bf16.gmra.mrb[0].mxu0 %v7621
  %v7792 = vpop.f32.mrb[0].mxu0
  %v7793 = vadd.f32 %v7660, %v7792
  %v7794 = vpop.f32.mrb[0].mxu0
  %v7795 = vpop.f32.mrb[0].mxu0
  %v7796 = vpop.f32.mrb[0].mxu0
  %7797 = vdwg.mxu0
  %v7798 = vmax.f32 %v7793, 0.0
  %v7799 = vpack.c.bf16 %v7798, %v7798
  %v7800 = vld [vmem:[%s5] sm:$0xf]
  %v7801 = vld [vmem:[%s5 + $0x4] sm:$0xf]
  %v7802 = vld [vmem:[%s5 + $0x8] sm:$0xf]
  %v7803 = vld [vmem:[%s5 + $0xc] sm:$0xf]
  %v7804 = vld [vmem:[%s5 + $0x10] sm:$0xf]
  %v7805 = vld [vmem:[%s5 + $0x14] sm:$0xf]
  %v7806 = vld [vmem:[%s5 + $0x18] sm:$0xf]
  %v7807 = vld [vmem:[%s5 + $0x1c] sm:$0xf]
  %v7808 = vld [vmem:[%s5 + $0x20] sm:$0xf]
  %v7809 = vld [vmem:[%s5 + $0x24] sm:$0xf]
  %v7810 = vld [vmem:[%s5 + $0x28] sm:$0xf]
  %v7811 = vld [vmem:[%s5 + $0x2c] sm:$0xf]
  %v7812 = vld [vmem:[%s5 + $0x30] sm:$0xf]
  %v7813 = vld [vmem:[%s5 + $0x34] sm:$0xf]
  %v7814 = vld [vmem:[%s5 + $0x38] sm:$0xf]
  %v7815 = vld [vmem:[%s5 + $0x3c] sm:$0xf]
  %v7816 = vld [vmem:[%s6] sm:$0x1]
  %v7818 = vlaneseq
  %v7819 = vshrl.u32 %v7818, 7
  %v7820 = vsub.s32 0, %v7819
  %v7821 = vrot.slane %v7816, %v7820
  %v7839 = vunpack.c.l.b16 %v7800
  %v7840 = vunpack.c.l.b16 %v7801
  %v7841 = vunpack.c.l.b16 %v7802
  %v7842 = vunpack.c.l.b16 %v7803
  %v7843 = vunpack.c.l.b16 %v7804
  %v7844 = vunpack.c.l.b16 %v7805
  %v7845 = vunpack.c.l.b16 %v7806
  %v7846 = vunpack.c.l.b16 %v7807
  %v7847 = vunpack.c.l.b16 %v7808
  %v7848 = vunpack.c.l.b16 %v7809
  %v7849 = vunpack.c.l.b16 %v7810
  %v7850 = vunpack.c.l.b16 %v7811
  %v7851 = vunpack.c.l.b16 %v7812
  %v7852 = vunpack.c.l.b16 %v7813
  %v7853 = vunpack.c.l.b16 %v7814
  %v7854 = vunpack.c.l.b16 %v7815
  %v7855 = vpack.c.b16 %v7840, %v7839
  %v7856 = vpack.c.b16 %v7842, %v7841
  %v7857 = vpack.c.b16 %v7844, %v7843
  %v7858 = vpack.c.b16 %v7846, %v7845
  %v7859 = vpack.c.b16 %v7848, %v7847
  %v7860 = vpack.c.b16 %v7850, %v7849
  %v7861 = vpack.c.b16 %v7852, %v7851
  %v7862 = vpack.c.b16 %v7854, %v7853
  %7871 = vmatprep.subr.bf16.mxu0 0
  %7872 = vmatpush1.bf16.msra.mxu0 %v7855
  %7873 = vmatprep.subr.bf16.mxu0 0
  %7874 = vmatpush1.bf16.msra.mxu0 %v7856
  %7875 = vmatprep.subr.bf16.mxu0 0
  %7876 = vmatpush1.bf16.msra.mxu0 %v7857
  %7877 = vmatprep.subr.bf16.mxu0 0
  %7878 = vmatpush1.bf16.msra.mxu0 %v7858
  %7879 = vmatprep.subr.bf16.mxu0 0
  %7880 = vmatpush1.bf16.msra.mxu0 %v7859
  %7881 = vmatprep.subr.bf16.mxu0 0
  %7882 = vmatpush1.bf16.msra.mxu0 %v7860
  %7883 = vmatprep.subr.bf16.mxu0 0
  %7884 = vmatpush1.bf16.msra.mxu0 %v7861
  %7885 = vmatprep.subr.bf16.mxu0 0
  %7886 = vmatpush1.bf16.msra.mxu0 %v7862
  %7887 = vmatprep.subr.bf16.mxu0 0
  %7888 = vmatpush1.bf16.msra.mxu0 0
  %7889 = vmatprep.subr.bf16.mxu0 0
  %7890 = vmatpush1.bf16.msra.mxu0 0
  %7891 = vmatprep.subr.bf16.mxu0 0
  %7892 = vmatpush1.bf16.msra.mxu0 0
  %7893 = vmatprep.subr.bf16.mxu0 0
  %7894 = vmatpush1.bf16.msra.mxu0 0
  %7895 = vmatprep.subr.bf16.mxu0 0
  %7896 = vmatpush1.bf16.msra.mxu0 0
  %7897 = vmatprep.subr.bf16.mxu0 0
  %7898 = vmatpush1.bf16.msra.mxu0 0
  %7899 = vmatprep.subr.bf16.mxu0 0
  %7900 = vmatpush1.bf16.msra.mxu0 0
  %7901 = vmatprep.subr.bf16.mxu0 0
  %7902 = vmatpush1.bf16.msra.mxu0 0
  %7903 = vmatprep.mubr.bf16.mxu0 0
  %7904 = vmatmul.mubr.bf16.gmra.mrb[0].mxu0 %v7799
  %v7905 = vpop.f32.mrb[0].mxu0
  %v7906 = vadd.f32 %v7821, %v7905
  %v7907 = vpop.f32.mrb[0].mxu0
  %v7908 = vpop.f32.mrb[0].mxu0
  %v7909 = vpop.f32.mrb[0].mxu0
  %7910 = vdwg.mxu0
  %v7911 = vmax.f32 %v7906, 0.0
  %v7912 = vpack.c.bf16 %v7911, %v7911
  %v7913 = vld [vmem:[%s7] sm:$0xf]
  %v7914 = vld [vmem:[%s7 + $0x4] sm:$0xf]
  %v7915 = vld [vmem:[%s7 + $0x8] sm:$0xf]
  %v7916 = vld [vmem:[%s7 + $0xc] sm:$0xf]
  %v7917 = vld [vmem:[%s7 + $0x10] sm:$0xf]
  %v7918 = vld [vmem:[%s7 + $0x14] sm:$0xf]
  %v7919 = vld [vmem:[%s7 + $0x18] sm:$0xf]
  %v7920 = vld [vmem:[%s7 + $0x1c] sm:$0xf]
  %v7921 = vld [vmem:[%s8] sm:$0x1]
  %v7923 = vlaneseq
  %v7924 = vshrl.u32 %v7923, 7
  %v7925 = vsub.s32 0, %v7924
  %v7926 = vrot.slane %v7921, %v7925
  %v7936 = vunpack.c.l.b16 %v7913
  %v7937 = vunpack.c.l.b16 %v7914
  %v7938 = vunpack.c.l.b16 %v7915
  %v7939 = vunpack.c.l.b16 %v7916
  %v7940 = vunpack.c.l.b16 %v7917
  %v7941 = vunpack.c.l.b16 %v7918
  %v7942 = vunpack.c.l.b16 %v7919
  %v7943 = vunpack.c.l.b16 %v7920
  %v7944 = vpack.c.b16 %v7937, %v7936
  %v7945 = vpack.c.b16 %v7939, %v7938
  %v7946 = vpack.c.b16 %v7941, %v7940
  %v7947 = vpack.c.b16 %v7943, %v7942
  %v7953 = vsel %vm6303, %v7912, 0
  %7955 = vmatprep.subr.bf16.mxu0 0
  %7956 = vmatpush1.bf16.msra.mxu0 %v7944
  %7957 = vmatprep.subr.bf16.mxu0 0
  %7958 = vmatpush1.bf16.msra.mxu0 %v7945
  %7959 = vmatprep.subr.bf16.mxu0 0
  %7960 = vmatpush1.bf16.msra.mxu0 %v7946
  %7961 = vmatprep.subr.bf16.mxu0 0
  %7962 = vmatpush1.bf16.msra.mxu0 %v7947
  %7963 = vmatprep.subr.bf16.mxu0 0
  %7964 = vmatpush1.bf16.msra.mxu0 0
  %7965 = vmatprep.subr.bf16.mxu0 0
  %7966 = vmatpush1.bf16.msra.mxu0 0
  %7967 = vmatprep.subr.bf16.mxu0 0
  %7968 = vmatpush1.bf16.msra.mxu0 0
  %7969 = vmatprep.subr.bf16.mxu0 0
  %7970 = vmatpush1.bf16.msra.mxu0 0
  %7971 = vmatprep.subr.bf16.mxu0 0
  %7972 = vmatpush1.bf16.msra.mxu0 0
  %7973 = vmatprep.subr.bf16.mxu0 0
  %7974 = vmatpush1.bf16.msra.mxu0 0
  %7975 = vmatprep.subr.bf16.mxu0 0
  %7976 = vmatpush1.bf16.msra.mxu0 0
  %7977 = vmatprep.subr.bf16.mxu0 0
  %7978 = vmatpush1.bf16.msra.mxu0 0
  %7979 = vmatprep.subr.bf16.mxu0 0
  %7980 = vmatpush1.bf16.msra.mxu0 0
  %7981 = vmatprep.subr.bf16.mxu0 0
  %7982 = vmatpush1.bf16.msra.mxu0 0
  %7983 = vmatprep.subr.bf16.mxu0 0
  %7984 = vmatpush1.bf16.msra.mxu0 0
  %7985 = vmatprep.subr.bf16.mxu0 0
  %7986 = vmatpush1.bf16.msra.mxu0 0
  %7987 = vmatprep.mubr.bf16.mxu0 0
  %7988 = vmatmul.mubr.bf16.gmra.mrb[0].mxu0 %v7953
  %v7989 = vpop.f32.mrb[0].mxu0
  %v7990 = vadd.f32 %v7926, %v7989
  %v7991 = vpop.f32.mrb[0].mxu0
  %v7992 = vpop.f32.mrb[0].mxu0
  %v7993 = vpop.f32.mrb[0].mxu0
  %7994 = vdwg.mxu0
  %v7995 = vmax.f32 %v7990, 0.0
  %v7996 = vpack.c.bf16 %v7995, %v7995
  %v7997 = vld [vmem:[%s9] sm:$0xf]
  %v7998 = vld [vmem:[%s9 + $0x4] sm:$0xf]
  %v7999 = vld [vmem:[%s10] sm:$0x1]
  %v8001 = vlaneseq
  %v8002 = vshrl.u32 %v8001, 7
  %v8003 = vsub.s32 0, %v8002
  %v8004 = vrot.slane %v7999, %v8003
  %v8008 = vunpack.c.l.b16 %v7997
  %v8009 = vunpack.c.l.b16 %v7998
  %v8010 = vpack.c.b16 %v8009, %v8008
  %vm8012 = vcmask 130048
  %v8014 = vsel %vm8012, %v7996, 0
  %8016 = vmatprep.subr.bf16.mxu0 0
  %8017 = vmatpush1.bf16.msra.mxu0 %v8010
  %8018 = vmatprep.subr.bf16.mxu0 0
  %8019 = vmatpush1.bf16.msra.mxu0 0
  %8020 = vmatprep.subr.bf16.mxu0 0
  %8021 = vmatpush1.bf16.msra.mxu0 0
  %8022 = vmatprep.subr.bf16.mxu0 0
  %8023 = vmatpush1.bf16.msra.mxu0 0
  %8024 = vmatprep.subr.bf16.mxu0 0
  %8025 = vmatpush1.bf16.msra.mxu0 0
  %8026 = vmatprep.subr.bf16.mxu0 0
  %8027 = vmatpush1.bf16.msra.mxu0 0
  %8028 = vmatprep.subr.bf16.mxu0 0
  %8029 = vmatpush1.bf16.msra.mxu0 0
  %8030 = vmatprep.subr.bf16.mxu0 0
  %8031 = vmatpush1.bf16.msra.mxu0 0
  %8032 = vmatprep.subr.bf16.mxu0 0
  %8033 = vmatpush1.bf16.msra.mxu0 0
  %8034 = vmatprep.subr.bf16.mxu0 0
  %8035 = vmatpush1.bf16.msra.mxu0 0
  %8036 = vmatprep.subr.bf16.mxu0 0
  %8037 = vmatpush1.bf16.msra.mxu0 0
  %8038 = vmatprep.subr.bf16.mxu0 0
  %8039 = vmatpush1.bf16.msra.mxu0 0
  %8040 = vmatprep.subr.bf16.mxu0 0
  %8041 = vmatpush1.bf16.msra.mxu0 0
  %8042 = vmatprep.subr.bf16.mxu0 0
  %8043 = vmatpush1.bf16.msra.mxu0 0
  %8044 = vmatprep.subr.bf16.mxu0 0
  %8045 = vmatpush1.bf16.msra.mxu0 0
  %8046 = vmatprep.subr.bf16.mxu0 0
  %8047 = vmatpush1.bf16.msra.mxu0 0
  %8048 = vmatprep.mubr.bf16.mxu0 0
  %8049 = vmatmul.mubr.bf16.gmra.mrb[0].mxu0 %v8014
  %v8050 = vpop.f32.mrb[0].mxu0
  %v8051 = vadd.f32 %v8004, %v8050
  %v8052 = vpop.f32.mrb[0].mxu0
  %v8053 = vpop.f32.mrb[0].mxu0
  %v8054 = vpop.f32.mrb[0].mxu0
  %8055 = vdwg.mxu0
  %vm8056 = vcmask 31744
  %8057 = vst.msk [vmem:[%s11] sm:$0xff] %vm8056, %v8051
  // Predicated region
  $region46: #{mlp_model_forward.1} parent=0 // pred_check
    _
  $region47: #{mlp_model_forward.1} parent=0 // pred_check_branch
    %8059 = sbr.rel (0) target = $region49
  $region48: #{mlp_model_forward.1} parent=0 // pred_region
    _
  $region49: #{mlp_model_forward.1} parent=0 // pred_fallthru
    _
  // Predicated region
  $region50: #{mlp_model_forward.1} parent=0 // pred_check
    _
  $region51: #{mlp_model_forward.1} parent=0 // pred_check_branch
    %8061 = sbr.rel (0) target = $region53
  $region52: #{mlp_model_forward.1} parent=0 // pred_region
    _
  $region53: #{mlp_model_forward.1} parent=0 // pred_fallthru
    _

</llo_original>
